<compile_context>
chip_gen: v7x
topology: tpu7x:2x2x1
jax: 0.10.0
libtpu: 0.0.40
codegen_flags: <defaults>
</compile_context>

<pallas_src>
import functools
import math

import jax
import jax.numpy as jnp
from jax.experimental import pallas as pl
from jax.experimental.pallas import tpu as pltpu


# ------------------------------ tiling helpers ------------------------------

_ROW_TILES = (1024, 512, 256, 128, 64, 32, 16)   # sublane axis (multiples of 16)
_LANE_TILES = (1024, 512, 256, 128)              # lane axis (multiples of 128)


def _round_up(x, m):
    return ((x + m - 1) // m) * m


def _get_vmem_budget():
    """Generation-aware VMEM budget: ~3/4 of physical, capped, safe fallback."""
    try:
        cap = int(pltpu.get_tpu_info().vmem_capacity_bytes)
    except Exception:
        cap = 64 * 1024 * 1024            # conservative (v7x-sized) fallback
    return max(32 * 1024 * 1024, min((cap * 3) // 4, 96 * 1024 * 1024))


_VMEM_BUDGET = _get_vmem_budget()


def _ordered_candidates(dim, cands):
    """Candidates <= dim, ordered by fewest blocks first (exact divisors win
    ties).  Ragged last blocks are allowed: these kernels are row/column
    independent so padded regions are discarded."""
    usable = [c for c in cands if c <= dim]
    if not usable:
        return [dim]
    usable.sort(key=lambda c: ((dim + c - 1) // c, dim % c != 0, -c))
    return usable


def _choose_gemm_tiles(M, N, K, *, x_bytes, w_bytes, out_bytes, res_bytes=0,
                       ln_scratch=False):
    """Pick (tm, tn) maximizing weight-DMA amortization subject to VMEM."""
    row_cands = _ordered_candidates(M, _ROW_TILES)
    # Keep >= 2 row blocks when M allows so the "parallel" row axis can shard
    # across v7x's two TensorCores.
    halved = [t for t in row_cands if 2 * t <= M]
    if halved:
        row_cands = halved
    lane_cands = _ordered_candidates(N, _LANE_TILES)

    def vmem_bytes(tm, tn):
        v = 2 * tm * K * x_bytes           # x block (double-buffered)
        v += 2 * K * tn * w_bytes          # weight block
        v += 2 * tm * tn * out_bytes       # output block
        v += 2 * tm * tn * res_bytes       # residual block (if any)
        if ln_scratch:
            v += tm * K * 2                # bf16 normalized-x scratch
        v += 4 * (2 * K + tn) * 4          # gamma / beta / bias (generous)
        return v

    for tm in row_cands:                   # prefer big tm (weight amortization)
        for tn in lane_cands:              # then big tn (fewer grid steps)
            if vmem_bytes(tm, tn) <= _VMEM_BUDGET:
                return tm, tn
    return row_cands[-1], lane_cands[-1]


def _seq_block(T):
    """Sequence padding granule (keeps attention/GEMM tiles aligned)."""
    if T >= 2048:
        return 256
    if T >= 128:
        return 128
    return _round_up(T, 16)


# ------------------------------- Pallas kernels ------------------------------

def _ln_matmul_kernel(x_ref, g_ref, b_ref, w_ref, bias_ref, o_ref, xn_ref, *,
                      activation):
    """Fused LayerNorm -> (x @ W + bias) [-> GELU].

    Grid = (M/tm, N/tn), j (N tiles) innermost.  LayerNorm of the (tm, C) row
    block is computed once at j == 0 into a bf16 VMEM scratch and reused for
    every N tile of the weight.
    """
    j = pl.program_id(1)

    @pl.when(j == 0)
    def _():
        x = x_ref[...].astype(jnp.float32)
        mean = jnp.mean(x, axis=-1, keepdims=True)
        var = jnp.mean(jnp.square(x - mean), axis=-1, keepdims=True)
        y = (x - mean) * jax.lax.rsqrt(var + 1e-5)
        y = y * g_ref[...] + b_ref[...]
        xn_ref[...] = y.astype(jnp.bfloat16)

    acc = jnp.dot(xn_ref[...], w_ref[...].astype(jnp.bfloat16),
                  preferred_element_type=jnp.float32)
    acc = acc + bias_ref[...]
    if activation == "gelu":
        # exact (erf-based) GELU, matching torch.nn.GELU()
        acc = 0.5 * acc * (1.0 + jax.lax.erf(acc * 0.7071067811865476))
    o_ref[...] = acc.astype(o_ref.dtype)


def _matmul_bias_res_kernel(x_ref, w_ref, bias_ref, res_ref, o_ref):
    """out = residual + x @ W + bias   (proj / c_proj with fused residual)."""
    acc = jnp.dot(x_ref[...].astype(jnp.bfloat16),
                  w_ref[...].astype(jnp.bfloat16),
                  preferred_element_type=jnp.float32)
    o_ref[...] = (res_ref[...].astype(jnp.float32) + acc
                  + bias_ref[...]).astype(o_ref.dtype)


def _flash_attn_kernel(q_ref, k_ref, v_ref, o_ref, m_ref, l_ref, acc_ref, *,
                       scale):
    """Flash-style causal attention for one (batch*head, q-block).

    Above-diagonal kv blocks are skipped (and their DMA suppressed by the
    min(ki, qi) index_map in the wrapper).  The causal mask is only built on
    diagonal blocks.  1/sqrt(D) is folded into q.
    """
    qi = pl.program_id(1)
    ki = pl.program_id(2)
    nk = pl.num_programs(2)

    @pl.when(ki == 0)
    def _():
        m_ref[...] = jnp.full_like(m_ref, -jnp.inf)
        l_ref[...] = jnp.zeros_like(l_ref)
        acc_ref[...] = jnp.zeros_like(acc_ref)

    def update(masked):
        q = (q_ref[0].astype(jnp.float32) * scale).astype(jnp.bfloat16)
        k = k_ref[0].astype(jnp.bfloat16)
        v = v_ref[0].astype(jnp.bfloat16)

        s = jax.lax.dot_general(q, k, (((1,), (1,)), ((), ())),
                                preferred_element_type=jnp.float32)
        if masked:
            # diagonal block: tq == tk and qi == ki, so local indices suffice
            tq, tk = s.shape
            row = jax.lax.broadcasted_iota(jnp.int32, (tq, tk), 0)
            col = jax.lax.broadcasted_iota(jnp.int32, (tq, tk), 1)
            s = jnp.where(col <= row, s, -1e30)

        m_prev = m_ref[...]
        m_new = jnp.maximum(m_prev, jnp.max(s, axis=-1, keepdims=True))
        alpha = jnp.exp(m_prev - m_new)
        p = jnp.exp(s - m_new)
        l_ref[...] = alpha * l_ref[...] + jnp.sum(p, axis=-1, keepdims=True)
        acc_ref[...] = alpha * acc_ref[...] + jax.lax.dot_general(
            p.astype(jnp.bfloat16), v, (((1,), (0,)), ((), ())),
            preferred_element_type=jnp.float32)
        m_ref[...] = m_new

    @pl.when(ki < qi)           # strictly below the diagonal: no mask needed
    def _():
        update(masked=False)

    @pl.when(ki == qi)          # diagonal block: apply the causal mask
    def _():
        update(masked=True)

    @pl.when(ki == nk - 1)
    def _():
        inv_l = pl.reciprocal(l_ref[...], approx=True)
        o_ref[0] = (acc_ref[...] * inv_l).astype(o_ref.dtype)


# ------------------------------ Pallas wrappers ------------------------------

def pallas_ln_matmul(x, gamma, beta, w, bias, *, activation=None,
                     out_dtype=jnp.bfloat16):
    M, C = x.shape
    N = w.shape[1]
    tm, tn = _choose_gemm_tiles(
        M, N, C,
        x_bytes=x.dtype.itemsize, w_bytes=w.dtype.itemsize,
        out_bytes=jnp.dtype(out_dtype).itemsize, ln_scratch=True)
    kernel = functools.partial(_ln_matmul_kernel, activation=activation)
    return pl.pallas_call(
        kernel,
        out_shape=jax.ShapeDtypeStruct((M, N), out_dtype),
        grid=(pl.cdiv(M, tm), pl.cdiv(N, tn)),
        in_specs=[
            pl.BlockSpec((tm, C), lambda i, j: (i, 0)),
            pl.BlockSpec((1, C), lambda i, j: (0, 0)),
            pl.BlockSpec((1, C), lambda i, j: (0, 0)),
            pl.BlockSpec((C, tn), lambda i, j: (0, j)),
            pl.BlockSpec((1, tn), lambda i, j: (0, j)),
        ],
        out_specs=pl.BlockSpec((tm, tn), lambda i, j: (i, j)),
        scratch_shapes=[pltpu.VMEM((tm, C), jnp.bfloat16)],
        compiler_params=pltpu.CompilerParams(
            dimension_semantics=("parallel", "arbitrary"),
            vmem_limit_bytes=_VMEM_BUDGET),
    )(x, gamma.reshape(1, C), beta.reshape(1, C), w, bias.reshape(1, N))


def pallas_matmul_bias_residual(x, w, bias, res, *, out_dtype=jnp.bfloat16):
    M, K = x.shape
    N = w.shape[1]
    tm, tn = _choose_gemm_tiles(
        M, N, K,
        x_bytes=x.dtype.itemsize, w_bytes=w.dtype.itemsize,
        out_bytes=jnp.dtype(out_dtype).itemsize,
        res_bytes=res.dtype.itemsize)
    return pl.pallas_call(
        _matmul_bias_res_kernel,
        out_shape=jax.ShapeDtypeStruct((M, N), out_dtype),
        grid=(pl.cdiv(M, tm), pl.cdiv(N, tn)),
        in_specs=[
            pl.BlockSpec((tm, K), lambda i, j: (i, 0)),
            pl.BlockSpec((K, tn), lambda i, j: (0, j)),
            pl.BlockSpec((1, tn), lambda i, j: (0, j)),
            pl.BlockSpec((tm, tn), lambda i, j: (i, j)),
        ],
        out_specs=pl.BlockSpec((tm, tn), lambda i, j: (i, j)),
        compiler_params=pltpu.CompilerParams(
            dimension_semantics=("parallel", "parallel"),
            vmem_limit_bytes=_VMEM_BUDGET),
    )(x, w, bias.reshape(1, N), res)


def pallas_flash_attention(q, k, v):
    """q, k, v: (B*H, T, D) with T a padded, tile-friendly length."""
    BH, T, D = q.shape
    if T >= 1024 and T % 256 == 0:
        tq = 256
    elif T % 128 == 0:
        tq = 128
    else:
        tq = T                               # small sequences: single block
    scale = 1.0 / math.sqrt(D)
    kernel = functools.partial(_flash_attn_kernel, scale=scale)

    q_spec = pl.BlockSpec((1, tq, D), lambda b, qi, ki: (b, qi, 0))
    # Above-diagonal (skipped) steps re-present the already-resident kv block,
    # so no K/V DMA is issued for them.
    kv_spec = pl.BlockSpec((1, tq, D),
                           lambda b, qi, ki: (b, jnp.minimum(ki, qi), 0))
    return pl.pallas_call(
        kernel,
        out_shape=jax.ShapeDtypeStruct((BH, T, D), jnp.bfloat16),
        grid=(BH, T // tq, T // tq),
        in_specs=[q_spec, kv_spec, kv_spec],
        out_specs=q_spec,
        scratch_shapes=[
            pltpu.VMEM((tq, 1), jnp.float32),   # running max m
            pltpu.VMEM((tq, 1), jnp.float32),   # running denom l
            pltpu.VMEM((tq, D), jnp.float32),   # output accumulator
        ],
        compiler_params=pltpu.CompilerParams(
            dimension_semantics=("parallel", "parallel", "arbitrary"),
            vmem_limit_bytes=_VMEM_BUDGET),
    )(q, k, v)


# ------------------------------ model assembly -------------------------------

def decoder_block(p, x, num_heads):
    B, T, C = x.shape                    # T already padded to a tile-friendly length
    D = C // num_heads
    M = B * T
    xf = x.reshape(M, C)                 # bf16 residual stream

    # attention branch: fused ln_1 + qkv projection (bf16 intermediates)
    qkv = pallas_ln_matmul(xf, p["ln1_g"], p["ln1_b"], p["attn_w"], p["attn_b"],
                           activation=None, out_dtype=jnp.bfloat16)   # (M, 3C)
    qkv = qkv.reshape(B, T, 3, num_heads, D)
    q = qkv[:, :, 0].transpose(0, 2, 1, 3).reshape(B * num_heads, T, D)
    k = qkv[:, :, 1].transpose(0, 2, 1, 3).reshape(B * num_heads, T, D)
    v = qkv[:, :, 2].transpose(0, 2, 1, 3).reshape(B * num_heads, T, D)
    att = pallas_flash_attention(q, k, v)                              # (B*H, T, D)
    att = att.reshape(B, num_heads, T, D).transpose(0, 2, 1, 3).reshape(M, C)
    # proj with fused residual add (residual stream stays bf16)
    x = pallas_matmul_bias_residual(att, p["proj_w"], p["proj_b"], xf)

    # MLP branch: fused ln_2 + fc + GELU, then c_proj with fused residual
    h = pallas_ln_matmul(x, p["ln2_g"], p["ln2_b"], p["fc_w"], p["fc_b"],
                         activation="gelu", out_dtype=jnp.bfloat16)    # (M, 4C)
    x = pallas_matmul_bias_residual(h, p["cproj_w"], p["cproj_b"], x)
    return x.reshape(B, T, C)


def gpt2_forward(params, idx, num_heads):
    B, T = idx.shape
    C = params["wte"].shape[1]
    V = params["lm_head_w"].shape[1]

    # embedding gathers kept in plain JAX (glue); dropout = identity (eval)
    tok_emb = jnp.take(params["wte"], idx, axis=0)        # (B, T, C)
    pos_emb = params["wpe"][:T]                           # (T, C)
    x = (tok_emb + pos_emb[None, :, :]).astype(jnp.bfloat16)

    # Pad the sequence once so attention / GEMM row tiles stay aligned.  Padded
    # positions sit after all real tokens, so causal masking keeps them from
    # influencing real outputs; they are sliced off before the lm_head.
    Tp = _round_up(T, _seq_block(T))
    if Tp != T:
        x = jnp.pad(x, ((0, 0), (0, Tp - T), (0, 0)))

    for blk in params["blocks"]:
        x = decoder_block(blk, x, num_heads)

    if Tp != T:
        x = x[:, :T, :]
    M = B * T

    # fused ln_f + lm_head (no bias -> zero bias), tiled over the vocab axis
    zero_bias = jnp.zeros((V,), jnp.float32)
    logits = pallas_ln_matmul(x.reshape(M, C), params["ln_f_g"], params["ln_f_b"],
                              params["lm_head_w"], zero_bias,
                              activation=None, out_dtype=jnp.float32)
    return logits.reshape(B, T, V)


# ------------------------------ parameter init --------------------------------

def init_params(key, vocab_size, max_length, emb_dim, num_layers):
    std = 0.02

    def normal(key, shape, dtype=jnp.float32):
        return (std * jax.random.normal(key, shape, dtype=jnp.float32)).astype(dtype)

    keys = jax.random.split(key, 3 + num_layers)
    params = {
        "wte": normal(keys[0], (vocab_size, emb_dim)),
        "wpe": normal(keys[1], (max_length, emb_dim)),
        "ln_f_g": jnp.ones((emb_dim,), jnp.float32),
        "ln_f_b": jnp.zeros((emb_dim,), jnp.float32),
        # matmul weights stored bf16 (halves weight DMA); accumulation is f32
        "lm_head_w": normal(keys[2], (emb_dim, vocab_size), jnp.bfloat16),
        "blocks": [],
    }
    for l in range(num_layers):
        bk = jax.random.split(keys[3 + l], 4)
        params["blocks"].append({
            "ln1_g": jnp.ones((emb_dim,), jnp.float32),
            "ln1_b": jnp.zeros((emb_dim,), jnp.float32),
            "attn_w": normal(bk[0], (emb_dim, 3 * emb_dim), jnp.bfloat16),
            "attn_b": jnp.zeros((3 * emb_dim,), jnp.float32),
            "proj_w": normal(bk[1], (emb_dim, emb_dim), jnp.bfloat16),
            "proj_b": jnp.zeros((emb_dim,), jnp.float32),
            "ln2_g": jnp.ones((emb_dim,), jnp.float32),
            "ln2_b": jnp.zeros((emb_dim,), jnp.float32),
            "fc_w": normal(bk[2], (emb_dim, 4 * emb_dim), jnp.bfloat16),
            "fc_b": jnp.zeros((4 * emb_dim,), jnp.float32),
            "cproj_w": normal(bk[3], (4 * emb_dim, emb_dim), jnp.bfloat16),
            "cproj_b": jnp.zeros((emb_dim,), jnp.float32),
        })
    return params


# ----------------------------------- main -------------------------------------

if __name__ == "__main__":
    VOCAB = 64
    MAX_LEN = 16
    EMB = 32
    HEADS = 4
    LAYERS = 2
    B, T = 2, 8

    key = jax.random.PRNGKey(0)
    pkey, ikey = jax.random.split(key)
    params = init_params(pkey, VOCAB, MAX_LEN, EMB, LAYERS)
    idx = jax.random.randint(ikey, (B, T), 0, VOCAB, dtype=jnp.int32)

    logits = jax.jit(lambda p, i: gpt2_forward(p, i, HEADS))(params, idx)
    logits = jax.block_until_ready(logits)

    assert logits.shape == (B, T, VOCAB)
    assert bool(jnp.all(jnp.isfinite(logits)))
    print("KERNEL_OK")
</pallas_src>

<mosaic_0001>
module attributes {stable_mosaic.version = 11 : i64} {
  func.func @_ln_matmul_kernel(%arg0: i32, %arg1: i32, %arg2: memref<16x32xbf16, #tpu.memory_space<vmem>>, %arg3: memref<1x32xf32, #tpu.memory_space<vmem>>, %arg4: memref<1x32xf32, #tpu.memory_space<vmem>>, %arg5: memref<32x96xbf16, #tpu.memory_space<vmem>>, %arg6: memref<1x96xf32, #tpu.memory_space<vmem>>, %arg7: memref<16x96xbf16, #tpu.memory_space<vmem>>, %arg8: memref<16x32xbf16, #tpu.memory_space<vmem>>) attributes {dimension_semantics = [#tpu.dimension_semantics<parallel>, #tpu.dimension_semantics<arbitrary>], iteration_bounds = array<i64: 2, 1>, scalar_prefetch = 0 : i64, scratch_operands = 1 : i64, tpu.core_type = #tpu.core_type<tc>, window_params = [{transform_indices = @transform_0, window_bounds = array<i64: 16, 32>}, {pipeline_mode = #tpu.pipeline_mode<synchronous>, transform_indices = @transform_1, window_bounds = array<i64: 1, 32>}, {pipeline_mode = #tpu.pipeline_mode<synchronous>, transform_indices = @transform_2, window_bounds = array<i64: 1, 32>}, {transform_indices = @transform_3, window_bounds = array<i64: 32, 96>}, {transform_indices = @transform_4, window_bounds = array<i64: 1, 96>}, {transform_indices = @transform_5, window_bounds = array<i64: 16, 96>}]} {
    %c0_i32 = arith.constant 0 : i32
    %0 = arith.cmpi eq, %arg1, %c0_i32 : i32
    %1 = arith.extui %0 : i1 to i32
    %c0_i32_0 = arith.constant 0 : i32
    %2 = arith.cmpi ne, %1, %c0_i32_0 : i32
    scf.if %2 {
      %c0_8 = arith.constant 0 : index
      %c0_9 = arith.constant 0 : index
      %11 = vector.load %arg2[%c0_8, %c0_9] : memref<16x32xbf16, #tpu.memory_space<vmem>>, vector<16x32xbf16>
      %12 = arith.extf %11 : vector<16x32xbf16> to vector<16x32xf32>
      %cst_10 = arith.constant dense<0.000000e+00> : vector<16xf32>
      %13 = vector.multi_reduction <add>, %12, %cst_10 [1] : vector<16x32xf32> to vector<16xf32>
      %14 = vector.shape_cast %13 : vector<16xf32> to vector<16x1xf32>
      %cst_11 = arith.constant 3.200000e+01 : f32
      %15 = vector.broadcast %cst_11 : f32 to vector<16x1xf32>
      %16 = arith.divf %14, %15 : vector<16x1xf32>
      %17 = vector.broadcast %16 : vector<16x1xf32> to vector<16x32xf32>
      %18 = arith.subf %12, %17 : vector<16x32xf32>
      %19 = arith.mulf %18, %18 : vector<16x32xf32>
      %cst_12 = arith.constant dense<0.000000e+00> : vector<16xf32>
      %20 = vector.multi_reduction <add>, %19, %cst_12 [1] : vector<16x32xf32> to vector<16xf32>
      %21 = vector.shape_cast %20 : vector<16xf32> to vector<16x1xf32>
      %cst_13 = arith.constant 3.200000e+01 : f32
      %22 = vector.broadcast %cst_13 : f32 to vector<16x1xf32>
      %23 = arith.divf %21, %22 : vector<16x1xf32>
      %24 = vector.broadcast %16 : vector<16x1xf32> to vector<16x32xf32>
      %25 = arith.subf %12, %24 : vector<16x32xf32>
      %cst_14 = arith.constant 9.99999974E-6 : f32
      %26 = vector.broadcast %cst_14 : f32 to vector<16x1xf32>
      %27 = arith.addf %23, %26 : vector<16x1xf32>
      %28 = math.rsqrt %27 : vector<16x1xf32>
      %29 = vector.broadcast %28 : vector<16x1xf32> to vector<16x32xf32>
      %30 = arith.mulf %25, %29 : vector<16x32xf32>
      %c0_15 = arith.constant 0 : index
      %c0_16 = arith.constant 0 : index
      %31 = vector.load %arg3[%c0_15, %c0_16] : memref<1x32xf32, #tpu.memory_space<vmem>>, vector<1x32xf32>
      %32 = vector.broadcast %31 : vector<1x32xf32> to vector<16x32xf32>
      %33 = arith.mulf %30, %32 : vector<16x32xf32>
      %c0_17 = arith.constant 0 : index
      %c0_18 = arith.constant 0 : index
      %34 = vector.load %arg4[%c0_17, %c0_18] : memref<1x32xf32, #tpu.memory_space<vmem>>, vector<1x32xf32>
      %35 = vector.broadcast %34 : vector<1x32xf32> to vector<16x32xf32>
      %36 = arith.addf %33, %35 : vector<16x32xf32>
      %37 = arith.truncf %36 : vector<16x32xf32> to vector<16x32xbf16>
      %c0_19 = arith.constant 0 : index
      %c0_20 = arith.constant 0 : index
      %38 = vector.load %arg8[%c0_19, %c0_20] : memref<16x32xbf16, #tpu.memory_space<vmem>>, vector<16x32xbf16>
      tpu.vector_store %arg8[%c0_19, %c0_20], %37 {strides = array<i32>} : memref<16x32xbf16, #tpu.memory_space<vmem>>, vector<16x32xbf16>,
    } else {
    }
    %c0 = arith.constant 0 : index
    %c0_1 = arith.constant 0 : index
    %3 = vector.load %arg8[%c0, %c0_1] : memref<16x32xbf16, #tpu.memory_space<vmem>>, vector<16x32xbf16>
    %c0_2 = arith.constant 0 : index
    %c0_3 = arith.constant 0 : index
    %4 = vector.load %arg5[%c0_2, %c0_3] : memref<32x96xbf16, #tpu.memory_space<vmem>>, vector<32x96xbf16>
    %cst = arith.constant dense<0.000000e+00> : vector<16x96xf32>
    %5 = tpu.matmul %3, %4, %cst {dimension_numbers = #tpu.dot_dimension_numbers<[1], [0], [0], [1], [0, 0, 1, 1], [], []>} : vector<16x32xbf16>, vector<32x96xbf16>, vector<16x96xf32> -> vector<16x96xf32>
    %c0_4 = arith.constant 0 : index
    %c0_5 = arith.constant 0 : index
    %6 = vector.load %arg6[%c0_4, %c0_5] : memref<1x96xf32, #tpu.memory_space<vmem>>, vector<1x96xf32>
    %7 = vector.broadcast %6 : vector<1x96xf32> to vector<16x96xf32>
    %8 = arith.addf %5, %7 : vector<16x96xf32>
    %9 = arith.truncf %8 : vector<16x96xf32> to vector<16x96xbf16>
    %c0_6 = arith.constant 0 : index
    %c0_7 = arith.constant 0 : index
    %10 = vector.load %arg7[%c0_6, %c0_7] : memref<16x96xbf16, #tpu.memory_space<vmem>>, vector<16x96xbf16>
    tpu.vector_store %arg7[%c0_6, %c0_7], %9 {strides = array<i32>} : memref<16x96xbf16, #tpu.memory_space<vmem>>, vector<16x96xbf16>,
    return
  }
  func.func @transform_0(%arg0: i32, %arg1: i32) -> (i32, i32) {
    %c0_i32 = arith.constant 0 : i32
    %c0_i32_0 = arith.constant 0 : i32
    return %arg0, %c0_i32 : i32, i32
  }
  func.func @transform_1(%arg0: i32, %arg1: i32) -> (i32, i32) {
    %c0_i32 = arith.constant 0 : i32
    %c0_i32_0 = arith.constant 0 : i32
    %c0_i32_1 = arith.constant 0 : i32
    return %c0_i32, %c0_i32_0 : i32, i32
  }
  func.func @transform_2(%arg0: i32, %arg1: i32) -> (i32, i32) {
    %c0_i32 = arith.constant 0 : i32
    %c0_i32_0 = arith.constant 0 : i32
    %c0_i32_1 = arith.constant 0 : i32
    return %c0_i32, %c0_i32_0 : i32, i32
  }
  func.func @transform_3(%arg0: i32, %arg1: i32) -> (i32, i32) {
    %c0_i32 = arith.constant 0 : i32
    %c0_i32_0 = arith.constant 0 : i32
    return %c0_i32, %arg1 : i32, i32
  }
  func.func @transform_4(%arg0: i32, %arg1: i32) -> (i32, i32) {
    %c0_i32 = arith.constant 0 : i32
    %c0_i32_0 = arith.constant 0 : i32
    return %c0_i32, %arg1 : i32, i32
  }
  func.func @transform_5(%arg0: i32, %arg1: i32) -> (i32, i32) {
    %c0_i32 = arith.constant 0 : i32
    return %arg0, %arg1 : i32, i32
  }
}

module attributes {stable_mosaic.version = 11 : i64} {
  func.func @_flash_attn_kernel(%arg0: i32, %arg1: i32, %arg2: i32, %arg3: memref<1x16x8xbf16, #tpu.memory_space<vmem>>, %arg4: memref<1x16x8xbf16, #tpu.memory_space<vmem>>, %arg5: memref<1x16x8xbf16, #tpu.memory_space<vmem>>, %arg6: memref<1x16x8xbf16, #tpu.memory_space<vmem>>, %arg7: memref<16x1xf32, #tpu.memory_space<vmem>>, %arg8: memref<16x1xf32, #tpu.memory_space<vmem>>, %arg9: memref<16x8xf32, #tpu.memory_space<vmem>>) attributes {dimension_semantics = [#tpu.dimension_semantics<parallel>, #tpu.dimension_semantics<parallel>, #tpu.dimension_semantics<arbitrary>], iteration_bounds = array<i64: 8, 1, 1>, scalar_prefetch = 0 : i64, scratch_operands = 3 : i64, tpu.core_type = #tpu.core_type<tc>, window_params = [{transform_indices = @transform_0, window_bounds = array<i64: 1, 16, 8>}, {transform_indices = @transform_1, window_bounds = array<i64: 1, 16, 8>}, {transform_indices = @transform_2, window_bounds = array<i64: 1, 16, 8>}, {transform_indices = @transform_3, window_bounds = array<i64: 1, 16, 8>}]} {
    %c0_i32 = arith.constant 0 : i32
    %0 = arith.cmpi eq, %arg2, %c0_i32 : i32
    %1 = arith.extui %0 : i1 to i32
    %c0_i32_0 = arith.constant 0 : i32
    %2 = arith.cmpi ne, %1, %c0_i32_0 : i32
    scf.if %2 {
      %cst = arith.constant 0xFF800000 : f32
      %12 = vector.broadcast %cst : f32 to vector<16x1xf32>
      %c0 = arith.constant 0 : index
      %c0_5 = arith.constant 0 : index
      %13 = vector.load %arg7[%c0, %c0_5] : memref<16x1xf32, #tpu.memory_space<vmem>>, vector<16x1xf32>
      tpu.vector_store %arg7[%c0, %c0_5], %12 {strides = array<i32>} : memref<16x1xf32, #tpu.memory_space<vmem>>, vector<16x1xf32>,
      %cst_6 = arith.constant 0.000000e+00 : f32
      %14 = vector.broadcast %cst_6 : f32 to vector<16x1xf32>
      %c0_7 = arith.constant 0 : index
      %c0_8 = arith.constant 0 : index
      %15 = vector.load %arg8[%c0_7, %c0_8] : memref<16x1xf32, #tpu.memory_space<vmem>>, vector<16x1xf32>
      tpu.vector_store %arg8[%c0_7, %c0_8], %14 {strides = array<i32>} : memref<16x1xf32, #tpu.memory_space<vmem>>, vector<16x1xf32>,
      %cst_9 = arith.constant 0.000000e+00 : f32
      %16 = vector.broadcast %cst_9 : f32 to vector<16x8xf32>
      %c0_10 = arith.constant 0 : index
      %c0_11 = arith.constant 0 : index
      %17 = vector.load %arg9[%c0_10, %c0_11] : memref<16x8xf32, #tpu.memory_space<vmem>>, vector<16x8xf32>
      tpu.vector_store %arg9[%c0_10, %c0_11], %16 {strides = array<i32>} : memref<16x8xf32, #tpu.memory_space<vmem>>, vector<16x8xf32>,
    } else {
    }
    %3 = arith.cmpi slt, %arg2, %arg1 : i32
    %4 = arith.extui %3 : i1 to i32
    %c0_i32_1 = arith.constant 0 : i32
    %5 = arith.cmpi ne, %4, %c0_i32_1 : i32
    scf.if %5 {
      %c0 = arith.constant 0 : index
      %c0_5 = arith.constant 0 : index
      %c0_6 = arith.constant 0 : index
      %12 = vector.load %arg3[%c0, %c0_5, %c0_6] : memref<1x16x8xbf16, #tpu.memory_space<vmem>>, vector<1x16x8xbf16>
      %13 = vector.shape_cast %12 : vector<1x16x8xbf16> to vector<16x8xbf16>
      %14 = arith.extf %13 : vector<16x8xbf16> to vector<16x8xf32>
      %cst = arith.constant 0.353553385 : f32
      %15 = vector.broadcast %cst : f32 to vector<16x8xf32>
      %16 = arith.mulf %14, %15 : vector<16x8xf32>
      %17 = arith.truncf %16 : vector<16x8xf32> to vector<16x8xbf16>
      %c0_7 = arith.constant 0 : index
      %c0_8 = arith.constant 0 : index
      %c0_9 = arith.constant 0 : index
      %18 = vector.load %arg4[%c0_7, %c0_8, %c0_9] : memref<1x16x8xbf16, #tpu.memory_space<vmem>>, vector<1x16x8xbf16>
      %19 = vector.shape_cast %18 : vector<1x16x8xbf16> to vector<16x8xbf16>
      %c0_10 = arith.constant 0 : index
      %c0_11 = arith.constant 0 : index
      %c0_12 = arith.constant 0 : index
      %20 = vector.load %arg5[%c0_10, %c0_11, %c0_12] : memref<1x16x8xbf16, #tpu.memory_space<vmem>>, vector<1x16x8xbf16>
      %21 = vector.shape_cast %20 : vector<1x16x8xbf16> to vector<16x8xbf16>
      %cst_13 = arith.constant dense<0.000000e+00> : vector<16x16xf32>
      %22 = tpu.matmul %17, %19, %cst_13 {dimension_numbers = #tpu.dot_dimension_numbers<[1], [1], [0], [0], [0, 0, 1, 0], [], []>} : vector<16x8xbf16>, vector<16x8xbf16>, vector<16x16xf32> -> vector<16x16xf32>
      %c0_14 = arith.constant 0 : index
      %c0_15 = arith.constant 0 : index
      %23 = vector.load %arg7[%c0_14, %c0_15] : memref<16x1xf32, #tpu.memory_space<vmem>>, vector<16x1xf32>
      %cst_16 = arith.constant dense<0xFF800000> : vector<16xf32>
      %24 = vector.multi_reduction <maximumf>, %22, %cst_16 [1] : vector<16x16xf32> to vector<16xf32>
      %25 = vector.shape_cast %24 : vector<16xf32> to vector<16x1xf32>
      %26 = arith.maximumf %23, %25 : vector<16x1xf32>
      %27 = arith.subf %23, %26 : vector<16x1xf32>
      %28 = math.exp %27 : vector<16x1xf32>
      %29 = vector.broadcast %26 : vector<16x1xf32> to vector<16x16xf32>
      %30 = arith.subf %22, %29 : vector<16x16xf32>
      %31 = math.exp %30 : vector<16x16xf32>
      %c0_17 = arith.constant 0 : index
      %c0_18 = arith.constant 0 : index
      %32 = vector.load %arg8[%c0_17, %c0_18] : memref<16x1xf32, #tpu.memory_space<vmem>>, vector<16x1xf32>
      %33 = arith.mulf %28, %32 : vector<16x1xf32>
      %cst_19 = arith.constant dense<0.000000e+00> : vector<16xf32>
      %34 = vector.multi_reduction <add>, %31, %cst_19 [1] : vector<16x16xf32> to vector<16xf32>
      %35 = vector.shape_cast %34 : vector<16xf32> to vector<16x1xf32>
      %36 = arith.addf %33, %35 : vector<16x1xf32>
      %c0_20 = arith.constant 0 : index
      %c0_21 = arith.constant 0 : index
      %37 = vector.load %arg8[%c0_20, %c0_21] : memref<16x1xf32, #tpu.memory_space<vmem>>, vector<16x1xf32>
      tpu.vector_store %arg8[%c0_20, %c0_21], %36 {strides = array<i32>} : memref<16x1xf32, #tpu.memory_space<vmem>>, vector<16x1xf32>,
      %c0_22 = arith.constant 0 : index
      %c0_23 = arith.constant 0 : index
      %38 = vector.load %arg9[%c0_22, %c0_23] : memref<16x8xf32, #tpu.memory_space<vmem>>, vector<16x8xf32>
      %39 = vector.broadcast %28 : vector<16x1xf32> to vector<16x8xf32>
      %40 = arith.mulf %39, %38 : vector<16x8xf32>
      %41 = arith.truncf %31 : vector<16x16xf32> to vector<16x16xbf16>
      %cst_24 = arith.constant dense<0.000000e+00> : vector<16x8xf32>
      %42 = tpu.matmul %41, %21, %cst_24 {dimension_numbers = #tpu.dot_dimension_numbers<[1], [0], [0], [1], [0, 0, 1, 1], [], []>} : vector<16x16xbf16>, vector<16x8xbf16>, vector<16x8xf32> -> vector<16x8xf32>
      %43 = arith.addf %40, %42 : vector<16x8xf32>
      %c0_25 = arith.constant 0 : index
      %c0_26 = arith.constant 0 : index
      %44 = vector.load %arg9[%c0_25, %c0_26] : memref<16x8xf32, #tpu.memory_space<vmem>>, vector<16x8xf32>
      tpu.vector_store %arg9[%c0_25, %c0_26], %43 {strides = array<i32>} : memref<16x8xf32, #tpu.memory_space<vmem>>, vector<16x8xf32>,
      %c0_27 = arith.constant 0 : index
      %c0_28 = arith.constant 0 : index
      %45 = vector.load %arg7[%c0_27, %c0_28] : memref<16x1xf32, #tpu.memory_space<vmem>>, vector<16x1xf32>
      tpu.vector_store %arg7[%c0_27, %c0_28], %26 {strides = array<i32>} : memref<16x1xf32, #tpu.memory_space<vmem>>, vector<16x1xf32>,
    } else {
    }
    %6 = arith.cmpi eq, %arg2, %arg1 : i32
    %7 = arith.extui %6 : i1 to i32
    %c0_i32_2 = arith.constant 0 : i32
    %8 = arith.cmpi ne, %7, %c0_i32_2 : i32
    scf.if %8 {
      %c0 = arith.constant 0 : index
      %c0_5 = arith.constant 0 : index
      %c0_6 = arith.constant 0 : index
      %12 = vector.load %arg3[%c0, %c0_5, %c0_6] : memref<1x16x8xbf16, #tpu.memory_space<vmem>>, vector<1x16x8xbf16>
      %13 = vector.shape_cast %12 : vector<1x16x8xbf16> to vector<16x8xbf16>
      %14 = arith.extf %13 : vector<16x8xbf16> to vector<16x8xf32>
      %cst = arith.constant 0.353553385 : f32
      %15 = vector.broadcast %cst : f32 to vector<16x8xf32>
      %16 = arith.mulf %14, %15 : vector<16x8xf32>
      %17 = arith.truncf %16 : vector<16x8xf32> to vector<16x8xbf16>
      %c0_7 = arith.constant 0 : index
      %c0_8 = arith.constant 0 : index
      %c0_9 = arith.constant 0 : index
      %18 = vector.load %arg4[%c0_7, %c0_8, %c0_9] : memref<1x16x8xbf16, #tpu.memory_space<vmem>>, vector<1x16x8xbf16>
      %19 = vector.shape_cast %18 : vector<1x16x8xbf16> to vector<16x8xbf16>
      %c0_10 = arith.constant 0 : index
      %c0_11 = arith.constant 0 : index
      %c0_12 = arith.constant 0 : index
      %20 = vector.load %arg5[%c0_10, %c0_11, %c0_12] : memref<1x16x8xbf16, #tpu.memory_space<vmem>>, vector<1x16x8xbf16>
      %21 = vector.shape_cast %20 : vector<1x16x8xbf16> to vector<16x8xbf16>
      %cst_13 = arith.constant dense<0.000000e+00> : vector<16x16xf32>
      %22 = tpu.matmul %17, %19, %cst_13 {dimension_numbers = #tpu.dot_dimension_numbers<[1], [1], [0], [0], [0, 0, 1, 0], [], []>} : vector<16x8xbf16>, vector<16x8xbf16>, vector<16x16xf32> -> vector<16x16xf32>
      %23 = tpu.iota {dimensions = array<i32: 0>} : vector<16x16xi32>
      %24 = tpu.iota {dimensions = array<i32: 1>} : vector<16x16xi32>
      %25 = arith.cmpi sle, %24, %23 : vector<16x16xi32>
      %cst_14 = arith.constant -1.000000e+30 : f32
      %26 = vector.broadcast %cst_14 : f32 to vector<16x16xf32>
      %27 = arith.select %25, %22, %26 : vector<16x16xi1>, vector<16x16xf32>
      %c0_15 = arith.constant 0 : index
      %c0_16 = arith.constant 0 : index
      %28 = vector.load %arg7[%c0_15, %c0_16] : memref<16x1xf32, #tpu.memory_space<vmem>>, vector<16x1xf32>
      %cst_17 = arith.constant dense<0xFF800000> : vector<16xf32>
      %29 = vector.multi_reduction <maximumf>, %27, %cst_17 [1] : vector<16x16xf32> to vector<16xf32>
      %30 = vector.shape_cast %29 : vector<16xf32> to vector<16x1xf32>
      %31 = arith.maximumf %28, %30 : vector<16x1xf32>
      %32 = arith.subf %28, %31 : vector<16x1xf32>
      %33 = math.exp %32 : vector<16x1xf32>
      %34 = vector.broadcast %31 : vector<16x1xf32> to vector<16x16xf32>
      %35 = arith.subf %27, %34 : vector<16x16xf32>
      %36 = math.exp %35 : vector<16x16xf32>
      %c0_18 = arith.constant 0 : index
      %c0_19 = arith.constant 0 : index
      %37 = vector.load %arg8[%c0_18, %c0_19] : memref<16x1xf32, #tpu.memory_space<vmem>>, vector<16x1xf32>
      %38 = arith.mulf %33, %37 : vector<16x1xf32>
      %cst_20 = arith.constant dense<0.000000e+00> : vector<16xf32>
      %39 = vector.multi_reduction <add>, %36, %cst_20 [1] : vector<16x16xf32> to vector<16xf32>
      %40 = vector.shape_cast %39 : vector<16xf32> to vector<16x1xf32>
      %41 = arith.addf %38, %40 : vector<16x1xf32>
      %c0_21 = arith.constant 0 : index
      %c0_22 = arith.constant 0 : index
      %42 = vector.load %arg8[%c0_21, %c0_22] : memref<16x1xf32, #tpu.memory_space<vmem>>, vector<16x1xf32>
      tpu.vector_store %arg8[%c0_21, %c0_22], %41 {strides = array<i32>} : memref<16x1xf32, #tpu.memory_space<vmem>>, vector<16x1xf32>,
      %c0_23 = arith.constant 0 : index
      %c0_24 = arith.constant 0 : index
      %43 = vector.load %arg9[%c0_23, %c0_24] : memref<16x8xf32, #tpu.memory_space<vmem>>, vector<16x8xf32>
      %44 = vector.broadcast %33 : vector<16x1xf32> to vector<16x8xf32>
      %45 = arith.mulf %44, %43 : vector<16x8xf32>
      %46 = arith.truncf %36 : vector<16x16xf32> to vector<16x16xbf16>
      %cst_25 = arith.constant dense<0.000000e+00> : vector<16x8xf32>
      %47 = tpu.matmul %46, %21, %cst_25 {dimension_numbers = #tpu.dot_dimension_numbers<[1], [0], [0], [1], [0, 0, 1, 1], [], []>} : vector<16x16xbf16>, vector<16x8xbf16>, vector<16x8xf32> -> vector<16x8xf32>
      %48 = arith.addf %45, %47 : vector<16x8xf32>
      %c0_26 = arith.constant 0 : index
      %c0_27 = arith.constant 0 : index
      %49 = vector.load %arg9[%c0_26, %c0_27] : memref<16x8xf32, #tpu.memory_space<vmem>>, vector<16x8xf32>
      tpu.vector_store %arg9[%c0_26, %c0_27], %48 {strides = array<i32>} : memref<16x8xf32, #tpu.memory_space<vmem>>, vector<16x8xf32>,
      %c0_28 = arith.constant 0 : index
      %c0_29 = arith.constant 0 : index
      %50 = vector.load %arg7[%c0_28, %c0_29] : memref<16x1xf32, #tpu.memory_space<vmem>>, vector<16x1xf32>
      tpu.vector_store %arg7[%c0_28, %c0_29], %31 {strides = array<i32>} : memref<16x1xf32, #tpu.memory_space<vmem>>, vector<16x1xf32>,
    } else {
    }
    %c0_i32_3 = arith.constant 0 : i32
    %9 = arith.cmpi eq, %arg2, %c0_i32_3 : i32
    %10 = arith.extui %9 : i1 to i32
    %c0_i32_4 = arith.constant 0 : i32
    %11 = arith.cmpi ne, %10, %c0_i32_4 : i32
    scf.if %11 {
      %c0 = arith.constant 0 : index
      %c0_5 = arith.constant 0 : index
      %12 = vector.load %arg8[%c0, %c0_5] : memref<16x1xf32, #tpu.memory_space<vmem>>, vector<16x1xf32>
      %13 = tpu.reciprocal %12 {approx = true} : vector<16x1xf32> -> vector<16x1xf32>
      %c0_6 = arith.constant 0 : index
      %c0_7 = arith.constant 0 : index
      %14 = vector.load %arg9[%c0_6, %c0_7] : memref<16x8xf32, #tpu.memory_space<vmem>>, vector<16x8xf32>
      %15 = vector.broadcast %13 : vector<16x1xf32> to vector<16x8xf32>
      %16 = arith.mulf %14, %15 : vector<16x8xf32>
      %17 = arith.truncf %16 : vector<16x8xf32> to vector<16x8xbf16>
      %c0_8 = arith.constant 0 : index
      %c0_9 = arith.constant 0 : index
      %c0_10 = arith.constant 0 : index
      %18 = vector.load %arg6[%c0_8, %c0_9, %c0_10] : memref<1x16x8xbf16, #tpu.memory_space<vmem>>, vector<1x16x8xbf16>
      %19 = vector.shape_cast %18 : vector<1x16x8xbf16> to vector<16x8xbf16>
      %20 = vector.shape_cast %17 : vector<16x8xbf16> to vector<1x16x8xbf16>
      tpu.vector_store %arg6[%c0_8, %c0_9, %c0_10], %20 {strides = array<i32>} : memref<1x16x8xbf16, #tpu.memory_space<vmem>>, vector<1x16x8xbf16>,
    } else {
    }
    return
  }
  func.func @transform_0(%arg0: i32, %arg1: i32, %arg2: i32) -> (i32, i32, i32) {
    %c0_i32 = arith.constant 0 : i32
    %c0_i32_0 = arith.constant 0 : i32
    return %arg0, %arg1, %c0_i32 : i32, i32, i32
  }
  func.func @transform_1(%arg0: i32, %arg1: i32, %arg2: i32) -> (i32, i32, i32) {
    %0 = arith.minsi %arg2, %arg1 : i32
    %c0_i32 = arith.constant 0 : i32
    %c0_i32_0 = arith.constant 0 : i32
    return %arg0, %0, %c0_i32 : i32, i32, i32
  }
  func.func @transform_2(%arg0: i32, %arg1: i32, %arg2: i32) -> (i32, i32, i32) {
    %0 = arith.minsi %arg2, %arg1 : i32
    %c0_i32 = arith.constant 0 : i32
    %c0_i32_0 = arith.constant 0 : i32
    return %arg0, %0, %c0_i32 : i32, i32, i32
  }
  func.func @transform_3(%arg0: i32, %arg1: i32, %arg2: i32) -> (i32, i32, i32) {
    %c0_i32 = arith.constant 0 : i32
    %c0_i32_0 = arith.constant 0 : i32
    return %arg0, %arg1, %c0_i32 : i32, i32, i32
  }
}

module attributes {stable_mosaic.version = 11 : i64} {
  func.func @_matmul_bias_res_kernel(%arg0: i32, %arg1: i32, %arg2: memref<16x32xbf16, #tpu.memory_space<vmem>>, %arg3: memref<32x32xbf16, #tpu.memory_space<vmem>>, %arg4: memref<1x32xf32, #tpu.memory_space<vmem>>, %arg5: memref<16x32xbf16, #tpu.memory_space<vmem>>, %arg6: memref<16x32xbf16, #tpu.memory_space<vmem>>) attributes {dimension_semantics = [#tpu.dimension_semantics<parallel>, #tpu.dimension_semantics<parallel>], iteration_bounds = array<i64: 2, 1>, scalar_prefetch = 0 : i64, scratch_operands = 0 : i64, tpu.core_type = #tpu.core_type<tc>, window_params = [{transform_indices = @transform_0, window_bounds = array<i64: 16, 32>}, {transform_indices = @transform_1, window_bounds = array<i64: 32, 32>}, {transform_indices = @transform_2, window_bounds = array<i64: 1, 32>}, {transform_indices = @transform_3, window_bounds = array<i64: 16, 32>}, {transform_indices = @transform_4, window_bounds = array<i64: 16, 32>}]} {
    %c0 = arith.constant 0 : index
    %c0_0 = arith.constant 0 : index
    %0 = vector.load %arg2[%c0, %c0_0] : memref<16x32xbf16, #tpu.memory_space<vmem>>, vector<16x32xbf16>
    %c0_1 = arith.constant 0 : index
    %c0_2 = arith.constant 0 : index
    %1 = vector.load %arg3[%c0_1, %c0_2] : memref<32x32xbf16, #tpu.memory_space<vmem>>, vector<32x32xbf16>
    %cst = arith.constant dense<0.000000e+00> : vector<16x32xf32>
    %2 = tpu.matmul %0, %1, %cst {dimension_numbers = #tpu.dot_dimension_numbers<[1], [0], [0], [1], [0, 0, 1, 1], [], []>} : vector<16x32xbf16>, vector<32x32xbf16>, vector<16x32xf32> -> vector<16x32xf32>
    %c0_3 = arith.constant 0 : index
    %c0_4 = arith.constant 0 : index
    %3 = vector.load %arg5[%c0_3, %c0_4] : memref<16x32xbf16, #tpu.memory_space<vmem>>, vector<16x32xbf16>
    %4 = arith.extf %3 : vector<16x32xbf16> to vector<16x32xf32>
    %5 = arith.addf %4, %2 : vector<16x32xf32>
    %c0_5 = arith.constant 0 : index
    %c0_6 = arith.constant 0 : index
    %6 = vector.load %arg4[%c0_5, %c0_6] : memref<1x32xf32, #tpu.memory_space<vmem>>, vector<1x32xf32>
    %7 = vector.broadcast %6 : vector<1x32xf32> to vector<16x32xf32>
    %8 = arith.addf %5, %7 : vector<16x32xf32>
    %9 = arith.truncf %8 : vector<16x32xf32> to vector<16x32xbf16>
    %c0_7 = arith.constant 0 : index
    %c0_8 = arith.constant 0 : index
    %10 = vector.load %arg6[%c0_7, %c0_8] : memref<16x32xbf16, #tpu.memory_space<vmem>>, vector<16x32xbf16>
    tpu.vector_store %arg6[%c0_7, %c0_8], %9 {strides = array<i32>} : memref<16x32xbf16, #tpu.memory_space<vmem>>, vector<16x32xbf16>,
    return
  }
  func.func @transform_0(%arg0: i32, %arg1: i32) -> (i32, i32) {
    %c0_i32 = arith.constant 0 : i32
    %c0_i32_0 = arith.constant 0 : i32
    return %arg0, %c0_i32 : i32, i32
  }
  func.func @transform_1(%arg0: i32, %arg1: i32) -> (i32, i32) {
    %c0_i32 = arith.constant 0 : i32
    %c0_i32_0 = arith.constant 0 : i32
    return %c0_i32, %arg1 : i32, i32
  }
  func.func @transform_2(%arg0: i32, %arg1: i32) -> (i32, i32) {
    %c0_i32 = arith.constant 0 : i32
    %c0_i32_0 = arith.constant 0 : i32
    return %c0_i32, %arg1 : i32, i32
  }
  func.func @transform_3(%arg0: i32, %arg1: i32) -> (i32, i32) {
    %c0_i32 = arith.constant 0 : i32
    return %arg0, %arg1 : i32, i32
  }
  func.func @transform_4(%arg0: i32, %arg1: i32) -> (i32, i32) {
    %c0_i32 = arith.constant 0 : i32
    return %arg0, %arg1 : i32, i32
  }
}

module attributes {stable_mosaic.version = 11 : i64} {
  func.func @_ln_matmul_kernel(%arg0: i32, %arg1: i32, %arg2: memref<16x32xbf16, #tpu.memory_space<vmem>>, %arg3: memref<1x32xf32, #tpu.memory_space<vmem>>, %arg4: memref<1x32xf32, #tpu.memory_space<vmem>>, %arg5: memref<32x128xbf16, #tpu.memory_space<vmem>>, %arg6: memref<1x128xf32, #tpu.memory_space<vmem>>, %arg7: memref<16x128xbf16, #tpu.memory_space<vmem>>, %arg8: memref<16x32xbf16, #tpu.memory_space<vmem>>) attributes {dimension_semantics = [#tpu.dimension_semantics<parallel>, #tpu.dimension_semantics<arbitrary>], iteration_bounds = array<i64: 2, 1>, scalar_prefetch = 0 : i64, scratch_operands = 1 : i64, tpu.core_type = #tpu.core_type<tc>, window_params = [{transform_indices = @transform_0, window_bounds = array<i64: 16, 32>}, {pipeline_mode = #tpu.pipeline_mode<synchronous>, transform_indices = @transform_1, window_bounds = array<i64: 1, 32>}, {pipeline_mode = #tpu.pipeline_mode<synchronous>, transform_indices = @transform_2, window_bounds = array<i64: 1, 32>}, {transform_indices = @transform_3, window_bounds = array<i64: 32, 128>}, {transform_indices = @transform_4, window_bounds = array<i64: 1, 128>}, {transform_indices = @transform_5, window_bounds = array<i64: 16, 128>}]} {
    %c0_i32 = arith.constant 0 : i32
    %0 = arith.cmpi eq, %arg1, %c0_i32 : i32
    %1 = arith.extui %0 : i1 to i32
    %c0_i32_0 = arith.constant 0 : i32
    %2 = arith.cmpi ne, %1, %c0_i32_0 : i32
    scf.if %2 {
      %c0_11 = arith.constant 0 : index
      %c0_12 = arith.constant 0 : index
      %19 = vector.load %arg2[%c0_11, %c0_12] : memref<16x32xbf16, #tpu.memory_space<vmem>>, vector<16x32xbf16>
      %20 = arith.extf %19 : vector<16x32xbf16> to vector<16x32xf32>
      %cst_13 = arith.constant dense<0.000000e+00> : vector<16xf32>
      %21 = vector.multi_reduction <add>, %20, %cst_13 [1] : vector<16x32xf32> to vector<16xf32>
      %22 = vector.shape_cast %21 : vector<16xf32> to vector<16x1xf32>
      %cst_14 = arith.constant 3.200000e+01 : f32
      %23 = vector.broadcast %cst_14 : f32 to vector<16x1xf32>
      %24 = arith.divf %22, %23 : vector<16x1xf32>
      %25 = vector.broadcast %24 : vector<16x1xf32> to vector<16x32xf32>
      %26 = arith.subf %20, %25 : vector<16x32xf32>
      %27 = arith.mulf %26, %26 : vector<16x32xf32>
      %cst_15 = arith.constant dense<0.000000e+00> : vector<16xf32>
      %28 = vector.multi_reduction <add>, %27, %cst_15 [1] : vector<16x32xf32> to vector<16xf32>
      %29 = vector.shape_cast %28 : vector<16xf32> to vector<16x1xf32>
      %cst_16 = arith.constant 3.200000e+01 : f32
      %30 = vector.broadcast %cst_16 : f32 to vector<16x1xf32>
      %31 = arith.divf %29, %30 : vector<16x1xf32>
      %32 = vector.broadcast %24 : vector<16x1xf32> to vector<16x32xf32>
      %33 = arith.subf %20, %32 : vector<16x32xf32>
      %cst_17 = arith.constant 9.99999974E-6 : f32
      %34 = vector.broadcast %cst_17 : f32 to vector<16x1xf32>
      %35 = arith.addf %31, %34 : vector<16x1xf32>
      %36 = math.rsqrt %35 : vector<16x1xf32>
      %37 = vector.broadcast %36 : vector<16x1xf32> to vector<16x32xf32>
      %38 = arith.mulf %33, %37 : vector<16x32xf32>
      %c0_18 = arith.constant 0 : index
      %c0_19 = arith.constant 0 : index
      %39 = vector.load %arg3[%c0_18, %c0_19] : memref<1x32xf32, #tpu.memory_space<vmem>>, vector<1x32xf32>
      %40 = vector.broadcast %39 : vector<1x32xf32> to vector<16x32xf32>
      %41 = arith.mulf %38, %40 : vector<16x32xf32>
      %c0_20 = arith.constant 0 : index
      %c0_21 = arith.constant 0 : index
      %42 = vector.load %arg4[%c0_20, %c0_21] : memref<1x32xf32, #tpu.memory_space<vmem>>, vector<1x32xf32>
      %43 = vector.broadcast %42 : vector<1x32xf32> to vector<16x32xf32>
      %44 = arith.addf %41, %43 : vector<16x32xf32>
      %45 = arith.truncf %44 : vector<16x32xf32> to vector<16x32xbf16>
      %c0_22 = arith.constant 0 : index
      %c0_23 = arith.constant 0 : index
      %46 = vector.load %arg8[%c0_22, %c0_23] : memref<16x32xbf16, #tpu.memory_space<vmem>>, vector<16x32xbf16>
      tpu.vector_store %arg8[%c0_22, %c0_23], %45 {strides = array<i32>} : memref<16x32xbf16, #tpu.memory_space<vmem>>, vector<16x32xbf16>,
    } else {
    }
    %c0 = arith.constant 0 : index
    %c0_1 = arith.constant 0 : index
    %3 = vector.load %arg8[%c0, %c0_1] : memref<16x32xbf16, #tpu.memory_space<vmem>>, vector<16x32xbf16>
    %c0_2 = arith.constant 0 : index
    %c0_3 = arith.constant 0 : index
    %4 = vector.load %arg5[%c0_2, %c0_3] : memref<32x128xbf16, #tpu.memory_space<vmem>>, vector<32x128xbf16>
    %cst = arith.constant dense<0.000000e+00> : vector<16x128xf32>
    %5 = tpu.matmul %3, %4, %cst {dimension_numbers = #tpu.dot_dimension_numbers<[1], [0], [0], [1], [0, 0, 1, 1], [], []>} : vector<16x32xbf16>, vector<32x128xbf16>, vector<16x128xf32> -> vector<16x128xf32>
    %c0_4 = arith.constant 0 : index
    %c0_5 = arith.constant 0 : index
    %6 = vector.load %arg6[%c0_4, %c0_5] : memref<1x128xf32, #tpu.memory_space<vmem>>, vector<1x128xf32>
    %7 = vector.broadcast %6 : vector<1x128xf32> to vector<16x128xf32>
    %8 = arith.addf %5, %7 : vector<16x128xf32>
    %cst_6 = arith.constant 5.000000e-01 : f32
    %9 = vector.broadcast %cst_6 : f32 to vector<16x128xf32>
    %10 = arith.mulf %9, %8 : vector<16x128xf32>
    %cst_7 = arith.constant 0.707106769 : f32
    %11 = vector.broadcast %cst_7 : f32 to vector<16x128xf32>
    %12 = arith.mulf %8, %11 : vector<16x128xf32>
    %13 = math.erf %12 : vector<16x128xf32>
    %cst_8 = arith.constant 1.000000e+00 : f32
    %14 = vector.broadcast %cst_8 : f32 to vector<16x128xf32>
    %15 = arith.addf %14, %13 : vector<16x128xf32>
    %16 = arith.mulf %10, %15 : vector<16x128xf32>
    %17 = arith.truncf %16 : vector<16x128xf32> to vector<16x128xbf16>
    %c0_9 = arith.constant 0 : index
    %c0_10 = arith.constant 0 : index
    %18 = vector.load %arg7[%c0_9, %c0_10] : memref<16x128xbf16, #tpu.memory_space<vmem>>, vector<16x128xbf16>
    tpu.vector_store %arg7[%c0_9, %c0_10], %17 {strides = array<i32>} : memref<16x128xbf16, #tpu.memory_space<vmem>>, vector<16x128xbf16>,
    return
  }
  func.func @transform_0(%arg0: i32, %arg1: i32) -> (i32, i32) {
    %c0_i32 = arith.constant 0 : i32
    %c0_i32_0 = arith.constant 0 : i32
    return %arg0, %c0_i32 : i32, i32
  }
  func.func @transform_1(%arg0: i32, %arg1: i32) -> (i32, i32) {
    %c0_i32 = arith.constant 0 : i32
    %c0_i32_0 = arith.constant 0 : i32
    %c0_i32_1 = arith.constant 0 : i32
    return %c0_i32, %c0_i32_0 : i32, i32
  }
  func.func @transform_2(%arg0: i32, %arg1: i32) -> (i32, i32) {
    %c0_i32 = arith.constant 0 : i32
    %c0_i32_0 = arith.constant 0 : i32
    %c0_i32_1 = arith.constant 0 : i32
    return %c0_i32, %c0_i32_0 : i32, i32
  }
  func.func @transform_3(%arg0: i32, %arg1: i32) -> (i32, i32) {
    %c0_i32 = arith.constant 0 : i32
    %c0_i32_0 = arith.constant 0 : i32
    return %c0_i32, %arg1 : i32, i32
  }
  func.func @transform_4(%arg0: i32, %arg1: i32) -> (i32, i32) {
    %c0_i32 = arith.constant 0 : i32
    %c0_i32_0 = arith.constant 0 : i32
    return %c0_i32, %arg1 : i32, i32
  }
  func.func @transform_5(%arg0: i32, %arg1: i32) -> (i32, i32) {
    %c0_i32 = arith.constant 0 : i32
    return %arg0, %arg1 : i32, i32
  }
}

module attributes {stable_mosaic.version = 11 : i64} {
  func.func @_matmul_bias_res_kernel(%arg0: i32, %arg1: i32, %arg2: memref<16x128xbf16, #tpu.memory_space<vmem>>, %arg3: memref<128x32xbf16, #tpu.memory_space<vmem>>, %arg4: memref<1x32xf32, #tpu.memory_space<vmem>>, %arg5: memref<16x32xbf16, #tpu.memory_space<vmem>>, %arg6: memref<16x32xbf16, #tpu.memory_space<vmem>>) attributes {dimension_semantics = [#tpu.dimension_semantics<parallel>, #tpu.dimension_semantics<parallel>], iteration_bounds = array<i64: 2, 1>, scalar_prefetch = 0 : i64, scratch_operands = 0 : i64, tpu.core_type = #tpu.core_type<tc>, window_params = [{transform_indices = @transform_0, window_bounds = array<i64: 16, 128>}, {transform_indices = @transform_1, window_bounds = array<i64: 128, 32>}, {transform_indices = @transform_2, window_bounds = array<i64: 1, 32>}, {transform_indices = @transform_3, window_bounds = array<i64: 16, 32>}, {transform_indices = @transform_4, window_bounds = array<i64: 16, 32>}]} {
    %c0 = arith.constant 0 : index
    %c0_0 = arith.constant 0 : index
    %0 = vector.load %arg2[%c0, %c0_0] : memref<16x128xbf16, #tpu.memory_space<vmem>>, vector<16x128xbf16>
    %c0_1 = arith.constant 0 : index
    %c0_2 = arith.constant 0 : index
    %1 = vector.load %arg3[%c0_1, %c0_2] : memref<128x32xbf16, #tpu.memory_space<vmem>>, vector<128x32xbf16>
    %cst = arith.constant dense<0.000000e+00> : vector<16x32xf32>
    %2 = tpu.matmul %0, %1, %cst {dimension_numbers = #tpu.dot_dimension_numbers<[1], [0], [0], [1], [0, 0, 1, 1], [], []>} : vector<16x128xbf16>, vector<128x32xbf16>, vector<16x32xf32> -> vector<16x32xf32>
    %c0_3 = arith.constant 0 : index
    %c0_4 = arith.constant 0 : index
    %3 = vector.load %arg5[%c0_3, %c0_4] : memref<16x32xbf16, #tpu.memory_space<vmem>>, vector<16x32xbf16>
    %4 = arith.extf %3 : vector<16x32xbf16> to vector<16x32xf32>
    %5 = arith.addf %4, %2 : vector<16x32xf32>
    %c0_5 = arith.constant 0 : index
    %c0_6 = arith.constant 0 : index
    %6 = vector.load %arg4[%c0_5, %c0_6] : memref<1x32xf32, #tpu.memory_space<vmem>>, vector<1x32xf32>
    %7 = vector.broadcast %6 : vector<1x32xf32> to vector<16x32xf32>
    %8 = arith.addf %5, %7 : vector<16x32xf32>
    %9 = arith.truncf %8 : vector<16x32xf32> to vector<16x32xbf16>
    %c0_7 = arith.constant 0 : index
    %c0_8 = arith.constant 0 : index
    %10 = vector.load %arg6[%c0_7, %c0_8] : memref<16x32xbf16, #tpu.memory_space<vmem>>, vector<16x32xbf16>
    tpu.vector_store %arg6[%c0_7, %c0_8], %9 {strides = array<i32>} : memref<16x32xbf16, #tpu.memory_space<vmem>>, vector<16x32xbf16>,
    return
  }
  func.func @transform_0(%arg0: i32, %arg1: i32) -> (i32, i32) {
    %c0_i32 = arith.constant 0 : i32
    %c0_i32_0 = arith.constant 0 : i32
    return %arg0, %c0_i32 : i32, i32
  }
  func.func @transform_1(%arg0: i32, %arg1: i32) -> (i32, i32) {
    %c0_i32 = arith.constant 0 : i32
    %c0_i32_0 = arith.constant 0 : i32
    return %c0_i32, %arg1 : i32, i32
  }
  func.func @transform_2(%arg0: i32, %arg1: i32) -> (i32, i32) {
    %c0_i32 = arith.constant 0 : i32
    %c0_i32_0 = arith.constant 0 : i32
    return %c0_i32, %arg1 : i32, i32
  }
  func.func @transform_3(%arg0: i32, %arg1: i32) -> (i32, i32) {
    %c0_i32 = arith.constant 0 : i32
    return %arg0, %arg1 : i32, i32
  }
  func.func @transform_4(%arg0: i32, %arg1: i32) -> (i32, i32) {
    %c0_i32 = arith.constant 0 : i32
    return %arg0, %arg1 : i32, i32
  }
}

module attributes {stable_mosaic.version = 11 : i64} {
  func.func @_ln_matmul_kernel(%arg0: i32, %arg1: i32, %arg2: memref<16x32xbf16, #tpu.memory_space<vmem>>, %arg3: memref<1x32xf32, #tpu.memory_space<vmem>>, %arg4: memref<1x32xf32, #tpu.memory_space<vmem>>, %arg5: memref<32x64xbf16, #tpu.memory_space<vmem>>, %arg6: memref<1x64xf32, #tpu.memory_space<vmem>>, %arg7: memref<16x64xf32, #tpu.memory_space<vmem>>, %arg8: memref<16x32xbf16, #tpu.memory_space<vmem>>) attributes {dimension_semantics = [#tpu.dimension_semantics<parallel>, #tpu.dimension_semantics<arbitrary>], iteration_bounds = array<i64: 1, 1>, scalar_prefetch = 0 : i64, scratch_operands = 1 : i64, tpu.core_type = #tpu.core_type<tc>, window_params = [{transform_indices = @transform_0, window_bounds = array<i64: 16, 32>}, {pipeline_mode = #tpu.pipeline_mode<synchronous>, transform_indices = @transform_1, window_bounds = array<i64: 1, 32>}, {pipeline_mode = #tpu.pipeline_mode<synchronous>, transform_indices = @transform_2, window_bounds = array<i64: 1, 32>}, {transform_indices = @transform_3, window_bounds = array<i64: 32, 64>}, {transform_indices = @transform_4, window_bounds = array<i64: 1, 64>}, {transform_indices = @transform_5, window_bounds = array<i64: 16, 64>}]} {
    %c0_i32 = arith.constant 0 : i32
    %0 = arith.cmpi eq, %arg1, %c0_i32 : i32
    %1 = arith.extui %0 : i1 to i32
    %c0_i32_0 = arith.constant 0 : i32
    %2 = arith.cmpi ne, %1, %c0_i32_0 : i32
    scf.if %2 {
      %c0_8 = arith.constant 0 : index
      %c0_9 = arith.constant 0 : index
      %10 = vector.load %arg2[%c0_8, %c0_9] : memref<16x32xbf16, #tpu.memory_space<vmem>>, vector<16x32xbf16>
      %11 = arith.extf %10 : vector<16x32xbf16> to vector<16x32xf32>
      %cst_10 = arith.constant dense<0.000000e+00> : vector<16xf32>
      %12 = vector.multi_reduction <add>, %11, %cst_10 [1] : vector<16x32xf32> to vector<16xf32>
      %13 = vector.shape_cast %12 : vector<16xf32> to vector<16x1xf32>
      %cst_11 = arith.constant 3.200000e+01 : f32
      %14 = vector.broadcast %cst_11 : f32 to vector<16x1xf32>
      %15 = arith.divf %13, %14 : vector<16x1xf32>
      %16 = vector.broadcast %15 : vector<16x1xf32> to vector<16x32xf32>
      %17 = arith.subf %11, %16 : vector<16x32xf32>
      %18 = arith.mulf %17, %17 : vector<16x32xf32>
      %cst_12 = arith.constant dense<0.000000e+00> : vector<16xf32>
      %19 = vector.multi_reduction <add>, %18, %cst_12 [1] : vector<16x32xf32> to vector<16xf32>
      %20 = vector.shape_cast %19 : vector<16xf32> to vector<16x1xf32>
      %cst_13 = arith.constant 3.200000e+01 : f32
      %21 = vector.broadcast %cst_13 : f32 to vector<16x1xf32>
      %22 = arith.divf %20, %21 : vector<16x1xf32>
      %23 = vector.broadcast %15 : vector<16x1xf32> to vector<16x32xf32>
      %24 = arith.subf %11, %23 : vector<16x32xf32>
      %cst_14 = arith.constant 9.99999974E-6 : f32
      %25 = vector.broadcast %cst_14 : f32 to vector<16x1xf32>
      %26 = arith.addf %22, %25 : vector<16x1xf32>
      %27 = math.rsqrt %26 : vector<16x1xf32>
      %28 = vector.broadcast %27 : vector<16x1xf32> to vector<16x32xf32>
      %29 = arith.mulf %24, %28 : vector<16x32xf32>
      %c0_15 = arith.constant 0 : index
      %c0_16 = arith.constant 0 : index
      %30 = vector.load %arg3[%c0_15, %c0_16] : memref<1x32xf32, #tpu.memory_space<vmem>>, vector<1x32xf32>
      %31 = vector.broadcast %30 : vector<1x32xf32> to vector<16x32xf32>
      %32 = arith.mulf %29, %31 : vector<16x32xf32>
      %c0_17 = arith.constant 0 : index
      %c0_18 = arith.constant 0 : index
      %33 = vector.load %arg4[%c0_17, %c0_18] : memref<1x32xf32, #tpu.memory_space<vmem>>, vector<1x32xf32>
      %34 = vector.broadcast %33 : vector<1x32xf32> to vector<16x32xf32>
      %35 = arith.addf %32, %34 : vector<16x32xf32>
      %36 = arith.truncf %35 : vector<16x32xf32> to vector<16x32xbf16>
      %c0_19 = arith.constant 0 : index
      %c0_20 = arith.constant 0 : index
      %37 = vector.load %arg8[%c0_19, %c0_20] : memref<16x32xbf16, #tpu.memory_space<vmem>>, vector<16x32xbf16>
      tpu.vector_store %arg8[%c0_19, %c0_20], %36 {strides = array<i32>} : memref<16x32xbf16, #tpu.memory_space<vmem>>, vector<16x32xbf16>,
    } else {
    }
    %c0 = arith.constant 0 : index
    %c0_1 = arith.constant 0 : index
    %3 = vector.load %arg8[%c0, %c0_1] : memref<16x32xbf16, #tpu.memory_space<vmem>>, vector<16x32xbf16>
    %c0_2 = arith.constant 0 : index
    %c0_3 = arith.constant 0 : index
    %4 = vector.load %arg5[%c0_2, %c0_3] : memref<32x64xbf16, #tpu.memory_space<vmem>>, vector<32x64xbf16>
    %cst = arith.constant dense<0.000000e+00> : vector<16x64xf32>
    %5 = tpu.matmul %3, %4, %cst {dimension_numbers = #tpu.dot_dimension_numbers<[1], [0], [0], [1], [0, 0, 1, 1], [], []>} : vector<16x32xbf16>, vector<32x64xbf16>, vector<16x64xf32> -> vector<16x64xf32>
    %c0_4 = arith.constant 0 : index
    %c0_5 = arith.constant 0 : index
    %6 = vector.load %arg6[%c0_4, %c0_5] : memref<1x64xf32, #tpu.memory_space<vmem>>, vector<1x64xf32>
    %7 = vector.broadcast %6 : vector<1x64xf32> to vector<16x64xf32>
    %8 = arith.addf %5, %7 : vector<16x64xf32>
    %c0_6 = arith.constant 0 : index
    %c0_7 = arith.constant 0 : index
    %9 = vector.load %arg7[%c0_6, %c0_7] : memref<16x64xf32, #tpu.memory_space<vmem>>, vector<16x64xf32>
    tpu.vector_store %arg7[%c0_6, %c0_7], %8 {strides = array<i32>} : memref<16x64xf32, #tpu.memory_space<vmem>>, vector<16x64xf32>,
    return
  }
  func.func @transform_0(%arg0: i32, %arg1: i32) -> (i32, i32) {
    %c0_i32 = arith.constant 0 : i32
    %c0_i32_0 = arith.constant 0 : i32
    return %arg0, %c0_i32 : i32, i32
  }
  func.func @transform_1(%arg0: i32, %arg1: i32) -> (i32, i32) {
    %c0_i32 = arith.constant 0 : i32
    %c0_i32_0 = arith.constant 0 : i32
    %c0_i32_1 = arith.constant 0 : i32
    return %c0_i32, %c0_i32_0 : i32, i32
  }
  func.func @transform_2(%arg0: i32, %arg1: i32) -> (i32, i32) {
    %c0_i32 = arith.constant 0 : i32
    %c0_i32_0 = arith.constant 0 : i32
    %c0_i32_1 = arith.constant 0 : i32
    return %c0_i32, %c0_i32_0 : i32, i32
  }
  func.func @transform_3(%arg0: i32, %arg1: i32) -> (i32, i32) {
    %c0_i32 = arith.constant 0 : i32
    %c0_i32_0 = arith.constant 0 : i32
    return %c0_i32, %arg1 : i32, i32
  }
  func.func @transform_4(%arg0: i32, %arg1: i32) -> (i32, i32) {
    %c0_i32 = arith.constant 0 : i32
    %c0_i32_0 = arith.constant 0 : i32
    return %c0_i32, %arg1 : i32, i32
  }
  func.func @transform_5(%arg0: i32, %arg1: i32) -> (i32, i32) {
    %c0_i32 = arith.constant 0 : i32
    return %arg0, %arg1 : i32, i32
  }
}

</mosaic_0001>

<llo_original>
// kernel: _lambda_.11
$region0: #{_lambda_.11}
  #allocation0 [shape = 'u32[]', space=smem, size = 0x4, offset = 0x4, fixed_abs, tag = 'smem constant byte address 0x4 - core index']
  #allocation1 [shape = 'u32[144,128]{1,0:T(1,128)}', space=vmem, size = 0x12000, scoped, tag = 'internal scratch']
  #allocation2 [shape = 'bf16[16,32]{1,0:T(16,128)(2,1)}', space=vmem, size = 0x1000, scoped, tag = 'scratch operand']
  %s0 = inlined_call_operand.vmem [shape: bf16[32,32], index: 0, kind: input, shape index: {}]
  %s1 = inlined_call_operand.vmem [shape: f32[1,32], index: 1, kind: input, shape index: {}]
  %s2 = inlined_call_operand.vmem [shape: f32[1,32], index: 2, kind: input, shape index: {}]
  %s3 = inlined_call_operand.vmem [shape: bf16[32,96], index: 3, kind: input, shape index: {}]
  %s4 = inlined_call_operand.vmem [shape: f32[1,96], index: 4, kind: input, shape index: {}]
  %s5 = inlined_call_operand.vmem [shape: bf16[32,96], index: 5, kind: output, shape index: {}]
  %s6 = sld [smem:[#allocation0]]
  $region57: #{_lambda_.11} parent=0
    _
  %s8 = ssub.s32 1, %s6
  %s9 = scalar_select 0, %s8, %s6
  loop: start=0, step=1, limit=4
  $region2: #{_lambda_.11} parent=0 // loop_pre_header
    _
  $region3: #{_lambda_.11} parent=0 // loop_header
    %s11 = sphi 0, %s15
    %p12 = scmp.ge.s32.totalorder %s11, 4
    %s18 = sphi 0, %s30
    %s19 = sphi 0, %s26
    %s20 = sphi 0, %s18
    %s21 = sphi 0, %s19
    %s22 = sphi 0, %s20
    %s23 = sphi 0, %s21
    %s33 = sphi 0, %s35
    %s36 = sphi 0, %s33
    %s37 = sphi 0, %s36
    %s53 = sphi 0, %s37
    %s57 = sphi 0, %s57
    %s59 = sphi 0, %s57
    %s60 = sphi 0, %s59
    %s74 = sphi 0, %s60
    %s78 = sphi 0, %s78
    %s80 = sphi 0, %s78
    %s81 = sphi 0, %s80
    %s95 = sphi 0, %s81
    %s101 = sphi 0, %s103
    %s104 = sphi 0, %s101
    %s105 = sphi 0, %s104
    %s121 = sphi 0, %s105
    %s127 = sphi 0, %s129
    %s130 = sphi 0, %s127
    %s131 = sphi 0, %s130
    %s147 = sphi 0, %s131
    %s155 = sphi 0, %s157
    %s158 = sphi 0, %s155
    %s159 = sphi 0, %s158
    %s175 = sphi 0, %s159
  $region4: #{_lambda_.11} parent=0 // loop_header_branch
    %14 = sbr.rel (%p12) target = $region8
  $region5: #{_lambda_.11} parent=0 // loop_body
    %s16 = ssub.s32 %s11, 1
    %s17 = ssub.s32 %s11, 2
    %s24 = sadd.s32 1, %s19
    %p25 = scmp.ge.s32.totalorder %s24, 1
    %s26 = scalar_select %p25, 0, %s24
    %s27 = sadd.s32 1, %s18
    %s28 = scalar_select %p25, %s27, %s18
    %p29 = scmp.ge.s32.totalorder %s28, 2
    %s30 = scalar_select %p29, 0, %s28
    %s31 = ssub.s32 %s18, %s30
    %p32 = scmp.eq.s32.totalorder %s31, 0
    %s34 = sadd.s32 %s33, 1
    %s35 = scalar_select %p32, %s33, %s34
    %p38 = pneg %p32
    %p39 = scmp.eq.s32.totalorder %s11, 1
    %p40 = por %p38, %p39
    %p41 = scmp.ne.s32.totalorder %s33, %s36
    %p42 = scmp.eq.s32.totalorder %s11, 0
    %p43 = por %p41, %p42
    %p44 = scmp.ne.s32.totalorder %s33, %s36
    %p45 = scmp.eq.s32.totalorder %s16, 1
    %p46 = por %p44, %p45
    %p47 = scmp.ne.s32.totalorder %s36, %s37
    %p48 = scmp.eq.s32.totalorder %s16, 0
    %p49 = por %p47, %p48
    %p50 = scmp.ne.s32.totalorder %s36, %s37
    %p51 = scmp.eq.s32.totalorder %s17, 1
    %p52 = por %p50, %p51
    %p54 = scmp.ne.s32.totalorder %s37, %s53
    %p55 = scmp.eq.s32.totalorder %s17, 0
    %p56 = por %p54, %p55
    %s58 = sadd.s32 %s57, 1
    %p61 = scmp.eq.s32.totalorder %s11, 1
    %p62 = scmp.ne.s32.totalorder %s57, %s59
    %p63 = scmp.eq.s32.totalorder %s11, 0
    %p64 = por %p62, %p63
    %p65 = scmp.ne.s32.totalorder %s57, %s59
    %p66 = scmp.eq.s32.totalorder %s16, 1
    %p67 = por %p65, %p66
    %p68 = scmp.ne.s32.totalorder %s59, %s60
    %p69 = scmp.eq.s32.totalorder %s16, 0
    %p70 = por %p68, %p69
    %p71 = scmp.ne.s32.totalorder %s59, %s60
    %p72 = scmp.eq.s32.totalorder %s17, 1
    %p73 = por %p71, %p72
    %p75 = scmp.ne.s32.totalorder %s60, %s74
    %p76 = scmp.eq.s32.totalorder %s17, 0
    %p77 = por %p75, %p76
    %s79 = sadd.s32 %s78, 1
    %p82 = scmp.eq.s32.totalorder %s11, 1
    %p83 = scmp.ne.s32.totalorder %s78, %s80
    %p84 = scmp.eq.s32.totalorder %s11, 0
    %p85 = por %p83, %p84
    %p86 = scmp.ne.s32.totalorder %s78, %s80
    %p87 = scmp.eq.s32.totalorder %s16, 1
    %p88 = por %p86, %p87
    %p89 = scmp.ne.s32.totalorder %s80, %s81
    %p90 = scmp.eq.s32.totalorder %s16, 0
    %p91 = por %p89, %p90
    %p92 = scmp.ne.s32.totalorder %s80, %s81
    %p93 = scmp.eq.s32.totalorder %s17, 1
    %p94 = por %p92, %p93
    %p96 = scmp.ne.s32.totalorder %s81, %s95
    %p97 = scmp.eq.s32.totalorder %s17, 0
    %p98 = por %p96, %p97
    %s99 = ssub.s32 %s19, %s26
    %p100 = scmp.eq.s32.totalorder %s99, 0
    %s102 = sadd.s32 %s101, 1
    %s103 = scalar_select %p100, %s101, %s102
    %p106 = pneg %p100
    %p107 = scmp.eq.s32.totalorder %s11, 1
    %p108 = por %p106, %p107
    %p109 = scmp.ne.s32.totalorder %s101, %s104
    %p110 = scmp.eq.s32.totalorder %s11, 0
    %p111 = por %p109, %p110
    %p112 = scmp.ne.s32.totalorder %s101, %s104
    %p113 = scmp.eq.s32.totalorder %s16, 1
    %p114 = por %p112, %p113
    %p115 = scmp.ne.s32.totalorder %s104, %s105
    %p116 = scmp.eq.s32.totalorder %s16, 0
    %p117 = por %p115, %p116
    %p118 = scmp.ne.s32.totalorder %s104, %s105
    %p119 = scmp.eq.s32.totalorder %s17, 1
    %p120 = por %p118, %p119
    %p122 = scmp.ne.s32.totalorder %s105, %s121
    %p123 = scmp.eq.s32.totalorder %s17, 0
    %p124 = por %p122, %p123
    %s125 = ssub.s32 %s19, %s26
    %p126 = scmp.eq.s32.totalorder %s125, 0
    %s128 = sadd.s32 %s127, 1
    %s129 = scalar_select %p126, %s127, %s128
    %p132 = pneg %p126
    %p133 = scmp.eq.s32.totalorder %s11, 1
    %p134 = por %p132, %p133
    %p135 = scmp.ne.s32.totalorder %s127, %s130
    %p136 = scmp.eq.s32.totalorder %s11, 0
    %p137 = por %p135, %p136
    %p138 = scmp.ne.s32.totalorder %s127, %s130
    %p139 = scmp.eq.s32.totalorder %s16, 1
    %p140 = por %p138, %p139
    %p141 = scmp.ne.s32.totalorder %s130, %s131
    %p142 = scmp.eq.s32.totalorder %s16, 0
    %p143 = por %p141, %p142
    %p144 = scmp.ne.s32.totalorder %s130, %s131
    %p145 = scmp.eq.s32.totalorder %s17, 1
    %p146 = por %p144, %p145
    %p148 = scmp.ne.s32.totalorder %s131, %s147
    %p149 = scmp.eq.s32.totalorder %s17, 0
    %p150 = por %p148, %p149
    %s151 = ssub.s32 %s18, %s30
    %s152 = ssub.s32 %s19, %s26
    %s153 = sor.u32 %s151, %s152
    %p154 = scmp.eq.s32.totalorder %s153, 0
    %s156 = sadd.s32 %s155, 1
    %s157 = scalar_select %p154, %s155, %s156
    %p160 = pneg %p154
    %p161 = scmp.eq.s32.totalorder %s11, 1
    %p162 = por %p160, %p161
    %p163 = scmp.ne.s32.totalorder %s155, %s158
    %p164 = scmp.eq.s32.totalorder %s11, 0
    %p165 = por %p163, %p164
    %p166 = scmp.ne.s32.totalorder %s155, %s158
    %p167 = scmp.eq.s32.totalorder %s16, 1
    %p168 = por %p166, %p167
    %p169 = scmp.ne.s32.totalorder %s158, %s159
    %p170 = scmp.eq.s32.totalorder %s16, 0
    %p171 = por %p169, %p170
    %p172 = scmp.ne.s32.totalorder %s158, %s159
    %p173 = scmp.eq.s32.totalorder %s17, 1
    %p174 = por %p172, %p173
    %p176 = scmp.ne.s32.totalorder %s159, %s175
    %p177 = scmp.eq.s32.totalorder %s17, 0
    %p178 = por %p176, %p177
    %p179 = scmp.le.s32.totalorder 1, %s11
    %p180 = scmp.lt.s32.totalorder %s11, 3
    %p181 = pnand %p179, %p180
    %p182 = pneg %p181
    // Predicated region
    $region9: #{_lambda_.11} parent=5 // pred_check
      _
    $region10: #{_lambda_.11} parent=5 // pred_check_branch
      %184 = sbr.rel (%p181) target = $region12
    $region11: #{_lambda_.11} parent=5 // pred_region
      %s185 = ssub.s32 %s11, 1
      // Predicated region
      $region13: #{_lambda_.11} parent=11 // pred_check
        %p186 = pneg %p70
      $region14: #{_lambda_.11} parent=11 // pred_check_branch
        %188 = sbr.rel (%p186) target = $region16
      $region15: #{_lambda_.11} parent=11 // pred_region
        _
      $region16: #{_lambda_.11} parent=11 // pred_fallthru
        _
      // Predicated region
      $region17: #{_lambda_.11} parent=11 // pred_check
        %p189 = pneg %p91
      $region18: #{_lambda_.11} parent=11 // pred_check_branch
        %191 = sbr.rel (%p189) target = $region20
      $region19: #{_lambda_.11} parent=11 // pred_region
        _
      $region20: #{_lambda_.11} parent=11 // pred_fallthru
        _
      // Predicated region
      $region21: #{_lambda_.11} parent=11 // pred_check
        %p192 = pneg %p117
      $region22: #{_lambda_.11} parent=11 // pred_check_branch
        %194 = sbr.rel (%p192) target = $region24
      $region23: #{_lambda_.11} parent=11 // pred_region
        %p195 = scmp.lt.s32.totalorder %s21, 0
        %s196 = scalar_select %p195, %s21, 0
        %s197 = smul.addr %s196, 4
        %s198 = scalar_lea.vmem %s3, %s197
      $region24: #{_lambda_.11} parent=11 // pred_fallthru
        _
      // Predicated region
      $region25: #{_lambda_.11} parent=11 // pred_check
        %p199 = pneg %p143
      $region26: #{_lambda_.11} parent=11 // pred_check_branch
        %201 = sbr.rel (%p199) target = $region28
      $region27: #{_lambda_.11} parent=11 // pred_region
        %p202 = scmp.lt.s32.totalorder %s21, 0
        %s203 = scalar_select %p202, %s21, 0
        %s204 = scalar_lea.vmem %s4, %s203
      $region28: #{_lambda_.11} parent=11 // pred_fallthru
        _
    $region12: #{_lambda_.11} parent=5 // pred_fallthru
      _
    %p205 = scmp.lt.s32.totalorder %s11, 2
    // Predicated region
    $region29: #{_lambda_.11} parent=5 // pred_check
      %p206 = pneg %p205
    $region30: #{_lambda_.11} parent=5 // pred_check_branch
      %208 = sbr.rel (%p206) target = $region32
    $region31: #{_lambda_.11} parent=5 // pred_region
      // Predicated region
      $region33: #{_lambda_.11} parent=31 // pred_check
        %p209 = pneg %p43
      $region34: #{_lambda_.11} parent=31 // pred_check_branch
        %211 = sbr.rel (%p209) target = $region36
      $region35: #{_lambda_.11} parent=31 // pred_region
        %s212 = smul.u32 2, %s18
        %p213 = scmp.lt.s32.totalorder %s212, 3
        %s214 = scalar_select %p213, %s212, 3
        %s215 = smul.addr %s214, 4
        %s216 = scalar_lea.vmem %s0, %s215
        %s217 = smul.u32 2, %s18
      $region36: #{_lambda_.11} parent=31 // pred_fallthru
        _
    $region32: #{_lambda_.11} parent=5 // pred_fallthru
      _
    %p218 = scmp.le.s32.totalorder 1, %s11
    %p219 = scmp.lt.s32.totalorder %s11, 3
    %p220 = pnand %p218, %p219
    %p221 = pneg %p220
    // Predicated region
    $region37: #{_lambda_.11} parent=5 // pred_check
      _
    $region38: #{_lambda_.11} parent=5 // pred_check_branch
      %223 = sbr.rel (%p220) target = $region40
    $region39: #{_lambda_.11} parent=5 // pred_region
      %s224 = ssub.s32 %s11, 1
      %s225 = smul.u32 2, %s20
      %p226 = scmp.lt.s32.totalorder %s225, 3
      %s227 = scalar_select %p226, %s225, 3
      %s228 = smul.addr %s227, 4
      %s229 = scalar_lea.vmem %s0, %s228
      %p230 = pneg %p49
      %p231 = pneg %p46
      %p232 = pneg %p70
      %p233 = pneg %p67
      %p234 = pneg %p91
      %p235 = pneg %p88
      %p236 = scmp.lt.s32.totalorder %s21, 0
      %s237 = scalar_select %p236, %s21, 0
      %s238 = smul.addr %s237, 4
      %s239 = scalar_lea.vmem %s3, %s238
      %p240 = pneg %p117
      %p241 = pneg %p114
      %p242 = scmp.lt.s32.totalorder %s21, 0
      %s243 = scalar_select %p242, %s21, 0
      %s244 = scalar_lea.vmem %s4, %s243
      %p245 = pneg %p143
      %p246 = pneg %p140
      %p247 = pneg %p171
      %p248 = pneg %p168
      %s249 = smul.u32 2, %s20
      %p250 = scmp.lt.s32.totalorder %s249, 3
      %s251 = scalar_select %p250, %s249, 3
      %p252 = scmp.lt.s32.totalorder %s21, 0
      %s253 = scalar_select %p252, %s21, 0
      %s254 = sadd.s32 %s253, %s251
      %s255 = smul.addr %s254, 4
      %s256 = scalar_lea.vmem %s5, %s255
      %s257 = smul.u32 2, %s20
      %p258 = scmp.lt.s32.totalorder %s257, 3
      %s259 = scalar_select %p258, %s257, 3
      %s260 = smul.addr %s259, 4
      %s261 = scalar_lea.vmem %s0, %s260
      %s262 = smul.u32 2, %s20
      %p263 = scmp.lt.s32.totalorder %s21, 0
      %s264 = scalar_select %p263, %s21, 0
      %s265 = smul.addr %s264, 4
      %s266 = scalar_lea.vmem %s3, %s265
      %p267 = scmp.lt.s32.totalorder %s21, 0
      %s268 = scalar_select %p267, %s21, 0
      %s269 = scalar_lea.vmem %s4, %s268
      %s270 = smul.u32 2, %s20
      %p271 = scmp.lt.s32.totalorder %s270, 3
      %s272 = scalar_select %p271, %s270, 3
      %p273 = scmp.lt.s32.totalorder %s21, 0
      %s274 = scalar_select %p273, %s21, 0
      %s275 = sadd.s32 %s274, %s272
      %s276 = smul.addr %s275, 4
      %s277 = scalar_lea.vmem %s5, %s276
      %s278 = smul.u32 2, %s20
      %p280 = scmp.eq.s32.totalorder %s21, 0
      // Predicated region
      $region41: #{_lambda_.11} parent=39 // pred_check
        %p281 = pneg %p280
      $region42: #{_lambda_.11} parent=39 // pred_check_branch
        %283 = sbr.rel (%p281) target = $region44
      $region43: #{_lambda_.11} parent=39 // pred_region
        %v284 = vld [vmem:[%s261] sm:$0xf]
        %v285 = vld [vmem:[%s261 + $0x4] sm:$0xf]
        %v286 = vunpack.c.l.bf16 %v284
        %v287 = vunpack.c.l.bf16 %v285
        %vm288 = vcmask 261120
        %v289 = vsel %vm288, %v286, 0.0
        %290 = vadd.xlane.f32.xlu0 %v289
        %v291 = vpop.xlane.xlu0 %290
        %v292 = vsel %vm288, %v287, 0.0
        %293 = vadd.xlane.f32.xlu0 %v292
        %v294 = vpop.xlane.xlu0 %293
        %v295 = vrcp.pop 32.0
        %v296 = vmul.f32 %v291, %v295
        %v297 = vmul.f32 %v294, %v295
        %v298 = vsub.f32 %v286, %v296
        %v299 = vsub.f32 %v287, %v297
        %v300 = vmul.f32 %v298, %v298
        %v301 = vmul.f32 %v299, %v299
        %v302 = vsel %vm288, %v300, 0.0
        %303 = vadd.xlane.f32.xlu0 %v302
        %v304 = vpop.xlane.xlu0 %303
        %v305 = vsel %vm288, %v301, 0.0
        %306 = vadd.xlane.f32.xlu0 %v305
        %v307 = vpop.xlane.xlu0 %306
        %v308 = vmul.f32 %v304, %v295
        %v309 = vmul.f32 %v307, %v295
        %v310 = vadd.f32 %v308, 1e-05
        %v311 = vadd.f32 %v309, 1e-05
        %v312 = vrsqrt.pop %v310
        %v313 = vrsqrt.pop %v311
        %v314 = vmul.f32 %v298, %v312
        %v315 = vmul.f32 %v299, %v313
        %v316 = vld [vmem:[%s1] sm:$0x1]
        %v318 = vlaneseq
        %v319 = vshrl.u32 %v318, 7
        %v320 = vsub.s32 0, %v319
        %v321 = vrot.slane %v316, %v320
        %v323 = vmul.f32 %v314, %v321
        %v324 = vmul.f32 %v315, %v321
        %v325 = vld [vmem:[%s2] sm:$0x1]
        %v327 = vlaneseq
        %v328 = vshrl.u32 %v327, 7
        %v329 = vsub.s32 0, %v328
        %v330 = vrot.slane %v325, %v329
        %v332 = vadd.f32 %v323, %v330
        %v333 = vadd.f32 %v324, %v330
        %v334 = vpack.c.bf16 %v333, %v332
        %335 = vst.msk [vmem:[#allocation2] sm:$0xff] %vm288, %v334
      $region44: #{_lambda_.11} parent=39 // pred_fallthru
        _
      %v336 = vld [vmem:[#allocation2] sm:$0xff]
      %v337 = vld [vmem:[%s266] sm:$0xf]
      %v338 = vld [vmem:[%s266 + $0x4] sm:$0xf]
      %v339 = vld [vmem:[%s266 + $0x8] sm:$0xf]
      %v340 = vld [vmem:[%s266 + $0xc] sm:$0xf]
      %v341 = vld [vmem:[%s269] sm:$0x1]
      %v343 = vlaneseq
      %v344 = vshrl.u32 %v343, 7
      %v345 = vsub.s32 0, %v344
      %v346 = vrot.slane %v341, %v345
      %v352 = vunpack.c.l.b16 %v337
      %v353 = vunpack.c.l.b16 %v338
      %v354 = vunpack.c.l.b16 %v339
      %v355 = vunpack.c.l.b16 %v340
      %v356 = vpack.c.b16 %v353, %v352
      %v357 = vpack.c.b16 %v355, %v354
      %vm360 = vcmask 261120
      %v362 = vsel %vm360, %v336, 0
      %364 = vmatprep.subr.bf16.mxu0 0
      %365 = vmatpush1.bf16.msra.mxu0 %v356
      %366 = vmatprep.subr.bf16.mxu0 0
      %367 = vmatpush1.bf16.msra.mxu0 %v357
      %368 = vmatprep.subr.bf16.mxu0 0
      %369 = vmatpush1.bf16.msra.mxu0 0
      %370 = vmatprep.subr.bf16.mxu0 0
      %371 = vmatpush1.bf16.msra.mxu0 0
      %372 = vmatprep.subr.bf16.mxu0 0
      %373 = vmatpush1.bf16.msra.mxu0 0
      %374 = vmatprep.subr.bf16.mxu0 0
      %375 = vmatpush1.bf16.msra.mxu0 0
      %376 = vmatprep.subr.bf16.mxu0 0
      %377 = vmatpush1.bf16.msra.mxu0 0
      %378 = vmatprep.subr.bf16.mxu0 0
      %379 = vmatpush1.bf16.msra.mxu0 0
      %380 = vmatprep.subr.bf16.mxu0 0
      %381 = vmatpush1.bf16.msra.mxu0 0
      %382 = vmatprep.subr.bf16.mxu0 0
      %383 = vmatpush1.bf16.msra.mxu0 0
      %384 = vmatprep.subr.bf16.mxu0 0
      %385 = vmatpush1.bf16.msra.mxu0 0
      %386 = vmatprep.subr.bf16.mxu0 0
      %387 = vmatpush1.bf16.msra.mxu0 0
      %388 = vmatprep.subr.bf16.mxu0 0
      %389 = vmatpush1.bf16.msra.mxu0 0
      %390 = vmatprep.subr.bf16.mxu0 0
      %391 = vmatpush1.bf16.msra.mxu0 0
      %392 = vmatprep.subr.bf16.mxu0 0
      %393 = vmatpush1.bf16.msra.mxu0 0
      %394 = vmatprep.subr.bf16.mxu0 0
      %395 = vmatpush1.bf16.msra.mxu0 0
      %396 = vmatprep.mubr.bf16.mxu0 0
      %397 = vmatmul.mubr.bf16.gmra.mrb[0].mxu0 %v362
      %v398 = vpop.f32.mrb[0].mxu0
      %v399 = vadd.f32 %v346, %v398
      %v400 = vpop.f32.mrb[0].mxu0
      %v401 = vpop.f32.mrb[0].mxu0
      %v402 = vadd.f32 %v346, %v401
      %v403 = vpop.f32.mrb[0].mxu0
      %404 = vdwg.mxu0
      %v405 = vpack.c.bf16 %v402, %v399
      %v407 = vunpack.c.l.b16 %v405
      %v408 = vunpack.c.h.b16 %v405
      %v409 = vpack.c.b16 %v407, %v407
      %v410 = vpack.c.b16 %v408, %v408
      %vm413 = vcmask 781312
      %414 = vst.msk [vmem:[%s277] sm:$0xf] %vm413, %v409
      %415 = vst.msk [vmem:[%s277 + $0x4] sm:$0xf] %vm413, %v410
      %s416 = smul.u32 2, %s20
      %p417 = scmp.lt.s32.totalorder %s416, 3
      %s418 = scalar_select %p417, %s416, 3
      %p419 = scmp.lt.s32.totalorder %s21, 0
      %s420 = scalar_select %p419, %s21, 0
      %s421 = sadd.s32 %s420, %s418
      %s422 = smul.addr %s421, 4
      %s423 = scalar_lea.vmem %s5, %s422
      // Predicated region
      $region45: #{_lambda_.11} parent=39 // pred_check
        %p424 = pneg %p168
      $region46: #{_lambda_.11} parent=39 // pred_check_branch
        %426 = sbr.rel (%p424) target = $region48
      $region47: #{_lambda_.11} parent=39 // pred_region
        %s427 = smul.u32 2, %s20
      $region48: #{_lambda_.11} parent=39 // pred_fallthru
        _
    $region40: #{_lambda_.11} parent=5 // pred_fallthru
      _
    %p428 = scmp.le.s32.totalorder 2, %s11
    // Predicated region
    $region49: #{_lambda_.11} parent=5 // pred_check
      %p429 = pneg %p428
    $region50: #{_lambda_.11} parent=5 // pred_check_branch
      %431 = sbr.rel (%p429) target = $region52
    $region51: #{_lambda_.11} parent=5 // pred_region
      %s432 = ssub.s32 %s11, 2
      // Predicated region
      $region53: #{_lambda_.11} parent=51 // pred_check
        %p433 = pneg %p174
      $region54: #{_lambda_.11} parent=51 // pred_check_branch
        %435 = sbr.rel (%p433) target = $region56
      $region55: #{_lambda_.11} parent=51 // pred_region
        %s436 = smul.u32 2, %s22
        %p437 = scmp.lt.s32.totalorder %s436, 3
        %s438 = scalar_select %p437, %s436, 3
        %p439 = scmp.lt.s32.totalorder %s23, 0
        %s440 = scalar_select %p439, %s23, 0
        %s441 = sadd.s32 %s440, %s438
        %s442 = smul.addr %s441, 4
        %s443 = scalar_lea.vmem %s5, %s442
      $region56: #{_lambda_.11} parent=51 // pred_fallthru
        _
    $region52: #{_lambda_.11} parent=5 // pred_fallthru
      _
  $region6: #{_lambda_.11} parent=0 // loop_footer
    %s15 = sadd.s32 1, %s11
  $region7: #{_lambda_.11} parent=0 // loop_footer_branch
    %10 = sbr.rel target = $region3
  $region8: #{_lambda_.11} parent=0 // loop_exit
    _

// kernel: _lambda_.12
$region0: #{_lambda_.12}
  #allocation0 [shape = 'u32[]', space=smem, size = 0x4, offset = 0x4, fixed_abs, tag = 'smem constant byte address 0x4 - core index']
  #allocation1 [shape = 'u32[144,128]{1,0:T(1,128)}', space=vmem, size = 0x12000, scoped, tag = 'internal scratch']
  #allocation2 [shape = 'f32[16,1]{1,0:T(8,128)}', space=vmem, size = 0x2000, scoped, tag = 'scratch operand']
  #allocation3 [shape = 'f32[16,1]{1,0:T(8,128)}', space=vmem, size = 0x2000, scoped, tag = 'scratch operand']
  #allocation4 [shape = 'f32[16,8]{1,0:T(8,128)}', space=vmem, size = 0x2000, scoped, tag = 'scratch operand']
  %s0 = inlined_call_operand.vmem [shape: bf16[8,16,8], index: 0, kind: input, shape index: {}]
  %s1 = inlined_call_operand.vmem [shape: bf16[8,16,8], index: 1, kind: input, shape index: {}]
  %s2 = inlined_call_operand.vmem [shape: bf16[8,16,8], index: 2, kind: input, shape index: {}]
  %s3 = inlined_call_operand.vmem [shape: bf16[8,16,8], index: 3, kind: output, shape index: {}]
  %s4 = sld [smem:[#allocation0]]
  $region61: #{_lambda_.12} parent=0
    _
  %s6 = ssub.s32 1, %s4
  %s7 = scalar_select 0, %s6, %s4
  loop: start=0, step=1, limit=10
  $region2: #{_lambda_.12} parent=0 // loop_pre_header
    _
  $region3: #{_lambda_.12} parent=0 // loop_header
    %s9 = sphi 0, %s13
    %p10 = scmp.ge.s32.totalorder %s9, 10
    %s16 = sphi 0, %s35
    %s17 = sphi 0, %s31
    %s18 = sphi 0, %s27
    %s19 = sphi 0, %s16
    %s20 = sphi 0, %s17
    %s21 = sphi 0, %s18
    %s22 = sphi 0, %s19
    %s23 = sphi 0, %s20
    %s24 = sphi 0, %s21
    %s40 = sphi 0, %s42
    %s43 = sphi 0, %s40
    %s44 = sphi 0, %s43
    %s60 = sphi 0, %s44
    %s72 = sphi 0, %s74
    %s75 = sphi 0, %s72
    %s76 = sphi 0, %s75
    %s92 = sphi 0, %s76
    %s104 = sphi 0, %s106
    %s107 = sphi 0, %s104
    %s108 = sphi 0, %s107
    %s124 = sphi 0, %s108
    %s132 = sphi 0, %s134
    %s135 = sphi 0, %s132
    %s136 = sphi 0, %s135
    %s152 = sphi 0, %s136
  $region4: #{_lambda_.12} parent=0 // loop_header_branch
    %12 = sbr.rel (%p10) target = $region8
  $region5: #{_lambda_.12} parent=0 // loop_body
    %s14 = ssub.s32 %s9, 1
    %s15 = ssub.s32 %s9, 2
    %s25 = sadd.s32 1, %s18
    %p26 = scmp.ge.s32.totalorder %s25, 1
    %s27 = scalar_select %p26, 0, %s25
    %s28 = sadd.s32 1, %s17
    %s29 = scalar_select %p26, %s28, %s17
    %p30 = scmp.ge.s32.totalorder %s29, 1
    %s31 = scalar_select %p30, 0, %s29
    %s32 = sadd.s32 1, %s16
    %s33 = scalar_select %p30, %s32, %s16
    %p34 = scmp.ge.s32.totalorder %s33, 8
    %s35 = scalar_select %p34, 0, %s33
    %s36 = ssub.s32 %s16, %s35
    %s37 = ssub.s32 %s17, %s31
    %s38 = sor.u32 %s36, %s37
    %p39 = scmp.eq.s32.totalorder %s38, 0
    %s41 = sadd.s32 %s40, 1
    %s42 = scalar_select %p39, %s40, %s41
    %p45 = pneg %p39
    %p46 = scmp.eq.s32.totalorder %s9, 7
    %p47 = por %p45, %p46
    %p48 = scmp.ne.s32.totalorder %s40, %s43
    %p49 = scmp.eq.s32.totalorder %s9, 0
    %p50 = por %p48, %p49
    %p51 = scmp.ne.s32.totalorder %s40, %s43
    %p52 = scmp.eq.s32.totalorder %s14, 7
    %p53 = por %p51, %p52
    %p54 = scmp.ne.s32.totalorder %s43, %s44
    %p55 = scmp.eq.s32.totalorder %s14, 0
    %p56 = por %p54, %p55
    %p57 = scmp.ne.s32.totalorder %s43, %s44
    %p58 = scmp.eq.s32.totalorder %s15, 7
    %p59 = por %p57, %p58
    %p61 = scmp.ne.s32.totalorder %s44, %s60
    %p62 = scmp.eq.s32.totalorder %s15, 0
    %p63 = por %p61, %p62
    %p64 = scmp.lt.s32.totalorder %s18, %s17
    %s65 = scalar_select %p64, %s18, %s17
    %p66 = scmp.lt.s32.totalorder %s27, %s31
    %s67 = scalar_select %p66, %s27, %s31
    %s68 = ssub.s32 %s16, %s35
    %s69 = ssub.s32 %s65, %s67
    %s70 = sor.u32 %s68, %s69
    %p71 = scmp.eq.s32.totalorder %s70, 0
    %s73 = sadd.s32 %s72, 1
    %s74 = scalar_select %p71, %s72, %s73
    %p77 = pneg %p71
    %p78 = scmp.eq.s32.totalorder %s9, 7
    %p79 = por %p77, %p78
    %p80 = scmp.ne.s32.totalorder %s72, %s75
    %p81 = scmp.eq.s32.totalorder %s9, 0
    %p82 = por %p80, %p81
    %p83 = scmp.ne.s32.totalorder %s72, %s75
    %p84 = scmp.eq.s32.totalorder %s14, 7
    %p85 = por %p83, %p84
    %p86 = scmp.ne.s32.totalorder %s75, %s76
    %p87 = scmp.eq.s32.totalorder %s14, 0
    %p88 = por %p86, %p87
    %p89 = scmp.ne.s32.totalorder %s75, %s76
    %p90 = scmp.eq.s32.totalorder %s15, 7
    %p91 = por %p89, %p90
    %p93 = scmp.ne.s32.totalorder %s76, %s92
    %p94 = scmp.eq.s32.totalorder %s15, 0
    %p95 = por %p93, %p94
    %p96 = scmp.lt.s32.totalorder %s18, %s17
    %s97 = scalar_select %p96, %s18, %s17
    %p98 = scmp.lt.s32.totalorder %s27, %s31
    %s99 = scalar_select %p98, %s27, %s31
    %s100 = ssub.s32 %s16, %s35
    %s101 = ssub.s32 %s97, %s99
    %s102 = sor.u32 %s100, %s101
    %p103 = scmp.eq.s32.totalorder %s102, 0
    %s105 = sadd.s32 %s104, 1
    %s106 = scalar_select %p103, %s104, %s105
    %p109 = pneg %p103
    %p110 = scmp.eq.s32.totalorder %s9, 7
    %p111 = por %p109, %p110
    %p112 = scmp.ne.s32.totalorder %s104, %s107
    %p113 = scmp.eq.s32.totalorder %s9, 0
    %p114 = por %p112, %p113
    %p115 = scmp.ne.s32.totalorder %s104, %s107
    %p116 = scmp.eq.s32.totalorder %s14, 7
    %p117 = por %p115, %p116
    %p118 = scmp.ne.s32.totalorder %s107, %s108
    %p119 = scmp.eq.s32.totalorder %s14, 0
    %p120 = por %p118, %p119
    %p121 = scmp.ne.s32.totalorder %s107, %s108
    %p122 = scmp.eq.s32.totalorder %s15, 7
    %p123 = por %p121, %p122
    %p125 = scmp.ne.s32.totalorder %s108, %s124
    %p126 = scmp.eq.s32.totalorder %s15, 0
    %p127 = por %p125, %p126
    %s128 = ssub.s32 %s16, %s35
    %s129 = ssub.s32 %s17, %s31
    %s130 = sor.u32 %s128, %s129
    %p131 = scmp.eq.s32.totalorder %s130, 0
    %s133 = sadd.s32 %s132, 1
    %s134 = scalar_select %p131, %s132, %s133
    %p137 = pneg %p131
    %p138 = scmp.eq.s32.totalorder %s9, 7
    %p139 = por %p137, %p138
    %p140 = scmp.ne.s32.totalorder %s132, %s135
    %p141 = scmp.eq.s32.totalorder %s9, 0
    %p142 = por %p140, %p141
    %p143 = scmp.ne.s32.totalorder %s132, %s135
    %p144 = scmp.eq.s32.totalorder %s14, 7
    %p145 = por %p143, %p144
    %p146 = scmp.ne.s32.totalorder %s135, %s136
    %p147 = scmp.eq.s32.totalorder %s14, 0
    %p148 = por %p146, %p147
    %p149 = scmp.ne.s32.totalorder %s135, %s136
    %p150 = scmp.eq.s32.totalorder %s15, 7
    %p151 = por %p149, %p150
    %p153 = scmp.ne.s32.totalorder %s136, %s152
    %p154 = scmp.eq.s32.totalorder %s15, 0
    %p155 = por %p153, %p154
    %p156 = scmp.le.s32.totalorder 1, %s9
    %p157 = scmp.lt.s32.totalorder %s9, 9
    %p158 = pnand %p156, %p157
    %p159 = pneg %p158
    // Predicated region
    $region9: #{_lambda_.12} parent=5 // pred_check
      _
    $region10: #{_lambda_.12} parent=5 // pred_check_branch
      %161 = sbr.rel (%p158) target = $region12
    $region11: #{_lambda_.12} parent=5 // pred_region
      %s162 = ssub.s32 %s9, 1
    $region12: #{_lambda_.12} parent=5 // pred_fallthru
      _
    %p163 = scmp.lt.s32.totalorder %s9, 8
    // Predicated region
    $region13: #{_lambda_.12} parent=5 // pred_check
      %p164 = pneg %p163
    $region14: #{_lambda_.12} parent=5 // pred_check_branch
      %166 = sbr.rel (%p164) target = $region16
    $region15: #{_lambda_.12} parent=5 // pred_region
      // Predicated region
      $region17: #{_lambda_.12} parent=15 // pred_check
        %p167 = pneg %p50
      $region18: #{_lambda_.12} parent=15 // pred_check_branch
        %169 = sbr.rel (%p167) target = $region20
      $region19: #{_lambda_.12} parent=15 // pred_region
        %s170 = smul.u32 2, %s17
        %p171 = scmp.lt.s32.totalorder %s16, 7
        %s172 = scalar_select %p171, %s16, 7
        %p173 = scmp.lt.s32.totalorder %s170, 1
        %s174 = scalar_select %p173, %s170, 1
        %s175 = smul.addr %s172, 2
        %s176 = sadd.s32 %s174, %s175
        %s177 = smul.addr %s176, 4
        %s178 = scalar_lea.vmem %s0, %s177
        %s179 = smul.u32 2, %s17
      $region20: #{_lambda_.12} parent=15 // pred_fallthru
        _
      // Predicated region
      $region21: #{_lambda_.12} parent=15 // pred_check
        %p180 = pneg %p82
      $region22: #{_lambda_.12} parent=15 // pred_check_branch
        %182 = sbr.rel (%p180) target = $region24
      $region23: #{_lambda_.12} parent=15 // pred_region
        %p183 = scmp.lt.s32.totalorder %s18, %s17
        %s184 = scalar_select %p183, %s18, %s17
        %s185 = smul.u32 2, %s184
        %p186 = scmp.lt.s32.totalorder %s16, 7
        %s187 = scalar_select %p186, %s16, 7
        %p188 = scmp.lt.s32.totalorder %s185, 1
        %s189 = scalar_select %p188, %s185, 1
        %s190 = smul.addr %s187, 2
        %s191 = sadd.s32 %s189, %s190
        %s192 = smul.addr %s191, 4
        %s193 = scalar_lea.vmem %s1, %s192
        %p194 = scmp.lt.s32.totalorder %s18, %s17
        %s195 = scalar_select %p194, %s18, %s17
        %s196 = smul.u32 2, %s195
      $region24: #{_lambda_.12} parent=15 // pred_fallthru
        _
      // Predicated region
      $region25: #{_lambda_.12} parent=15 // pred_check
        %p197 = pneg %p114
      $region26: #{_lambda_.12} parent=15 // pred_check_branch
        %199 = sbr.rel (%p197) target = $region28
      $region27: #{_lambda_.12} parent=15 // pred_region
        %p200 = scmp.lt.s32.totalorder %s18, %s17
        %s201 = scalar_select %p200, %s18, %s17
        %s202 = smul.u32 2, %s201
        %p203 = scmp.lt.s32.totalorder %s16, 7
        %s204 = scalar_select %p203, %s16, 7
        %p205 = scmp.lt.s32.totalorder %s202, 1
        %s206 = scalar_select %p205, %s202, 1
        %s207 = smul.addr %s204, 2
        %s208 = sadd.s32 %s206, %s207
        %s209 = smul.addr %s208, 4
        %s210 = scalar_lea.vmem %s2, %s209
        %p211 = scmp.lt.s32.totalorder %s18, %s17
        %s212 = scalar_select %p211, %s18, %s17
        %s213 = smul.u32 2, %s212
      $region28: #{_lambda_.12} parent=15 // pred_fallthru
        _
    $region16: #{_lambda_.12} parent=5 // pred_fallthru
      _
    %p214 = scmp.le.s32.totalorder 1, %s9
    %p215 = scmp.lt.s32.totalorder %s9, 9
    %p216 = pnand %p214, %p215
    %p217 = pneg %p216
    // Predicated region
    $region29: #{_lambda_.12} parent=5 // pred_check
      _
    $region30: #{_lambda_.12} parent=5 // pred_check_branch
      %219 = sbr.rel (%p216) target = $region32
    $region31: #{_lambda_.12} parent=5 // pred_region
      %s220 = ssub.s32 %s9, 1
      %s221 = smul.u32 2, %s20
      %p222 = scmp.lt.s32.totalorder %s19, 7
      %s223 = scalar_select %p222, %s19, 7
      %p224 = scmp.lt.s32.totalorder %s221, 1
      %s225 = scalar_select %p224, %s221, 1
      %s226 = smul.addr %s223, 2
      %s227 = sadd.s32 %s225, %s226
      %s228 = smul.addr %s227, 4
      %s229 = scalar_lea.vmem %s0, %s228
      %p230 = pneg %p56
      %p231 = pneg %p53
      %p232 = scmp.lt.s32.totalorder %s21, %s20
      %s233 = scalar_select %p232, %s21, %s20
      %s234 = smul.u32 2, %s233
      %p235 = scmp.lt.s32.totalorder %s19, 7
      %s236 = scalar_select %p235, %s19, 7
      %p237 = scmp.lt.s32.totalorder %s234, 1
      %s238 = scalar_select %p237, %s234, 1
      %s239 = smul.addr %s236, 2
      %s240 = sadd.s32 %s238, %s239
      %s241 = smul.addr %s240, 4
      %s242 = scalar_lea.vmem %s1, %s241
      %p243 = pneg %p88
      %p244 = pneg %p85
      %p245 = scmp.lt.s32.totalorder %s21, %s20
      %s246 = scalar_select %p245, %s21, %s20
      %s247 = smul.u32 2, %s246
      %p248 = scmp.lt.s32.totalorder %s19, 7
      %s249 = scalar_select %p248, %s19, 7
      %p250 = scmp.lt.s32.totalorder %s247, 1
      %s251 = scalar_select %p250, %s247, 1
      %s252 = smul.addr %s249, 2
      %s253 = sadd.s32 %s251, %s252
      %s254 = smul.addr %s253, 4
      %s255 = scalar_lea.vmem %s2, %s254
      %p256 = pneg %p120
      %p257 = pneg %p117
      %p258 = pneg %p148
      %p259 = pneg %p145
      %s260 = smul.u32 2, %s20
      %p261 = scmp.lt.s32.totalorder %s19, 7
      %s262 = scalar_select %p261, %s19, 7
      %p263 = scmp.lt.s32.totalorder %s260, 1
      %s264 = scalar_select %p263, %s260, 1
      %s265 = smul.addr %s262, 2
      %s266 = sadd.s32 %s264, %s265
      %s267 = smul.addr %s266, 4
      %s268 = scalar_lea.vmem %s3, %s267
      %s269 = smul.u32 2, %s20
      %p270 = scmp.lt.s32.totalorder %s19, 7
      %s271 = scalar_select %p270, %s19, 7
      %p272 = scmp.lt.s32.totalorder %s269, 1
      %s273 = scalar_select %p272, %s269, 1
      %s274 = smul.addr %s271, 2
      %s275 = sadd.s32 %s273, %s274
      %s276 = smul.addr %s275, 4
      %s277 = scalar_lea.vmem %s0, %s276
      %s278 = smul.u32 2, %s20
      %p279 = scmp.lt.s32.totalorder %s21, %s20
      %s280 = scalar_select %p279, %s21, %s20
      %s281 = smul.u32 2, %s280
      %p282 = scmp.lt.s32.totalorder %s19, 7
      %s283 = scalar_select %p282, %s19, 7
      %p284 = scmp.lt.s32.totalorder %s281, 1
      %s285 = scalar_select %p284, %s281, 1
      %s286 = smul.addr %s283, 2
      %s287 = sadd.s32 %s285, %s286
      %s288 = smul.addr %s287, 4
      %s289 = scalar_lea.vmem %s1, %s288
      %p290 = scmp.lt.s32.totalorder %s21, %s20
      %s291 = scalar_select %p290, %s21, %s20
      %s292 = smul.u32 2, %s291
      %p293 = scmp.lt.s32.totalorder %s21, %s20
      %s294 = scalar_select %p293, %s21, %s20
      %s295 = smul.u32 2, %s294
      %p296 = scmp.lt.s32.totalorder %s19, 7
      %s297 = scalar_select %p296, %s19, 7
      %p298 = scmp.lt.s32.totalorder %s295, 1
      %s299 = scalar_select %p298, %s295, 1
      %s300 = smul.addr %s297, 2
      %s301 = sadd.s32 %s299, %s300
      %s302 = smul.addr %s301, 4
      %s303 = scalar_lea.vmem %s2, %s302
      %p304 = scmp.lt.s32.totalorder %s21, %s20
      %s305 = scalar_select %p304, %s21, %s20
      %s306 = smul.u32 2, %s305
      %s307 = smul.u32 2, %s20
      %p308 = scmp.lt.s32.totalorder %s19, 7
      %s309 = scalar_select %p308, %s19, 7
      %p310 = scmp.lt.s32.totalorder %s307, 1
      %s311 = scalar_select %p310, %s307, 1
      %s312 = smul.addr %s309, 2
      %s313 = sadd.s32 %s311, %s312
      %s314 = smul.addr %s313, 4
      %s315 = scalar_lea.vmem %s3, %s314
      %s316 = smul.u32 2, %s20
      %p318 = scmp.eq.s32.totalorder %s21, 0
      // Predicated region
      $region33: #{_lambda_.12} parent=31 // pred_check
        %p319 = pneg %p318
      $region34: #{_lambda_.12} parent=31 // pred_check_branch
        %321 = sbr.rel (%p319) target = $region36
      $region35: #{_lambda_.12} parent=31 // pred_region
        %vm322 = vcmask 7168
        %323 = vst.msk [vmem:[#allocation2] sm:$0xff] %vm322, -inf
        %324 = vst.msk [vmem:[#allocation2 + $0x8] sm:$0xff] %vm322, -inf
        %325 = vst.msk [vmem:[#allocation3] sm:$0xff] %vm322, 0.0
        %326 = vst.msk [vmem:[#allocation3 + $0x8] sm:$0xff] %vm322, 0.0
        %vm327 = vcmask 64512
        %328 = vst.msk [vmem:[#allocation4] sm:$0xff] %vm327, 0.0
        %329 = vst.msk [vmem:[#allocation4 + $0x8] sm:$0xff] %vm327, 0.0
      $region36: #{_lambda_.12} parent=31 // pred_fallthru
        _
      %p330 = scmp.lt.s32.totalorder %s21, %s20
      // Predicated region
      $region37: #{_lambda_.12} parent=31 // pred_check
        %p331 = pneg %p330
      $region38: #{_lambda_.12} parent=31 // pred_check_branch
        %333 = sbr.rel (%p331) target = $region40
      $region39: #{_lambda_.12} parent=31 // pred_region
        %v334 = vld [vmem:[%s277] sm:$0xf]
        %v335 = vld [vmem:[%s277 + $0x4] sm:$0xf]
        %v336 = vunpack.c.l.bf16 %v334
        %v337 = vunpack.c.l.bf16 %v335
        %v338 = vmul.f32 %v336, 0.35355338
        %v339 = vmul.f32 %v337, 0.35355338
        %v340 = vpack.c.bf16 %v339, %v338
        %v341 = vld [vmem:[%s289] sm:$0xf]
        %v342 = vld [vmem:[%s289 + $0x4] sm:$0xf]
        %v343 = vld [vmem:[%s303] sm:$0xf]
        %v344 = vld [vmem:[%s303 + $0x4] sm:$0xf]
        %v347 = vunpack.c.l.b16 %v341
        %v348 = vunpack.c.l.b16 %v342
        %v349 = vpack.c.b16 %v348, %v347
        %vm350 = vcmask 64512
        %v352 = vsel %vm350, %v340, 0
        %v355 = vsel %vm350, %v349, 0
        %357 = vmatprep.subr.bf16.mxu0 0
        %358 = vmatpush1.bf16.xpose.msra.mxu0 %v355
        %359 = vmatprep.subr.bf16.mxu0 0
        %360 = vmatpush1.bf16.xpose.msra.mxu0 0
        %361 = vmatprep.subr.bf16.mxu0 0
        %362 = vmatpush1.bf16.xpose.msra.mxu0 0
        %363 = vmatprep.subr.bf16.mxu0 0
        %364 = vmatpush1.bf16.xpose.msra.mxu0 0
        %365 = vmatprep.subr.bf16.mxu0 0
        %366 = vmatpush1.bf16.xpose.msra.mxu0 0
        %367 = vmatprep.subr.bf16.mxu0 0
        %368 = vmatpush1.bf16.xpose.msra.mxu0 0
        %369 = vmatprep.subr.bf16.mxu0 0
        %370 = vmatpush1.bf16.xpose.msra.mxu0 0
        %371 = vmatprep.subr.bf16.mxu0 0
        %372 = vmatpush1.bf16.xpose.msra.mxu0 0
        %373 = vmatprep.subr.bf16.mxu0 0
        %374 = vmatpush1.bf16.xpose.msra.mxu0 0
        %375 = vmatprep.subr.bf16.mxu0 0
        %376 = vmatpush1.bf16.xpose.msra.mxu0 0
        %377 = vmatprep.subr.bf16.mxu0 0
        %378 = vmatpush1.bf16.xpose.msra.mxu0 0
        %379 = vmatprep.subr.bf16.mxu0 0
        %380 = vmatpush1.bf16.xpose.msra.mxu0 0
        %381 = vmatprep.subr.bf16.mxu0 0
        %382 = vmatpush1.bf16.xpose.msra.mxu0 0
        %383 = vmatprep.subr.bf16.mxu0 0
        %384 = vmatpush1.bf16.xpose.msra.mxu0 0
        %385 = vmatprep.subr.bf16.mxu0 0
        %386 = vmatpush1.bf16.xpose.msra.mxu0 0
        %387 = vmatprep.subr.bf16.mxu0 0
        %388 = vmatpush1.bf16.xpose.msra.mxu0 0
        %389 = vmatprep.mubr.bf16.mxu0 0
        %390 = vmatmul.mubr.bf16.gmra.mrb[0].mxu0 %v352
        %v391 = vpop.f32.mrb[0].mxu0
        %v392 = vadd.f32 0.0, %v391
        %v393 = vpop.f32.mrb[0].mxu0
        %v394 = vpop.f32.mrb[0].mxu0
        %v395 = vadd.f32 0.0, %v394
        %v396 = vpop.f32.mrb[0].mxu0
        %397 = vdwg.mxu0
        %v398 = vld [vmem:[#allocation2] sm:$0xff]
        %v399 = vld [vmem:[#allocation2 + $0x8] sm:$0xff]
        %vm400 = vcmask 130048
        %v401 = vsel %vm400, %v392, -inf
        %402 = vmax.xlane.f32.xlu0 %v401
        %v403 = vpop.xlane.xlu0 %402
        %v404 = vsel %vm400, %v395, -inf
        %405 = vmax.xlane.f32.xlu0 %v404
        %v406 = vpop.xlane.xlu0 %405
        %v407 = vmax.f32 %v398, %v403
        %v408 = vmax.f32 %v399, %v406
        %v409 = vsub.f32 %v398, %v407
        %v410 = vsub.f32 %v399, %v408
        %v411 = vmul.f32 %v409, 1.442695
        %v412 = vpow.pop %v411
        %v413 = vmul.f32 %v410, 1.442695
        %v414 = vpow.pop %v413
        %416 = vset.pattern.permute.xlu0 0
        %417 = vperm.xlu0 %416, %v407
        %v418 = vpop.permute.xlu0 %417
        %421 = vset.pattern.permute.xlu0 0
        %422 = vperm.xlu0 %421, %v408
        %v423 = vpop.permute.xlu0 %422
        %v425 = vsub.f32 %v392, %v418
        %v426 = vsub.f32 %v395, %v423
        %v427 = vmul.f32 %v425, 1.442695
        %v428 = vpow.pop %v427
        %v429 = vmul.f32 %v426, 1.442695
        %v430 = vpow.pop %v429
        %v431 = vld [vmem:[#allocation3] sm:$0xff]
        %v432 = vld [vmem:[#allocation3 + $0x8] sm:$0xff]
        %v433 = vmul.f32 %v412, %v431
        %v434 = vmul.f32 %v414, %v432
        %v435 = vsel %vm400, %v428, 0.0
        %436 = vadd.xlane.f32.xlu0 %v435
        %v437 = vpop.xlane.xlu0 %436
        %v438 = vsel %vm400, %v430, 0.0
        %439 = vadd.xlane.f32.xlu0 %v438
        %v440 = vpop.xlane.xlu0 %439
        %v441 = vadd.f32 %v433, %v437
        %v442 = vadd.f32 %v434, %v440
        %vm443 = vcmask 7168
        %444 = vst.msk [vmem:[#allocation3] sm:$0xff] %vm443, %v441
        %445 = vst.msk [vmem:[#allocation3 + $0x8] sm:$0xff] %vm443, %v442
        %v446 = vld [vmem:[#allocation4] sm:$0xff]
        %v447 = vld [vmem:[#allocation4 + $0x8] sm:$0xff]
        %449 = vset.pattern.permute.xlu0 0
        %450 = vperm.xlu0 %449, %v412
        %v451 = vpop.permute.xlu0 %450
        %454 = vset.pattern.permute.xlu0 0
        %455 = vperm.xlu0 %454, %v414
        %v456 = vpop.permute.xlu0 %455
        %v458 = vmul.f32 %v451, %v446
        %v459 = vmul.f32 %v456, %v447
        %v460 = vpack.c.bf16 %v430, %v428
        %v463 = vunpack.c.l.b16 %v343
        %v464 = vunpack.c.l.b16 %v344
        %v465 = vpack.c.b16 %v464, %v463
        %v468 = vsel %vm400, %v460, 0
        %470 = vmatprep.subr.bf16.mxu0 0
        %471 = vmatpush1.bf16.msra.mxu0 %v465
        %472 = vmatprep.subr.bf16.mxu0 0
        %473 = vmatpush1.bf16.msra.mxu0 0
        %474 = vmatprep.subr.bf16.mxu0 0
        %475 = vmatpush1.bf16.msra.mxu0 0
        %476 = vmatprep.subr.bf16.mxu0 0
        %477 = vmatpush1.bf16.msra.mxu0 0
        %478 = vmatprep.subr.bf16.mxu0 0
        %479 = vmatpush1.bf16.msra.mxu0 0
        %480 = vmatprep.subr.bf16.mxu0 0
        %481 = vmatpush1.bf16.msra.mxu0 0
        %482 = vmatprep.subr.bf16.mxu0 0
        %483 = vmatpush1.bf16.msra.mxu0 0
        %484 = vmatprep.subr.bf16.mxu0 0
        %485 = vmatpush1.bf16.msra.mxu0 0
        %486 = vmatprep.subr.bf16.mxu0 0
        %487 = vmatpush1.bf16.msra.mxu0 0
        %488 = vmatprep.subr.bf16.mxu0 0
        %489 = vmatpush1.bf16.msra.mxu0 0
        %490 = vmatprep.subr.bf16.mxu0 0
        %491 = vmatpush1.bf16.msra.mxu0 0
        %492 = vmatprep.subr.bf16.mxu0 0
        %493 = vmatpush1.bf16.msra.mxu0 0
        %494 = vmatprep.subr.bf16.mxu0 0
        %495 = vmatpush1.bf16.msra.mxu0 0
        %496 = vmatprep.subr.bf16.mxu0 0
        %497 = vmatpush1.bf16.msra.mxu0 0
        %498 = vmatprep.subr.bf16.mxu0 0
        %499 = vmatpush1.bf16.msra.mxu0 0
        %500 = vmatprep.subr.bf16.mxu0 0
        %501 = vmatpush1.bf16.msra.mxu0 0
        %502 = vmatprep.mubr.bf16.mxu0 0
        %503 = vmatmul.mubr.bf16.gmra.mrb[0].mxu0 %v468
        %v504 = vpop.f32.mrb[0].mxu0
        %v505 = vadd.f32 0.0, %v504
        %v506 = vpop.f32.mrb[0].mxu0
        %v507 = vpop.f32.mrb[0].mxu0
        %v508 = vadd.f32 0.0, %v507
        %v509 = vpop.f32.mrb[0].mxu0
        %510 = vdwg.mxu0
        %v511 = vadd.f32 %v458, %v505
        %v512 = vadd.f32 %v459, %v508
        %513 = vst.msk [vmem:[#allocation4] sm:$0xff] %vm350, %v511
        %514 = vst.msk [vmem:[#allocation4 + $0x8] sm:$0xff] %vm350, %v512
        %515 = vst.msk [vmem:[#allocation2] sm:$0xff] %vm443, %v407
        %516 = vst.msk [vmem:[#allocation2 + $0x8] sm:$0xff] %vm443, %v408
      $region40: #{_lambda_.12} parent=31 // pred_fallthru
        _
      %p517 = scmp.eq.s32.totalorder %s21, %s20
      // Predicated region
      $region41: #{_lambda_.12} parent=31 // pred_check
        %p518 = pneg %p517
      $region42: #{_lambda_.12} parent=31 // pred_check_branch
        %520 = sbr.rel (%p518) target = $region44
      $region43: #{_lambda_.12} parent=31 // pred_region
        %v521 = vld [vmem:[%s277] sm:$0xf]
        %v522 = vld [vmem:[%s277 + $0x4] sm:$0xf]
        %v523 = vunpack.c.l.bf16 %v521
        %v524 = vunpack.c.l.bf16 %v522
        %v525 = vmul.f32 %v523, 0.35355338
        %v526 = vmul.f32 %v524, 0.35355338
        %v527 = vpack.c.bf16 %v526, %v525
        %v528 = vld [vmem:[%s289] sm:$0xf]
        %v529 = vld [vmem:[%s289 + $0x4] sm:$0xf]
        %v530 = vld [vmem:[%s303] sm:$0xf]
        %v531 = vld [vmem:[%s303 + $0x4] sm:$0xf]
        %v534 = vunpack.c.l.b16 %v528
        %v535 = vunpack.c.l.b16 %v529
        %v536 = vpack.c.b16 %v535, %v534
        %vm537 = vcmask 64512
        %v539 = vsel %vm537, %v527, 0
        %v542 = vsel %vm537, %v536, 0
        %544 = vmatprep.subr.bf16.mxu0 0
        %545 = vmatpush1.bf16.xpose.msra.mxu0 %v542
        %546 = vmatprep.subr.bf16.mxu0 0
        %547 = vmatpush1.bf16.xpose.msra.mxu0 0
        %548 = vmatprep.subr.bf16.mxu0 0
        %549 = vmatpush1.bf16.xpose.msra.mxu0 0
        %550 = vmatprep.subr.bf16.mxu0 0
        %551 = vmatpush1.bf16.xpose.msra.mxu0 0
        %552 = vmatprep.subr.bf16.mxu0 0
        %553 = vmatpush1.bf16.xpose.msra.mxu0 0
        %554 = vmatprep.subr.bf16.mxu0 0
        %555 = vmatpush1.bf16.xpose.msra.mxu0 0
        %556 = vmatprep.subr.bf16.mxu0 0
        %557 = vmatpush1.bf16.xpose.msra.mxu0 0
        %558 = vmatprep.subr.bf16.mxu0 0
        %559 = vmatpush1.bf16.xpose.msra.mxu0 0
        %560 = vmatprep.subr.bf16.mxu0 0
        %561 = vmatpush1.bf16.xpose.msra.mxu0 0
        %562 = vmatprep.subr.bf16.mxu0 0
        %563 = vmatpush1.bf16.xpose.msra.mxu0 0
        %564 = vmatprep.subr.bf16.mxu0 0
        %565 = vmatpush1.bf16.xpose.msra.mxu0 0
        %566 = vmatprep.subr.bf16.mxu0 0
        %567 = vmatpush1.bf16.xpose.msra.mxu0 0
        %568 = vmatprep.subr.bf16.mxu0 0
        %569 = vmatpush1.bf16.xpose.msra.mxu0 0
        %570 = vmatprep.subr.bf16.mxu0 0
        %571 = vmatpush1.bf16.xpose.msra.mxu0 0
        %572 = vmatprep.subr.bf16.mxu0 0
        %573 = vmatpush1.bf16.xpose.msra.mxu0 0
        %574 = vmatprep.subr.bf16.mxu0 0
        %575 = vmatpush1.bf16.xpose.msra.mxu0 0
        %576 = vmatprep.mubr.bf16.mxu0 0
        %577 = vmatmul.mubr.bf16.gmra.mrb[0].mxu0 %v539
        %v578 = vpop.f32.mrb[0].mxu0
        %v579 = vadd.f32 0.0, %v578
        %v580 = vpop.f32.mrb[0].mxu0
        %v581 = vpop.f32.mrb[0].mxu0
        %v582 = vadd.f32 0.0, %v581
        %v583 = vpop.f32.mrb[0].mxu0
        %584 = vdwg.mxu0
        %v585 = vlaneseq
        %v586 = vshrl.u32 %v585, 7
        %v587 = vadd.s32 %v586, 8
        %v588 = vlaneseq
        %v589 = vand.u32 %v588, 127
        %vm590 = vcmp.le.s32.totalorder %v589, %v586
        %vm591 = vcmp.le.s32.totalorder %v589, %v587
        %v592 = vsel %vm590, %v579, -1e+30
        %v593 = vsel %vm591, %v582, -1e+30
        %v594 = vld [vmem:[#allocation2] sm:$0xff]
        %v595 = vld [vmem:[#allocation2 + $0x8] sm:$0xff]
        %vm596 = vcmask 130048
        %v597 = vsel %vm596, %v592, -inf
        %598 = vmax.xlane.f32.xlu0 %v597
        %v599 = vpop.xlane.xlu0 %598
        %v600 = vsel %vm596, %v593, -inf
        %601 = vmax.xlane.f32.xlu0 %v600
        %v602 = vpop.xlane.xlu0 %601
        %v603 = vmax.f32 %v594, %v599
        %v604 = vmax.f32 %v595, %v602
        %v605 = vsub.f32 %v594, %v603
        %v606 = vsub.f32 %v595, %v604
        %v607 = vmul.f32 %v605, 1.442695
        %v608 = vpow.pop %v607
        %v609 = vmul.f32 %v606, 1.442695
        %v610 = vpow.pop %v609
        %612 = vset.pattern.permute.xlu0 0
        %613 = vperm.xlu0 %612, %v603
        %v614 = vpop.permute.xlu0 %613
        %617 = vset.pattern.permute.xlu0 0
        %618 = vperm.xlu0 %617, %v604
        %v619 = vpop.permute.xlu0 %618
        %v621 = vsub.f32 %v592, %v614
        %v622 = vsub.f32 %v593, %v619
        %v623 = vmul.f32 %v621, 1.442695
        %v624 = vpow.pop %v623
        %v625 = vmul.f32 %v622, 1.442695
        %v626 = vpow.pop %v625
        %v627 = vld [vmem:[#allocation3] sm:$0xff]
        %v628 = vld [vmem:[#allocation3 + $0x8] sm:$0xff]
        %v629 = vmul.f32 %v608, %v627
        %v630 = vmul.f32 %v610, %v628
        %v631 = vsel %vm596, %v624, 0.0
        %632 = vadd.xlane.f32.xlu0 %v631
        %v633 = vpop.xlane.xlu0 %632
        %v634 = vsel %vm596, %v626, 0.0
        %635 = vadd.xlane.f32.xlu0 %v634
        %v636 = vpop.xlane.xlu0 %635
        %v637 = vadd.f32 %v629, %v633
        %v638 = vadd.f32 %v630, %v636
        %vm639 = vcmask 7168
        %640 = vst.msk [vmem:[#allocation3] sm:$0xff] %vm639, %v637
        %641 = vst.msk [vmem:[#allocation3 + $0x8] sm:$0xff] %vm639, %v638
        %v642 = vld [vmem:[#allocation4] sm:$0xff]
        %v643 = vld [vmem:[#allocation4 + $0x8] sm:$0xff]
        %645 = vset.pattern.permute.xlu0 0
        %646 = vperm.xlu0 %645, %v608
        %v647 = vpop.permute.xlu0 %646
        %650 = vset.pattern.permute.xlu0 0
        %651 = vperm.xlu0 %650, %v610
        %v652 = vpop.permute.xlu0 %651
        %v654 = vmul.f32 %v647, %v642
        %v655 = vmul.f32 %v652, %v643
        %v656 = vpack.c.bf16 %v626, %v624
        %v659 = vunpack.c.l.b16 %v530
        %v660 = vunpack.c.l.b16 %v531
        %v661 = vpack.c.b16 %v660, %v659
        %v664 = vsel %vm596, %v656, 0
        %666 = vmatprep.subr.bf16.mxu0 0
        %667 = vmatpush1.bf16.msra.mxu0 %v661
        %668 = vmatprep.subr.bf16.mxu0 0
        %669 = vmatpush1.bf16.msra.mxu0 0
        %670 = vmatprep.subr.bf16.mxu0 0
        %671 = vmatpush1.bf16.msra.mxu0 0
        %672 = vmatprep.subr.bf16.mxu0 0
        %673 = vmatpush1.bf16.msra.mxu0 0
        %674 = vmatprep.subr.bf16.mxu0 0
        %675 = vmatpush1.bf16.msra.mxu0 0
        %676 = vmatprep.subr.bf16.mxu0 0
        %677 = vmatpush1.bf16.msra.mxu0 0
        %678 = vmatprep.subr.bf16.mxu0 0
        %679 = vmatpush1.bf16.msra.mxu0 0
        %680 = vmatprep.subr.bf16.mxu0 0
        %681 = vmatpush1.bf16.msra.mxu0 0
        %682 = vmatprep.subr.bf16.mxu0 0
        %683 = vmatpush1.bf16.msra.mxu0 0
        %684 = vmatprep.subr.bf16.mxu0 0
        %685 = vmatpush1.bf16.msra.mxu0 0
        %686 = vmatprep.subr.bf16.mxu0 0
        %687 = vmatpush1.bf16.msra.mxu0 0
        %688 = vmatprep.subr.bf16.mxu0 0
        %689 = vmatpush1.bf16.msra.mxu0 0
        %690 = vmatprep.subr.bf16.mxu0 0
        %691 = vmatpush1.bf16.msra.mxu0 0
        %692 = vmatprep.subr.bf16.mxu0 0
        %693 = vmatpush1.bf16.msra.mxu0 0
        %694 = vmatprep.subr.bf16.mxu0 0
        %695 = vmatpush1.bf16.msra.mxu0 0
        %696 = vmatprep.subr.bf16.mxu0 0
        %697 = vmatpush1.bf16.msra.mxu0 0
        %698 = vmatprep.mubr.bf16.mxu0 0
        %699 = vmatmul.mubr.bf16.gmra.mrb[0].mxu0 %v664
        %v700 = vpop.f32.mrb[0].mxu0
        %v701 = vadd.f32 0.0, %v700
        %v702 = vpop.f32.mrb[0].mxu0
        %v703 = vpop.f32.mrb[0].mxu0
        %v704 = vadd.f32 0.0, %v703
        %v705 = vpop.f32.mrb[0].mxu0
        %706 = vdwg.mxu0
        %v707 = vadd.f32 %v654, %v701
        %v708 = vadd.f32 %v655, %v704
        %709 = vst.msk [vmem:[#allocation4] sm:$0xff] %vm537, %v707
        %710 = vst.msk [vmem:[#allocation4 + $0x8] sm:$0xff] %vm537, %v708
        %711 = vst.msk [vmem:[#allocation2] sm:$0xff] %vm639, %v603
        %712 = vst.msk [vmem:[#allocation2 + $0x8] sm:$0xff] %vm639, %v604
      $region44: #{_lambda_.12} parent=31 // pred_fallthru
        _
      // Predicated region
      $region45: #{_lambda_.12} parent=31 // pred_check
        %p713 = pneg %p318
      $region46: #{_lambda_.12} parent=31 // pred_check_branch
        %715 = sbr.rel (%p713) target = $region48
      $region47: #{_lambda_.12} parent=31 // pred_region
        %v716 = vld [vmem:[#allocation3] sm:$0xff]
        %v717 = vld [vmem:[#allocation3 + $0x8] sm:$0xff]
        %v718 = vrcp.pop %v716
        %v719 = vrcp.pop %v717
        %v720 = vld [vmem:[#allocation4] sm:$0xff]
        %v721 = vld [vmem:[#allocation4 + $0x8] sm:$0xff]
        %723 = vset.pattern.permute.xlu0 0
        %724 = vperm.xlu0 %723, %v718
        %v725 = vpop.permute.xlu0 %724
        %728 = vset.pattern.permute.xlu0 0
        %729 = vperm.xlu0 %728, %v719
        %v730 = vpop.permute.xlu0 %729
        %v732 = vmul.f32 %v720, %v725
        %v733 = vmul.f32 %v721, %v730
        %v734 = vpack.c.bf16 %v733, %v732
        %v736 = vunpack.c.l.b16 %v734
        %v737 = vunpack.c.h.b16 %v734
        %v738 = vpack.c.b16 %v736, %v736
        %v739 = vpack.c.b16 %v737, %v737
        %vm742 = vcmask 60416
        %743 = vst.msk [vmem:[%s315] sm:$0xf] %vm742, %v738
        %744 = vst.msk [vmem:[%s315 + $0x4] sm:$0xf] %vm742, %v739
      $region48: #{_lambda_.12} parent=31 // pred_fallthru
        _
      %s745 = smul.u32 2, %s20
      %p746 = scmp.lt.s32.totalorder %s19, 7
      %s747 = scalar_select %p746, %s19, 7
      %p748 = scmp.lt.s32.totalorder %s745, 1
      %s749 = scalar_select %p748, %s745, 1
      %s750 = smul.addr %s747, 2
      %s751 = sadd.s32 %s749, %s750
      %s752 = smul.addr %s751, 4
      %s753 = scalar_lea.vmem %s3, %s752
      // Predicated region
      $region49: #{_lambda_.12} parent=31 // pred_check
        %p754 = pneg %p145
      $region50: #{_lambda_.12} parent=31 // pred_check_branch
        %756 = sbr.rel (%p754) target = $region52
      $region51: #{_lambda_.12} parent=31 // pred_region
        %s757 = smul.u32 2, %s20
      $region52: #{_lambda_.12} parent=31 // pred_fallthru
        _
    $region32: #{_lambda_.12} parent=5 // pred_fallthru
      _
    %p758 = scmp.le.s32.totalorder 2, %s9
    // Predicated region
    $region53: #{_lambda_.12} parent=5 // pred_check
      %p759 = pneg %p758
    $region54: #{_lambda_.12} parent=5 // pred_check_branch
      %761 = sbr.rel (%p759) target = $region56
    $region55: #{_lambda_.12} parent=5 // pred_region
      %s762 = ssub.s32 %s9, 2
      // Predicated region
      $region57: #{_lambda_.12} parent=55 // pred_check
        %p763 = pneg %p151
      $region58: #{_lambda_.12} parent=55 // pred_check_branch
        %765 = sbr.rel (%p763) target = $region60
      $region59: #{_lambda_.12} parent=55 // pred_region
        %s766 = smul.u32 2, %s23
        %p767 = scmp.lt.s32.totalorder %s22, 7
        %s768 = scalar_select %p767, %s22, 7
        %p769 = scmp.lt.s32.totalorder %s766, 1
        %s770 = scalar_select %p769, %s766, 1
        %s771 = smul.addr %s768, 2
        %s772 = sadd.s32 %s770, %s771
        %s773 = smul.addr %s772, 4
        %s774 = scalar_lea.vmem %s3, %s773
      $region60: #{_lambda_.12} parent=55 // pred_fallthru
        _
    $region56: #{_lambda_.12} parent=5 // pred_fallthru
      _
  $region6: #{_lambda_.12} parent=0 // loop_footer
    %s13 = sadd.s32 1, %s9
  $region7: #{_lambda_.12} parent=0 // loop_footer_branch
    %8 = sbr.rel target = $region3
  $region8: #{_lambda_.12} parent=0 // loop_exit
    _

// kernel: _lambda_.13
$region0: #{_lambda_.13}
  #allocation0 [shape = 'u32[]', space=smem, size = 0x4, offset = 0x4, fixed_abs, tag = 'smem constant byte address 0x4 - core index']
  #allocation1 [shape = 'u32[144,128]{1,0:T(1,128)}', space=vmem, size = 0x12000, scoped, tag = 'internal scratch']
  %s0 = inlined_call_operand.vmem [shape: bf16[32,32], index: 0, kind: input, shape index: {}]
  %s1 = inlined_call_operand.vmem [shape: bf16[32,32], index: 1, kind: input, shape index: {}]
  %s2 = inlined_call_operand.vmem [shape: f32[1,32], index: 2, kind: input, shape index: {}]
  %s3 = inlined_call_operand.vmem [shape: bf16[32,32], index: 3, kind: input, shape index: {}]
  %s4 = inlined_call_operand.vmem [shape: bf16[32,32], index: 4, kind: output, shape index: {}]
  %s5 = sld [smem:[#allocation0]]
  $region49: #{_lambda_.13} parent=0
    _
  %s7 = ssub.s32 1, %s5
  %s8 = scalar_select 0, %s7, %s5
  loop: start=0, step=1, limit=4
  $region2: #{_lambda_.13} parent=0 // loop_pre_header
    _
  $region3: #{_lambda_.13} parent=0 // loop_header
    %s10 = sphi 0, %s14
    %p11 = scmp.ge.s32.totalorder %s10, 4
    %s17 = sphi 0, %s29
    %s18 = sphi 0, %s25
    %s19 = sphi 0, %s17
    %s20 = sphi 0, %s18
    %s21 = sphi 0, %s19
    %s22 = sphi 0, %s20
    %s32 = sphi 0, %s34
    %s35 = sphi 0, %s32
    %s36 = sphi 0, %s35
    %s52 = sphi 0, %s36
    %s58 = sphi 0, %s60
    %s61 = sphi 0, %s58
    %s62 = sphi 0, %s61
    %s78 = sphi 0, %s62
    %s84 = sphi 0, %s86
    %s87 = sphi 0, %s84
    %s88 = sphi 0, %s87
    %s104 = sphi 0, %s88
    %s112 = sphi 0, %s114
    %s115 = sphi 0, %s112
    %s116 = sphi 0, %s115
    %s132 = sphi 0, %s116
    %s140 = sphi 0, %s142
    %s143 = sphi 0, %s140
    %s144 = sphi 0, %s143
    %s160 = sphi 0, %s144
  $region4: #{_lambda_.13} parent=0 // loop_header_branch
    %13 = sbr.rel (%p11) target = $region8
  $region5: #{_lambda_.13} parent=0 // loop_body
    %s15 = ssub.s32 %s10, 1
    %s16 = ssub.s32 %s10, 2
    %s23 = sadd.s32 1, %s18
    %p24 = scmp.ge.s32.totalorder %s23, 1
    %s25 = scalar_select %p24, 0, %s23
    %s26 = sadd.s32 1, %s17
    %s27 = scalar_select %p24, %s26, %s17
    %p28 = scmp.ge.s32.totalorder %s27, 2
    %s29 = scalar_select %p28, 0, %s27
    %s30 = ssub.s32 %s17, %s29
    %p31 = scmp.eq.s32.totalorder %s30, 0
    %s33 = sadd.s32 %s32, 1
    %s34 = scalar_select %p31, %s32, %s33
    %p37 = pneg %p31
    %p38 = scmp.eq.s32.totalorder %s10, 1
    %p39 = por %p37, %p38
    %p40 = scmp.ne.s32.totalorder %s32, %s35
    %p41 = scmp.eq.s32.totalorder %s10, 0
    %p42 = por %p40, %p41
    %p43 = scmp.ne.s32.totalorder %s32, %s35
    %p44 = scmp.eq.s32.totalorder %s15, 1
    %p45 = por %p43, %p44
    %p46 = scmp.ne.s32.totalorder %s35, %s36
    %p47 = scmp.eq.s32.totalorder %s15, 0
    %p48 = por %p46, %p47
    %p49 = scmp.ne.s32.totalorder %s35, %s36
    %p50 = scmp.eq.s32.totalorder %s16, 1
    %p51 = por %p49, %p50
    %p53 = scmp.ne.s32.totalorder %s36, %s52
    %p54 = scmp.eq.s32.totalorder %s16, 0
    %p55 = por %p53, %p54
    %s56 = ssub.s32 %s18, %s25
    %p57 = scmp.eq.s32.totalorder %s56, 0
    %s59 = sadd.s32 %s58, 1
    %s60 = scalar_select %p57, %s58, %s59
    %p63 = pneg %p57
    %p64 = scmp.eq.s32.totalorder %s10, 1
    %p65 = por %p63, %p64
    %p66 = scmp.ne.s32.totalorder %s58, %s61
    %p67 = scmp.eq.s32.totalorder %s10, 0
    %p68 = por %p66, %p67
    %p69 = scmp.ne.s32.totalorder %s58, %s61
    %p70 = scmp.eq.s32.totalorder %s15, 1
    %p71 = por %p69, %p70
    %p72 = scmp.ne.s32.totalorder %s61, %s62
    %p73 = scmp.eq.s32.totalorder %s15, 0
    %p74 = por %p72, %p73
    %p75 = scmp.ne.s32.totalorder %s61, %s62
    %p76 = scmp.eq.s32.totalorder %s16, 1
    %p77 = por %p75, %p76
    %p79 = scmp.ne.s32.totalorder %s62, %s78
    %p80 = scmp.eq.s32.totalorder %s16, 0
    %p81 = por %p79, %p80
    %s82 = ssub.s32 %s18, %s25
    %p83 = scmp.eq.s32.totalorder %s82, 0
    %s85 = sadd.s32 %s84, 1
    %s86 = scalar_select %p83, %s84, %s85
    %p89 = pneg %p83
    %p90 = scmp.eq.s32.totalorder %s10, 1
    %p91 = por %p89, %p90
    %p92 = scmp.ne.s32.totalorder %s84, %s87
    %p93 = scmp.eq.s32.totalorder %s10, 0
    %p94 = por %p92, %p93
    %p95 = scmp.ne.s32.totalorder %s84, %s87
    %p96 = scmp.eq.s32.totalorder %s15, 1
    %p97 = por %p95, %p96
    %p98 = scmp.ne.s32.totalorder %s87, %s88
    %p99 = scmp.eq.s32.totalorder %s15, 0
    %p100 = por %p98, %p99
    %p101 = scmp.ne.s32.totalorder %s87, %s88
    %p102 = scmp.eq.s32.totalorder %s16, 1
    %p103 = por %p101, %p102
    %p105 = scmp.ne.s32.totalorder %s88, %s104
    %p106 = scmp.eq.s32.totalorder %s16, 0
    %p107 = por %p105, %p106
    %s108 = ssub.s32 %s17, %s29
    %s109 = ssub.s32 %s18, %s25
    %s110 = sor.u32 %s108, %s109
    %p111 = scmp.eq.s32.totalorder %s110, 0
    %s113 = sadd.s32 %s112, 1
    %s114 = scalar_select %p111, %s112, %s113
    %p117 = pneg %p111
    %p118 = scmp.eq.s32.totalorder %s10, 1
    %p119 = por %p117, %p118
    %p120 = scmp.ne.s32.totalorder %s112, %s115
    %p121 = scmp.eq.s32.totalorder %s10, 0
    %p122 = por %p120, %p121
    %p123 = scmp.ne.s32.totalorder %s112, %s115
    %p124 = scmp.eq.s32.totalorder %s15, 1
    %p125 = por %p123, %p124
    %p126 = scmp.ne.s32.totalorder %s115, %s116
    %p127 = scmp.eq.s32.totalorder %s15, 0
    %p128 = por %p126, %p127
    %p129 = scmp.ne.s32.totalorder %s115, %s116
    %p130 = scmp.eq.s32.totalorder %s16, 1
    %p131 = por %p129, %p130
    %p133 = scmp.ne.s32.totalorder %s116, %s132
    %p134 = scmp.eq.s32.totalorder %s16, 0
    %p135 = por %p133, %p134
    %s136 = ssub.s32 %s17, %s29
    %s137 = ssub.s32 %s18, %s25
    %s138 = sor.u32 %s136, %s137
    %p139 = scmp.eq.s32.totalorder %s138, 0
    %s141 = sadd.s32 %s140, 1
    %s142 = scalar_select %p139, %s140, %s141
    %p145 = pneg %p139
    %p146 = scmp.eq.s32.totalorder %s10, 1
    %p147 = por %p145, %p146
    %p148 = scmp.ne.s32.totalorder %s140, %s143
    %p149 = scmp.eq.s32.totalorder %s10, 0
    %p150 = por %p148, %p149
    %p151 = scmp.ne.s32.totalorder %s140, %s143
    %p152 = scmp.eq.s32.totalorder %s15, 1
    %p153 = por %p151, %p152
    %p154 = scmp.ne.s32.totalorder %s143, %s144
    %p155 = scmp.eq.s32.totalorder %s15, 0
    %p156 = por %p154, %p155
    %p157 = scmp.ne.s32.totalorder %s143, %s144
    %p158 = scmp.eq.s32.totalorder %s16, 1
    %p159 = por %p157, %p158
    %p161 = scmp.ne.s32.totalorder %s144, %s160
    %p162 = scmp.eq.s32.totalorder %s16, 0
    %p163 = por %p161, %p162
    %p164 = scmp.le.s32.totalorder 1, %s10
    %p165 = scmp.lt.s32.totalorder %s10, 3
    %p166 = pnand %p164, %p165
    %p167 = pneg %p166
    // Predicated region
    $region9: #{_lambda_.13} parent=5 // pred_check
      _
    $region10: #{_lambda_.13} parent=5 // pred_check_branch
      %169 = sbr.rel (%p166) target = $region12
    $region11: #{_lambda_.13} parent=5 // pred_region
      %s170 = ssub.s32 %s10, 1
      // Predicated region
      $region13: #{_lambda_.13} parent=11 // pred_check
        %p171 = pneg %p74
      $region14: #{_lambda_.13} parent=11 // pred_check_branch
        %173 = sbr.rel (%p171) target = $region16
      $region15: #{_lambda_.13} parent=11 // pred_region
        %p174 = scmp.lt.s32.totalorder %s20, 0
        %s175 = scalar_select %p174, %s20, 0
        %s176 = smul.addr %s175, 4
        %s177 = scalar_lea.vmem %s1, %s176
      $region16: #{_lambda_.13} parent=11 // pred_fallthru
        _
      // Predicated region
      $region17: #{_lambda_.13} parent=11 // pred_check
        %p178 = pneg %p100
      $region18: #{_lambda_.13} parent=11 // pred_check_branch
        %180 = sbr.rel (%p178) target = $region20
      $region19: #{_lambda_.13} parent=11 // pred_region
        %p181 = scmp.lt.s32.totalorder %s20, 0
        %s182 = scalar_select %p181, %s20, 0
        %s183 = scalar_lea.vmem %s2, %s182
      $region20: #{_lambda_.13} parent=11 // pred_fallthru
        _
    $region12: #{_lambda_.13} parent=5 // pred_fallthru
      _
    %p184 = scmp.lt.s32.totalorder %s10, 2
    // Predicated region
    $region21: #{_lambda_.13} parent=5 // pred_check
      %p185 = pneg %p184
    $region22: #{_lambda_.13} parent=5 // pred_check_branch
      %187 = sbr.rel (%p185) target = $region24
    $region23: #{_lambda_.13} parent=5 // pred_region
      // Predicated region
      $region25: #{_lambda_.13} parent=23 // pred_check
        %p188 = pneg %p42
      $region26: #{_lambda_.13} parent=23 // pred_check_branch
        %190 = sbr.rel (%p188) target = $region28
      $region27: #{_lambda_.13} parent=23 // pred_region
        %s191 = smul.u32 2, %s17
        %p192 = scmp.lt.s32.totalorder %s191, 3
        %s193 = scalar_select %p192, %s191, 3
        %s194 = smul.addr %s193, 4
        %s195 = scalar_lea.vmem %s0, %s194
        %s196 = smul.u32 2, %s17
      $region28: #{_lambda_.13} parent=23 // pred_fallthru
        _
      // Predicated region
      $region29: #{_lambda_.13} parent=23 // pred_check
        %p197 = pneg %p122
      $region30: #{_lambda_.13} parent=23 // pred_check_branch
        %199 = sbr.rel (%p197) target = $region32
      $region31: #{_lambda_.13} parent=23 // pred_region
        %s200 = smul.u32 2, %s17
        %p201 = scmp.lt.s32.totalorder %s200, 3
        %s202 = scalar_select %p201, %s200, 3
        %p203 = scmp.lt.s32.totalorder %s18, 0
        %s204 = scalar_select %p203, %s18, 0
        %s205 = sadd.s32 %s204, %s202
        %s206 = smul.addr %s205, 4
        %s207 = scalar_lea.vmem %s3, %s206
        %s208 = smul.u32 2, %s17
      $region32: #{_lambda_.13} parent=23 // pred_fallthru
        _
    $region24: #{_lambda_.13} parent=5 // pred_fallthru
      _
    %p209 = scmp.le.s32.totalorder 1, %s10
    %p210 = scmp.lt.s32.totalorder %s10, 3
    %p211 = pnand %p209, %p210
    %p212 = pneg %p211
    // Predicated region
    $region33: #{_lambda_.13} parent=5 // pred_check
      _
    $region34: #{_lambda_.13} parent=5 // pred_check_branch
      %214 = sbr.rel (%p211) target = $region36
    $region35: #{_lambda_.13} parent=5 // pred_region
      %s215 = ssub.s32 %s10, 1
      %s216 = smul.u32 2, %s19
      %p217 = scmp.lt.s32.totalorder %s216, 3
      %s218 = scalar_select %p217, %s216, 3
      %s219 = smul.addr %s218, 4
      %s220 = scalar_lea.vmem %s0, %s219
      %p221 = pneg %p48
      %p222 = pneg %p45
      %p223 = scmp.lt.s32.totalorder %s20, 0
      %s224 = scalar_select %p223, %s20, 0
      %s225 = smul.addr %s224, 4
      %s226 = scalar_lea.vmem %s1, %s225
      %p227 = pneg %p74
      %p228 = pneg %p71
      %p229 = scmp.lt.s32.totalorder %s20, 0
      %s230 = scalar_select %p229, %s20, 0
      %s231 = scalar_lea.vmem %s2, %s230
      %p232 = pneg %p100
      %p233 = pneg %p97
      %s234 = smul.u32 2, %s19
      %p235 = scmp.lt.s32.totalorder %s234, 3
      %s236 = scalar_select %p235, %s234, 3
      %p237 = scmp.lt.s32.totalorder %s20, 0
      %s238 = scalar_select %p237, %s20, 0
      %s239 = sadd.s32 %s238, %s236
      %s240 = smul.addr %s239, 4
      %s241 = scalar_lea.vmem %s3, %s240
      %p242 = pneg %p128
      %p243 = pneg %p125
      %p244 = pneg %p156
      %p245 = pneg %p153
      %s246 = smul.u32 2, %s19
      %p247 = scmp.lt.s32.totalorder %s246, 3
      %s248 = scalar_select %p247, %s246, 3
      %p249 = scmp.lt.s32.totalorder %s20, 0
      %s250 = scalar_select %p249, %s20, 0
      %s251 = sadd.s32 %s250, %s248
      %s252 = smul.addr %s251, 4
      %s253 = scalar_lea.vmem %s4, %s252
      %s254 = smul.u32 2, %s19
      %p255 = scmp.lt.s32.totalorder %s254, 3
      %s256 = scalar_select %p255, %s254, 3
      %s257 = smul.addr %s256, 4
      %s258 = scalar_lea.vmem %s0, %s257
      %s259 = smul.u32 2, %s19
      %p260 = scmp.lt.s32.totalorder %s20, 0
      %s261 = scalar_select %p260, %s20, 0
      %s262 = smul.addr %s261, 4
      %s263 = scalar_lea.vmem %s1, %s262
      %p264 = scmp.lt.s32.totalorder %s20, 0
      %s265 = scalar_select %p264, %s20, 0
      %s266 = scalar_lea.vmem %s2, %s265
      %s267 = smul.u32 2, %s19
      %p268 = scmp.lt.s32.totalorder %s267, 3
      %s269 = scalar_select %p268, %s267, 3
      %p270 = scmp.lt.s32.totalorder %s20, 0
      %s271 = scalar_select %p270, %s20, 0
      %s272 = sadd.s32 %s271, %s269
      %s273 = smul.addr %s272, 4
      %s274 = scalar_lea.vmem %s3, %s273
      %s275 = smul.u32 2, %s19
      %s276 = smul.u32 2, %s19
      %p277 = scmp.lt.s32.totalorder %s276, 3
      %s278 = scalar_select %p277, %s276, 3
      %p279 = scmp.lt.s32.totalorder %s20, 0
      %s280 = scalar_select %p279, %s20, 0
      %s281 = sadd.s32 %s280, %s278
      %s282 = smul.addr %s281, 4
      %s283 = scalar_lea.vmem %s4, %s282
      %s284 = smul.u32 2, %s19
      %v286 = vld [vmem:[%s258] sm:$0xf]
      %v287 = vld [vmem:[%s258 + $0x4] sm:$0xf]
      %v288 = vld [vmem:[%s263] sm:$0xf]
      %v289 = vld [vmem:[%s263 + $0x4] sm:$0xf]
      %v290 = vld [vmem:[%s263 + $0x8] sm:$0xf]
      %v291 = vld [vmem:[%s263 + $0xc] sm:$0xf]
      %v294 = vunpack.c.l.b16 %v286
      %v295 = vunpack.c.l.b16 %v287
      %v296 = vpack.c.b16 %v295, %v294
      %v301 = vunpack.c.l.b16 %v288
      %v302 = vunpack.c.l.b16 %v289
      %v303 = vunpack.c.l.b16 %v290
      %v304 = vunpack.c.l.b16 %v291
      %v305 = vpack.c.b16 %v302, %v301
      %v306 = vpack.c.b16 %v304, %v303
      %vm309 = vcmask 261120
      %v311 = vsel %vm309, %v296, 0
      %313 = vmatprep.subr.bf16.mxu0 0
      %314 = vmatpush1.bf16.msra.mxu0 %v305
      %315 = vmatprep.subr.bf16.mxu0 0
      %316 = vmatpush1.bf16.msra.mxu0 %v306
      %317 = vmatprep.subr.bf16.mxu0 0
      %318 = vmatpush1.bf16.msra.mxu0 0
      %319 = vmatprep.subr.bf16.mxu0 0
      %320 = vmatpush1.bf16.msra.mxu0 0
      %321 = vmatprep.subr.bf16.mxu0 0
      %322 = vmatpush1.bf16.msra.mxu0 0
      %323 = vmatprep.subr.bf16.mxu0 0
      %324 = vmatpush1.bf16.msra.mxu0 0
      %325 = vmatprep.subr.bf16.mxu0 0
      %326 = vmatpush1.bf16.msra.mxu0 0
      %327 = vmatprep.subr.bf16.mxu0 0
      %328 = vmatpush1.bf16.msra.mxu0 0
      %329 = vmatprep.subr.bf16.mxu0 0
      %330 = vmatpush1.bf16.msra.mxu0 0
      %331 = vmatprep.subr.bf16.mxu0 0
      %332 = vmatpush1.bf16.msra.mxu0 0
      %333 = vmatprep.subr.bf16.mxu0 0
      %334 = vmatpush1.bf16.msra.mxu0 0
      %335 = vmatprep.subr.bf16.mxu0 0
      %336 = vmatpush1.bf16.msra.mxu0 0
      %337 = vmatprep.subr.bf16.mxu0 0
      %338 = vmatpush1.bf16.msra.mxu0 0
      %339 = vmatprep.subr.bf16.mxu0 0
      %340 = vmatpush1.bf16.msra.mxu0 0
      %341 = vmatprep.subr.bf16.mxu0 0
      %342 = vmatpush1.bf16.msra.mxu0 0
      %343 = vmatprep.subr.bf16.mxu0 0
      %344 = vmatpush1.bf16.msra.mxu0 0
      %345 = vmatprep.mubr.bf16.mxu0 0
      %346 = vmatmul.mubr.bf16.gmra.mrb[0].mxu0 %v311
      %v347 = vpop.f32.mrb[0].mxu0
      %v348 = vadd.f32 0.0, %v347
      %v349 = vpop.f32.mrb[0].mxu0
      %v350 = vpop.f32.mrb[0].mxu0
      %v351 = vadd.f32 0.0, %v350
      %v352 = vpop.f32.mrb[0].mxu0
      %353 = vdwg.mxu0
      %v354 = vld [vmem:[%s274] sm:$0xf]
      %v355 = vld [vmem:[%s274 + $0x4] sm:$0xf]
      %v356 = vunpack.c.l.bf16 %v354
      %v357 = vunpack.c.l.bf16 %v355
      %v358 = vadd.f32 %v356, %v348
      %v359 = vadd.f32 %v357, %v351
      %v360 = vld [vmem:[%s266] sm:$0x1]
      %v362 = vlaneseq
      %v363 = vshrl.u32 %v362, 7
      %v364 = vsub.s32 0, %v363
      %v365 = vrot.slane %v360, %v364
      %v367 = vadd.f32 %v358, %v365
      %v368 = vadd.f32 %v359, %v365
      %v369 = vpack.c.bf16 %v368, %v367
      %v371 = vunpack.c.l.b16 %v369
      %v372 = vunpack.c.h.b16 %v369
      %v373 = vpack.c.b16 %v371, %v371
      %v374 = vpack.c.b16 %v372, %v372
      %vm377 = vcmask 257024
      %378 = vst.msk [vmem:[%s283] sm:$0xf] %vm377, %v373
      %379 = vst.msk [vmem:[%s283 + $0x4] sm:$0xf] %vm377, %v374
      %s380 = smul.u32 2, %s19
      %p381 = scmp.lt.s32.totalorder %s380, 3
      %s382 = scalar_select %p381, %s380, 3
      %p383 = scmp.lt.s32.totalorder %s20, 0
      %s384 = scalar_select %p383, %s20, 0
      %s385 = sadd.s32 %s384, %s382
      %s386 = smul.addr %s385, 4
      %s387 = scalar_lea.vmem %s4, %s386
      // Predicated region
      $region37: #{_lambda_.13} parent=35 // pred_check
        %p388 = pneg %p153
      $region38: #{_lambda_.13} parent=35 // pred_check_branch
        %390 = sbr.rel (%p388) target = $region40
      $region39: #{_lambda_.13} parent=35 // pred_region
        %s391 = smul.u32 2, %s19
      $region40: #{_lambda_.13} parent=35 // pred_fallthru
        _
    $region36: #{_lambda_.13} parent=5 // pred_fallthru
      _
    %p392 = scmp.le.s32.totalorder 2, %s10
    // Predicated region
    $region41: #{_lambda_.13} parent=5 // pred_check
      %p393 = pneg %p392
    $region42: #{_lambda_.13} parent=5 // pred_check_branch
      %395 = sbr.rel (%p393) target = $region44
    $region43: #{_lambda_.13} parent=5 // pred_region
      %s396 = ssub.s32 %s10, 2
      // Predicated region
      $region45: #{_lambda_.13} parent=43 // pred_check
        %p397 = pneg %p159
      $region46: #{_lambda_.13} parent=43 // pred_check_branch
        %399 = sbr.rel (%p397) target = $region48
      $region47: #{_lambda_.13} parent=43 // pred_region
        %s400 = smul.u32 2, %s21
        %p401 = scmp.lt.s32.totalorder %s400, 3
        %s402 = scalar_select %p401, %s400, 3
        %p403 = scmp.lt.s32.totalorder %s22, 0
        %s404 = scalar_select %p403, %s22, 0
        %s405 = sadd.s32 %s404, %s402
        %s406 = smul.addr %s405, 4
        %s407 = scalar_lea.vmem %s4, %s406
      $region48: #{_lambda_.13} parent=43 // pred_fallthru
        _
    $region44: #{_lambda_.13} parent=5 // pred_fallthru
      _
  $region6: #{_lambda_.13} parent=0 // loop_footer
    %s14 = sadd.s32 1, %s10
  $region7: #{_lambda_.13} parent=0 // loop_footer_branch
    %9 = sbr.rel target = $region3
  $region8: #{_lambda_.13} parent=0 // loop_exit
    _

// kernel: _lambda_.14
$region0: #{_lambda_.14}
  #allocation0 [shape = 'u32[]', space=smem, size = 0x4, offset = 0x4, fixed_abs, tag = 'smem constant byte address 0x4 - core index']
  #allocation1 [shape = 'u32[144,128]{1,0:T(1,128)}', space=vmem, size = 0x12000, scoped, tag = 'internal scratch']
  #allocation2 [shape = 'bf16[16,32]{1,0:T(16,128)(2,1)}', space=vmem, size = 0x1000, scoped, tag = 'scratch operand']
  %s0 = inlined_call_operand.vmem [shape: bf16[32,32], index: 0, kind: input, shape index: {}]
  %s1 = inlined_call_operand.vmem [shape: f32[1,32], index: 1, kind: input, shape index: {}]
  %s2 = inlined_call_operand.vmem [shape: f32[1,32], index: 2, kind: input, shape index: {}]
  %s3 = inlined_call_operand.vmem [shape: bf16[32,128], index: 3, kind: input, shape index: {}]
  %s4 = inlined_call_operand.vmem [shape: f32[1,128], index: 4, kind: input, shape index: {}]
  %s5 = inlined_call_operand.vmem [shape: bf16[32,128], index: 5, kind: output, shape index: {}]
  %s6 = sld [smem:[#allocation0]]
  $region57: #{_lambda_.14} parent=0
    _
  %s8 = ssub.s32 1, %s6
  %s9 = scalar_select 0, %s8, %s6
  loop: start=0, step=1, limit=4
  $region2: #{_lambda_.14} parent=0 // loop_pre_header
    _
  $region3: #{_lambda_.14} parent=0 // loop_header
    %s11 = sphi 0, %s15
    %p12 = scmp.ge.s32.totalorder %s11, 4
    %s18 = sphi 0, %s30
    %s19 = sphi 0, %s26
    %s20 = sphi 0, %s18
    %s21 = sphi 0, %s19
    %s22 = sphi 0, %s20
    %s23 = sphi 0, %s21
    %s33 = sphi 0, %s35
    %s36 = sphi 0, %s33
    %s37 = sphi 0, %s36
    %s53 = sphi 0, %s37
    %s57 = sphi 0, %s57
    %s59 = sphi 0, %s57
    %s60 = sphi 0, %s59
    %s74 = sphi 0, %s60
    %s78 = sphi 0, %s78
    %s80 = sphi 0, %s78
    %s81 = sphi 0, %s80
    %s95 = sphi 0, %s81
    %s101 = sphi 0, %s103
    %s104 = sphi 0, %s101
    %s105 = sphi 0, %s104
    %s121 = sphi 0, %s105
    %s127 = sphi 0, %s129
    %s130 = sphi 0, %s127
    %s131 = sphi 0, %s130
    %s147 = sphi 0, %s131
    %s155 = sphi 0, %s157
    %s158 = sphi 0, %s155
    %s159 = sphi 0, %s158
    %s175 = sphi 0, %s159
  $region4: #{_lambda_.14} parent=0 // loop_header_branch
    %14 = sbr.rel (%p12) target = $region8
  $region5: #{_lambda_.14} parent=0 // loop_body
    %s16 = ssub.s32 %s11, 1
    %s17 = ssub.s32 %s11, 2
    %s24 = sadd.s32 1, %s19
    %p25 = scmp.ge.s32.totalorder %s24, 1
    %s26 = scalar_select %p25, 0, %s24
    %s27 = sadd.s32 1, %s18
    %s28 = scalar_select %p25, %s27, %s18
    %p29 = scmp.ge.s32.totalorder %s28, 2
    %s30 = scalar_select %p29, 0, %s28
    %s31 = ssub.s32 %s18, %s30
    %p32 = scmp.eq.s32.totalorder %s31, 0
    %s34 = sadd.s32 %s33, 1
    %s35 = scalar_select %p32, %s33, %s34
    %p38 = pneg %p32
    %p39 = scmp.eq.s32.totalorder %s11, 1
    %p40 = por %p38, %p39
    %p41 = scmp.ne.s32.totalorder %s33, %s36
    %p42 = scmp.eq.s32.totalorder %s11, 0
    %p43 = por %p41, %p42
    %p44 = scmp.ne.s32.totalorder %s33, %s36
    %p45 = scmp.eq.s32.totalorder %s16, 1
    %p46 = por %p44, %p45
    %p47 = scmp.ne.s32.totalorder %s36, %s37
    %p48 = scmp.eq.s32.totalorder %s16, 0
    %p49 = por %p47, %p48
    %p50 = scmp.ne.s32.totalorder %s36, %s37
    %p51 = scmp.eq.s32.totalorder %s17, 1
    %p52 = por %p50, %p51
    %p54 = scmp.ne.s32.totalorder %s37, %s53
    %p55 = scmp.eq.s32.totalorder %s17, 0
    %p56 = por %p54, %p55
    %s58 = sadd.s32 %s57, 1
    %p61 = scmp.eq.s32.totalorder %s11, 1
    %p62 = scmp.ne.s32.totalorder %s57, %s59
    %p63 = scmp.eq.s32.totalorder %s11, 0
    %p64 = por %p62, %p63
    %p65 = scmp.ne.s32.totalorder %s57, %s59
    %p66 = scmp.eq.s32.totalorder %s16, 1
    %p67 = por %p65, %p66
    %p68 = scmp.ne.s32.totalorder %s59, %s60
    %p69 = scmp.eq.s32.totalorder %s16, 0
    %p70 = por %p68, %p69
    %p71 = scmp.ne.s32.totalorder %s59, %s60
    %p72 = scmp.eq.s32.totalorder %s17, 1
    %p73 = por %p71, %p72
    %p75 = scmp.ne.s32.totalorder %s60, %s74
    %p76 = scmp.eq.s32.totalorder %s17, 0
    %p77 = por %p75, %p76
    %s79 = sadd.s32 %s78, 1
    %p82 = scmp.eq.s32.totalorder %s11, 1
    %p83 = scmp.ne.s32.totalorder %s78, %s80
    %p84 = scmp.eq.s32.totalorder %s11, 0
    %p85 = por %p83, %p84
    %p86 = scmp.ne.s32.totalorder %s78, %s80
    %p87 = scmp.eq.s32.totalorder %s16, 1
    %p88 = por %p86, %p87
    %p89 = scmp.ne.s32.totalorder %s80, %s81
    %p90 = scmp.eq.s32.totalorder %s16, 0
    %p91 = por %p89, %p90
    %p92 = scmp.ne.s32.totalorder %s80, %s81
    %p93 = scmp.eq.s32.totalorder %s17, 1
    %p94 = por %p92, %p93
    %p96 = scmp.ne.s32.totalorder %s81, %s95
    %p97 = scmp.eq.s32.totalorder %s17, 0
    %p98 = por %p96, %p97
    %s99 = ssub.s32 %s19, %s26
    %p100 = scmp.eq.s32.totalorder %s99, 0
    %s102 = sadd.s32 %s101, 1
    %s103 = scalar_select %p100, %s101, %s102
    %p106 = pneg %p100
    %p107 = scmp.eq.s32.totalorder %s11, 1
    %p108 = por %p106, %p107
    %p109 = scmp.ne.s32.totalorder %s101, %s104
    %p110 = scmp.eq.s32.totalorder %s11, 0
    %p111 = por %p109, %p110
    %p112 = scmp.ne.s32.totalorder %s101, %s104
    %p113 = scmp.eq.s32.totalorder %s16, 1
    %p114 = por %p112, %p113
    %p115 = scmp.ne.s32.totalorder %s104, %s105
    %p116 = scmp.eq.s32.totalorder %s16, 0
    %p117 = por %p115, %p116
    %p118 = scmp.ne.s32.totalorder %s104, %s105
    %p119 = scmp.eq.s32.totalorder %s17, 1
    %p120 = por %p118, %p119
    %p122 = scmp.ne.s32.totalorder %s105, %s121
    %p123 = scmp.eq.s32.totalorder %s17, 0
    %p124 = por %p122, %p123
    %s125 = ssub.s32 %s19, %s26
    %p126 = scmp.eq.s32.totalorder %s125, 0
    %s128 = sadd.s32 %s127, 1
    %s129 = scalar_select %p126, %s127, %s128
    %p132 = pneg %p126
    %p133 = scmp.eq.s32.totalorder %s11, 1
    %p134 = por %p132, %p133
    %p135 = scmp.ne.s32.totalorder %s127, %s130
    %p136 = scmp.eq.s32.totalorder %s11, 0
    %p137 = por %p135, %p136
    %p138 = scmp.ne.s32.totalorder %s127, %s130
    %p139 = scmp.eq.s32.totalorder %s16, 1
    %p140 = por %p138, %p139
    %p141 = scmp.ne.s32.totalorder %s130, %s131
    %p142 = scmp.eq.s32.totalorder %s16, 0
    %p143 = por %p141, %p142
    %p144 = scmp.ne.s32.totalorder %s130, %s131
    %p145 = scmp.eq.s32.totalorder %s17, 1
    %p146 = por %p144, %p145
    %p148 = scmp.ne.s32.totalorder %s131, %s147
    %p149 = scmp.eq.s32.totalorder %s17, 0
    %p150 = por %p148, %p149
    %s151 = ssub.s32 %s18, %s30
    %s152 = ssub.s32 %s19, %s26
    %s153 = sor.u32 %s151, %s152
    %p154 = scmp.eq.s32.totalorder %s153, 0
    %s156 = sadd.s32 %s155, 1
    %s157 = scalar_select %p154, %s155, %s156
    %p160 = pneg %p154
    %p161 = scmp.eq.s32.totalorder %s11, 1
    %p162 = por %p160, %p161
    %p163 = scmp.ne.s32.totalorder %s155, %s158
    %p164 = scmp.eq.s32.totalorder %s11, 0
    %p165 = por %p163, %p164
    %p166 = scmp.ne.s32.totalorder %s155, %s158
    %p167 = scmp.eq.s32.totalorder %s16, 1
    %p168 = por %p166, %p167
    %p169 = scmp.ne.s32.totalorder %s158, %s159
    %p170 = scmp.eq.s32.totalorder %s16, 0
    %p171 = por %p169, %p170
    %p172 = scmp.ne.s32.totalorder %s158, %s159
    %p173 = scmp.eq.s32.totalorder %s17, 1
    %p174 = por %p172, %p173
    %p176 = scmp.ne.s32.totalorder %s159, %s175
    %p177 = scmp.eq.s32.totalorder %s17, 0
    %p178 = por %p176, %p177
    %p179 = scmp.le.s32.totalorder 1, %s11
    %p180 = scmp.lt.s32.totalorder %s11, 3
    %p181 = pnand %p179, %p180
    %p182 = pneg %p181
    // Predicated region
    $region9: #{_lambda_.14} parent=5 // pred_check
      _
    $region10: #{_lambda_.14} parent=5 // pred_check_branch
      %184 = sbr.rel (%p181) target = $region12
    $region11: #{_lambda_.14} parent=5 // pred_region
      %s185 = ssub.s32 %s11, 1
      // Predicated region
      $region13: #{_lambda_.14} parent=11 // pred_check
        %p186 = pneg %p70
      $region14: #{_lambda_.14} parent=11 // pred_check_branch
        %188 = sbr.rel (%p186) target = $region16
      $region15: #{_lambda_.14} parent=11 // pred_region
        _
      $region16: #{_lambda_.14} parent=11 // pred_fallthru
        _
      // Predicated region
      $region17: #{_lambda_.14} parent=11 // pred_check
        %p189 = pneg %p91
      $region18: #{_lambda_.14} parent=11 // pred_check_branch
        %191 = sbr.rel (%p189) target = $region20
      $region19: #{_lambda_.14} parent=11 // pred_region
        _
      $region20: #{_lambda_.14} parent=11 // pred_fallthru
        _
      // Predicated region
      $region21: #{_lambda_.14} parent=11 // pred_check
        %p192 = pneg %p117
      $region22: #{_lambda_.14} parent=11 // pred_check_branch
        %194 = sbr.rel (%p192) target = $region24
      $region23: #{_lambda_.14} parent=11 // pred_region
        %p195 = scmp.lt.s32.totalorder %s21, 0
        %s196 = scalar_select %p195, %s21, 0
        %s197 = smul.addr %s196, 4
        %s198 = scalar_lea.vmem %s3, %s197
      $region24: #{_lambda_.14} parent=11 // pred_fallthru
        _
      // Predicated region
      $region25: #{_lambda_.14} parent=11 // pred_check
        %p199 = pneg %p143
      $region26: #{_lambda_.14} parent=11 // pred_check_branch
        %201 = sbr.rel (%p199) target = $region28
      $region27: #{_lambda_.14} parent=11 // pred_region
        %p202 = scmp.lt.s32.totalorder %s21, 0
        %s203 = scalar_select %p202, %s21, 0
        %s204 = scalar_lea.vmem %s4, %s203
      $region28: #{_lambda_.14} parent=11 // pred_fallthru
        _
    $region12: #{_lambda_.14} parent=5 // pred_fallthru
      _
    %p205 = scmp.lt.s32.totalorder %s11, 2
    // Predicated region
    $region29: #{_lambda_.14} parent=5 // pred_check
      %p206 = pneg %p205
    $region30: #{_lambda_.14} parent=5 // pred_check_branch
      %208 = sbr.rel (%p206) target = $region32
    $region31: #{_lambda_.14} parent=5 // pred_region
      // Predicated region
      $region33: #{_lambda_.14} parent=31 // pred_check
        %p209 = pneg %p43
      $region34: #{_lambda_.14} parent=31 // pred_check_branch
        %211 = sbr.rel (%p209) target = $region36
      $region35: #{_lambda_.14} parent=31 // pred_region
        %s212 = smul.u32 2, %s18
        %p213 = scmp.lt.s32.totalorder %s212, 3
        %s214 = scalar_select %p213, %s212, 3
        %s215 = smul.addr %s214, 4
        %s216 = scalar_lea.vmem %s0, %s215
        %s217 = smul.u32 2, %s18
      $region36: #{_lambda_.14} parent=31 // pred_fallthru
        _
    $region32: #{_lambda_.14} parent=5 // pred_fallthru
      _
    %p218 = scmp.le.s32.totalorder 1, %s11
    %p219 = scmp.lt.s32.totalorder %s11, 3
    %p220 = pnand %p218, %p219
    %p221 = pneg %p220
    // Predicated region
    $region37: #{_lambda_.14} parent=5 // pred_check
      _
    $region38: #{_lambda_.14} parent=5 // pred_check_branch
      %223 = sbr.rel (%p220) target = $region40
    $region39: #{_lambda_.14} parent=5 // pred_region
      %s224 = ssub.s32 %s11, 1
      %s225 = smul.u32 2, %s20
      %p226 = scmp.lt.s32.totalorder %s225, 3
      %s227 = scalar_select %p226, %s225, 3
      %s228 = smul.addr %s227, 4
      %s229 = scalar_lea.vmem %s0, %s228
      %p230 = pneg %p49
      %p231 = pneg %p46
      %p232 = pneg %p70
      %p233 = pneg %p67
      %p234 = pneg %p91
      %p235 = pneg %p88
      %p236 = scmp.lt.s32.totalorder %s21, 0
      %s237 = scalar_select %p236, %s21, 0
      %s238 = smul.addr %s237, 4
      %s239 = scalar_lea.vmem %s3, %s238
      %p240 = pneg %p117
      %p241 = pneg %p114
      %p242 = scmp.lt.s32.totalorder %s21, 0
      %s243 = scalar_select %p242, %s21, 0
      %s244 = scalar_lea.vmem %s4, %s243
      %p245 = pneg %p143
      %p246 = pneg %p140
      %p247 = pneg %p171
      %p248 = pneg %p168
      %s249 = smul.u32 2, %s20
      %p250 = scmp.lt.s32.totalorder %s249, 3
      %s251 = scalar_select %p250, %s249, 3
      %p252 = scmp.lt.s32.totalorder %s21, 0
      %s253 = scalar_select %p252, %s21, 0
      %s254 = sadd.s32 %s253, %s251
      %s255 = smul.addr %s254, 4
      %s256 = scalar_lea.vmem %s5, %s255
      %s257 = smul.u32 2, %s20
      %p258 = scmp.lt.s32.totalorder %s257, 3
      %s259 = scalar_select %p258, %s257, 3
      %s260 = smul.addr %s259, 4
      %s261 = scalar_lea.vmem %s0, %s260
      %s262 = smul.u32 2, %s20
      %p263 = scmp.lt.s32.totalorder %s21, 0
      %s264 = scalar_select %p263, %s21, 0
      %s265 = smul.addr %s264, 4
      %s266 = scalar_lea.vmem %s3, %s265
      %p267 = scmp.lt.s32.totalorder %s21, 0
      %s268 = scalar_select %p267, %s21, 0
      %s269 = scalar_lea.vmem %s4, %s268
      %s270 = smul.u32 2, %s20
      %p271 = scmp.lt.s32.totalorder %s270, 3
      %s272 = scalar_select %p271, %s270, 3
      %p273 = scmp.lt.s32.totalorder %s21, 0
      %s274 = scalar_select %p273, %s21, 0
      %s275 = sadd.s32 %s274, %s272
      %s276 = smul.addr %s275, 4
      %s277 = scalar_lea.vmem %s5, %s276
      %s278 = smul.u32 2, %s20
      %p280 = scmp.eq.s32.totalorder %s21, 0
      // Predicated region
      $region41: #{_lambda_.14} parent=39 // pred_check
        %p281 = pneg %p280
      $region42: #{_lambda_.14} parent=39 // pred_check_branch
        %283 = sbr.rel (%p281) target = $region44
      $region43: #{_lambda_.14} parent=39 // pred_region
        %v284 = vld [vmem:[%s261] sm:$0xf]
        %v285 = vld [vmem:[%s261 + $0x4] sm:$0xf]
        %v286 = vunpack.c.l.bf16 %v284
        %v287 = vunpack.c.l.bf16 %v285
        %vm288 = vcmask 261120
        %v289 = vsel %vm288, %v286, 0.0
        %290 = vadd.xlane.f32.xlu0 %v289
        %v291 = vpop.xlane.xlu0 %290
        %v292 = vsel %vm288, %v287, 0.0
        %293 = vadd.xlane.f32.xlu0 %v292
        %v294 = vpop.xlane.xlu0 %293
        %v295 = vrcp.pop 32.0
        %v296 = vmul.f32 %v291, %v295
        %v297 = vmul.f32 %v294, %v295
        %v298 = vsub.f32 %v286, %v296
        %v299 = vsub.f32 %v287, %v297
        %v300 = vmul.f32 %v298, %v298
        %v301 = vmul.f32 %v299, %v299
        %v302 = vsel %vm288, %v300, 0.0
        %303 = vadd.xlane.f32.xlu0 %v302
        %v304 = vpop.xlane.xlu0 %303
        %v305 = vsel %vm288, %v301, 0.0
        %306 = vadd.xlane.f32.xlu0 %v305
        %v307 = vpop.xlane.xlu0 %306
        %v308 = vmul.f32 %v304, %v295
        %v309 = vmul.f32 %v307, %v295
        %v310 = vadd.f32 %v308, 1e-05
        %v311 = vadd.f32 %v309, 1e-05
        %v312 = vrsqrt.pop %v310
        %v313 = vrsqrt.pop %v311
        %v314 = vmul.f32 %v298, %v312
        %v315 = vmul.f32 %v299, %v313
        %v316 = vld [vmem:[%s1] sm:$0x1]
        %v318 = vlaneseq
        %v319 = vshrl.u32 %v318, 7
        %v320 = vsub.s32 0, %v319
        %v321 = vrot.slane %v316, %v320
        %v323 = vmul.f32 %v314, %v321
        %v324 = vmul.f32 %v315, %v321
        %v325 = vld [vmem:[%s2] sm:$0x1]
        %v327 = vlaneseq
        %v328 = vshrl.u32 %v327, 7
        %v329 = vsub.s32 0, %v328
        %v330 = vrot.slane %v325, %v329
        %v332 = vadd.f32 %v323, %v330
        %v333 = vadd.f32 %v324, %v330
        %v334 = vpack.c.bf16 %v333, %v332
        %335 = vst.msk [vmem:[#allocation2] sm:$0xff] %vm288, %v334
      $region44: #{_lambda_.14} parent=39 // pred_fallthru
        _
      %v336 = vld [vmem:[#allocation2] sm:$0xff]
      %v337 = vld [vmem:[%s266] sm:$0xf]
      %v338 = vld [vmem:[%s266 + $0x4] sm:$0xf]
      %v339 = vld [vmem:[%s266 + $0x8] sm:$0xf]
      %v340 = vld [vmem:[%s266 + $0xc] sm:$0xf]
      %v341 = vld [vmem:[%s269] sm:$0x1]
      %v343 = vlaneseq
      %v344 = vshrl.u32 %v343, 7
      %v345 = vsub.s32 0, %v344
      %v346 = vrot.slane %v341, %v345
      %v352 = vunpack.c.l.b16 %v337
      %v353 = vunpack.c.l.b16 %v338
      %v354 = vunpack.c.l.b16 %v339
      %v355 = vunpack.c.l.b16 %v340
      %v356 = vpack.c.b16 %v353, %v352
      %v357 = vpack.c.b16 %v355, %v354
      %vm360 = vcmask 261120
      %v362 = vsel %vm360, %v336, 0
      %364 = vmatprep.subr.bf16.mxu0 0
      %365 = vmatpush1.bf16.msra.mxu0 %v356
      %366 = vmatprep.subr.bf16.mxu0 0
      %367 = vmatpush1.bf16.msra.mxu0 %v357
      %368 = vmatprep.subr.bf16.mxu0 0
      %369 = vmatpush1.bf16.msra.mxu0 0
      %370 = vmatprep.subr.bf16.mxu0 0
      %371 = vmatpush1.bf16.msra.mxu0 0
      %372 = vmatprep.subr.bf16.mxu0 0
      %373 = vmatpush1.bf16.msra.mxu0 0
      %374 = vmatprep.subr.bf16.mxu0 0
      %375 = vmatpush1.bf16.msra.mxu0 0
      %376 = vmatprep.subr.bf16.mxu0 0
      %377 = vmatpush1.bf16.msra.mxu0 0
      %378 = vmatprep.subr.bf16.mxu0 0
      %379 = vmatpush1.bf16.msra.mxu0 0
      %380 = vmatprep.subr.bf16.mxu0 0
      %381 = vmatpush1.bf16.msra.mxu0 0
      %382 = vmatprep.subr.bf16.mxu0 0
      %383 = vmatpush1.bf16.msra.mxu0 0
      %384 = vmatprep.subr.bf16.mxu0 0
      %385 = vmatpush1.bf16.msra.mxu0 0
      %386 = vmatprep.subr.bf16.mxu0 0
      %387 = vmatpush1.bf16.msra.mxu0 0
      %388 = vmatprep.subr.bf16.mxu0 0
      %389 = vmatpush1.bf16.msra.mxu0 0
      %390 = vmatprep.subr.bf16.mxu0 0
      %391 = vmatpush1.bf16.msra.mxu0 0
      %392 = vmatprep.subr.bf16.mxu0 0
      %393 = vmatpush1.bf16.msra.mxu0 0
      %394 = vmatprep.subr.bf16.mxu0 0
      %395 = vmatpush1.bf16.msra.mxu0 0
      %396 = vmatprep.mubr.bf16.mxu0 0
      %397 = vmatmul.mubr.bf16.gmra.mrb[0].mxu0 %v362
      %v398 = vpop.f32.mrb[0].mxu0
      %v399 = vadd.f32 %v346, %v398
      %v400 = vpop.f32.mrb[0].mxu0
      %v401 = vpop.f32.mrb[0].mxu0
      %v402 = vadd.f32 %v346, %v401
      %v403 = vpop.f32.mrb[0].mxu0
      %404 = vdwg.mxu0
      %v405 = vmul.f32 %v399, 0.5
      %v406 = vmul.f32 %v402, 0.5
      %v407 = vmul.f32 %v399, 0.70710677
      %v408 = vmul.f32 %v402, 0.70710677
      %v409 = verf.f32.pop %v407
      %v410 = verf.f32.pop %v408
      %v411 = vadd.f32 %v409, 1.0
      %v412 = vadd.f32 %v410, 1.0
      %v413 = vmul.f32 %v405, %v411
      %v414 = vmul.f32 %v406, %v412
      %v415 = vpack.c.bf16 %v414, %v413
      %v417 = vunpack.c.l.b16 %v415
      %v418 = vunpack.c.h.b16 %v415
      %v419 = vpack.c.b16 %v417, %v417
      %v420 = vpack.c.b16 %v418, %v418
      %423 = vst [vmem:[%s277] sm:$0xf] %v419
      %424 = vst [vmem:[%s277 + $0x4] sm:$0xf] %v420
      %s425 = smul.u32 2, %s20
      %p426 = scmp.lt.s32.totalorder %s425, 3
      %s427 = scalar_select %p426, %s425, 3
      %p428 = scmp.lt.s32.totalorder %s21, 0
      %s429 = scalar_select %p428, %s21, 0
      %s430 = sadd.s32 %s429, %s427
      %s431 = smul.addr %s430, 4
      %s432 = scalar_lea.vmem %s5, %s431
      // Predicated region
      $region45: #{_lambda_.14} parent=39 // pred_check
        %p433 = pneg %p168
      $region46: #{_lambda_.14} parent=39 // pred_check_branch
        %435 = sbr.rel (%p433) target = $region48
      $region47: #{_lambda_.14} parent=39 // pred_region
        %s436 = smul.u32 2, %s20
      $region48: #{_lambda_.14} parent=39 // pred_fallthru
        _
    $region40: #{_lambda_.14} parent=5 // pred_fallthru
      _
    %p437 = scmp.le.s32.totalorder 2, %s11
    // Predicated region
    $region49: #{_lambda_.14} parent=5 // pred_check
      %p438 = pneg %p437
    $region50: #{_lambda_.14} parent=5 // pred_check_branch
      %440 = sbr.rel (%p438) target = $region52
    $region51: #{_lambda_.14} parent=5 // pred_region
      %s441 = ssub.s32 %s11, 2
      // Predicated region
      $region53: #{_lambda_.14} parent=51 // pred_check
        %p442 = pneg %p174
      $region54: #{_lambda_.14} parent=51 // pred_check_branch
        %444 = sbr.rel (%p442) target = $region56
      $region55: #{_lambda_.14} parent=51 // pred_region
        %s445 = smul.u32 2, %s22
        %p446 = scmp.lt.s32.totalorder %s445, 3
        %s447 = scalar_select %p446, %s445, 3
        %p448 = scmp.lt.s32.totalorder %s23, 0
        %s449 = scalar_select %p448, %s23, 0
        %s450 = sadd.s32 %s449, %s447
        %s451 = smul.addr %s450, 4
        %s452 = scalar_lea.vmem %s5, %s451
      $region56: #{_lambda_.14} parent=51 // pred_fallthru
        _
    $region52: #{_lambda_.14} parent=5 // pred_fallthru
      _
  $region6: #{_lambda_.14} parent=0 // loop_footer
    %s15 = sadd.s32 1, %s11
  $region7: #{_lambda_.14} parent=0 // loop_footer_branch
    %10 = sbr.rel target = $region3
  $region8: #{_lambda_.14} parent=0 // loop_exit
    _

// kernel: _lambda_.15
$region0: #{_lambda_.15}
  #allocation0 [shape = 'u32[]', space=smem, size = 0x4, offset = 0x4, fixed_abs, tag = 'smem constant byte address 0x4 - core index']
  #allocation1 [shape = 'u32[144,128]{1,0:T(1,128)}', space=vmem, size = 0x12000, scoped, tag = 'internal scratch']
  %s0 = inlined_call_operand.vmem [shape: bf16[32,128], index: 0, kind: input, shape index: {}]
  %s1 = inlined_call_operand.vmem [shape: bf16[128,32], index: 1, kind: input, shape index: {}]
  %s2 = inlined_call_operand.vmem [shape: f32[1,32], index: 2, kind: input, shape index: {}]
  %s3 = inlined_call_operand.vmem [shape: bf16[32,32], index: 3, kind: input, shape index: {}]
  %s4 = inlined_call_operand.vmem [shape: bf16[32,32], index: 4, kind: output, shape index: {}]
  %s5 = sld [smem:[#allocation0]]
  $region49: #{_lambda_.15} parent=0
    _
  %s7 = ssub.s32 1, %s5
  %s8 = scalar_select 0, %s7, %s5
  loop: start=0, step=1, limit=4
  $region2: #{_lambda_.15} parent=0 // loop_pre_header
    _
  $region3: #{_lambda_.15} parent=0 // loop_header
    %s10 = sphi 0, %s14
    %p11 = scmp.ge.s32.totalorder %s10, 4
    %s17 = sphi 0, %s29
    %s18 = sphi 0, %s25
    %s19 = sphi 0, %s17
    %s20 = sphi 0, %s18
    %s21 = sphi 0, %s19
    %s22 = sphi 0, %s20
    %s32 = sphi 0, %s34
    %s35 = sphi 0, %s32
    %s36 = sphi 0, %s35
    %s52 = sphi 0, %s36
    %s58 = sphi 0, %s60
    %s61 = sphi 0, %s58
    %s62 = sphi 0, %s61
    %s78 = sphi 0, %s62
    %s84 = sphi 0, %s86
    %s87 = sphi 0, %s84
    %s88 = sphi 0, %s87
    %s104 = sphi 0, %s88
    %s112 = sphi 0, %s114
    %s115 = sphi 0, %s112
    %s116 = sphi 0, %s115
    %s132 = sphi 0, %s116
    %s140 = sphi 0, %s142
    %s143 = sphi 0, %s140
    %s144 = sphi 0, %s143
    %s160 = sphi 0, %s144
  $region4: #{_lambda_.15} parent=0 // loop_header_branch
    %13 = sbr.rel (%p11) target = $region8
  $region5: #{_lambda_.15} parent=0 // loop_body
    %s15 = ssub.s32 %s10, 1
    %s16 = ssub.s32 %s10, 2
    %s23 = sadd.s32 1, %s18
    %p24 = scmp.ge.s32.totalorder %s23, 1
    %s25 = scalar_select %p24, 0, %s23
    %s26 = sadd.s32 1, %s17
    %s27 = scalar_select %p24, %s26, %s17
    %p28 = scmp.ge.s32.totalorder %s27, 2
    %s29 = scalar_select %p28, 0, %s27
    %s30 = ssub.s32 %s17, %s29
    %p31 = scmp.eq.s32.totalorder %s30, 0
    %s33 = sadd.s32 %s32, 1
    %s34 = scalar_select %p31, %s32, %s33
    %p37 = pneg %p31
    %p38 = scmp.eq.s32.totalorder %s10, 1
    %p39 = por %p37, %p38
    %p40 = scmp.ne.s32.totalorder %s32, %s35
    %p41 = scmp.eq.s32.totalorder %s10, 0
    %p42 = por %p40, %p41
    %p43 = scmp.ne.s32.totalorder %s32, %s35
    %p44 = scmp.eq.s32.totalorder %s15, 1
    %p45 = por %p43, %p44
    %p46 = scmp.ne.s32.totalorder %s35, %s36
    %p47 = scmp.eq.s32.totalorder %s15, 0
    %p48 = por %p46, %p47
    %p49 = scmp.ne.s32.totalorder %s35, %s36
    %p50 = scmp.eq.s32.totalorder %s16, 1
    %p51 = por %p49, %p50
    %p53 = scmp.ne.s32.totalorder %s36, %s52
    %p54 = scmp.eq.s32.totalorder %s16, 0
    %p55 = por %p53, %p54
    %s56 = ssub.s32 %s18, %s25
    %p57 = scmp.eq.s32.totalorder %s56, 0
    %s59 = sadd.s32 %s58, 1
    %s60 = scalar_select %p57, %s58, %s59
    %p63 = pneg %p57
    %p64 = scmp.eq.s32.totalorder %s10, 1
    %p65 = por %p63, %p64
    %p66 = scmp.ne.s32.totalorder %s58, %s61
    %p67 = scmp.eq.s32.totalorder %s10, 0
    %p68 = por %p66, %p67
    %p69 = scmp.ne.s32.totalorder %s58, %s61
    %p70 = scmp.eq.s32.totalorder %s15, 1
    %p71 = por %p69, %p70
    %p72 = scmp.ne.s32.totalorder %s61, %s62
    %p73 = scmp.eq.s32.totalorder %s15, 0
    %p74 = por %p72, %p73
    %p75 = scmp.ne.s32.totalorder %s61, %s62
    %p76 = scmp.eq.s32.totalorder %s16, 1
    %p77 = por %p75, %p76
    %p79 = scmp.ne.s32.totalorder %s62, %s78
    %p80 = scmp.eq.s32.totalorder %s16, 0
    %p81 = por %p79, %p80
    %s82 = ssub.s32 %s18, %s25
    %p83 = scmp.eq.s32.totalorder %s82, 0
    %s85 = sadd.s32 %s84, 1
    %s86 = scalar_select %p83, %s84, %s85
    %p89 = pneg %p83
    %p90 = scmp.eq.s32.totalorder %s10, 1
    %p91 = por %p89, %p90
    %p92 = scmp.ne.s32.totalorder %s84, %s87
    %p93 = scmp.eq.s32.totalorder %s10, 0
    %p94 = por %p92, %p93
    %p95 = scmp.ne.s32.totalorder %s84, %s87
    %p96 = scmp.eq.s32.totalorder %s15, 1
    %p97 = por %p95, %p96
    %p98 = scmp.ne.s32.totalorder %s87, %s88
    %p99 = scmp.eq.s32.totalorder %s15, 0
    %p100 = por %p98, %p99
    %p101 = scmp.ne.s32.totalorder %s87, %s88
    %p102 = scmp.eq.s32.totalorder %s16, 1
    %p103 = por %p101, %p102
    %p105 = scmp.ne.s32.totalorder %s88, %s104
    %p106 = scmp.eq.s32.totalorder %s16, 0
    %p107 = por %p105, %p106
    %s108 = ssub.s32 %s17, %s29
    %s109 = ssub.s32 %s18, %s25
    %s110 = sor.u32 %s108, %s109
    %p111 = scmp.eq.s32.totalorder %s110, 0
    %s113 = sadd.s32 %s112, 1
    %s114 = scalar_select %p111, %s112, %s113
    %p117 = pneg %p111
    %p118 = scmp.eq.s32.totalorder %s10, 1
    %p119 = por %p117, %p118
    %p120 = scmp.ne.s32.totalorder %s112, %s115
    %p121 = scmp.eq.s32.totalorder %s10, 0
    %p122 = por %p120, %p121
    %p123 = scmp.ne.s32.totalorder %s112, %s115
    %p124 = scmp.eq.s32.totalorder %s15, 1
    %p125 = por %p123, %p124
    %p126 = scmp.ne.s32.totalorder %s115, %s116
    %p127 = scmp.eq.s32.totalorder %s15, 0
    %p128 = por %p126, %p127
    %p129 = scmp.ne.s32.totalorder %s115, %s116
    %p130 = scmp.eq.s32.totalorder %s16, 1
    %p131 = por %p129, %p130
    %p133 = scmp.ne.s32.totalorder %s116, %s132
    %p134 = scmp.eq.s32.totalorder %s16, 0
    %p135 = por %p133, %p134
    %s136 = ssub.s32 %s17, %s29
    %s137 = ssub.s32 %s18, %s25
    %s138 = sor.u32 %s136, %s137
    %p139 = scmp.eq.s32.totalorder %s138, 0
    %s141 = sadd.s32 %s140, 1
    %s142 = scalar_select %p139, %s140, %s141
    %p145 = pneg %p139
    %p146 = scmp.eq.s32.totalorder %s10, 1
    %p147 = por %p145, %p146
    %p148 = scmp.ne.s32.totalorder %s140, %s143
    %p149 = scmp.eq.s32.totalorder %s10, 0
    %p150 = por %p148, %p149
    %p151 = scmp.ne.s32.totalorder %s140, %s143
    %p152 = scmp.eq.s32.totalorder %s15, 1
    %p153 = por %p151, %p152
    %p154 = scmp.ne.s32.totalorder %s143, %s144
    %p155 = scmp.eq.s32.totalorder %s15, 0
    %p156 = por %p154, %p155
    %p157 = scmp.ne.s32.totalorder %s143, %s144
    %p158 = scmp.eq.s32.totalorder %s16, 1
    %p159 = por %p157, %p158
    %p161 = scmp.ne.s32.totalorder %s144, %s160
    %p162 = scmp.eq.s32.totalorder %s16, 0
    %p163 = por %p161, %p162
    %p164 = scmp.le.s32.totalorder 1, %s10
    %p165 = scmp.lt.s32.totalorder %s10, 3
    %p166 = pnand %p164, %p165
    %p167 = pneg %p166
    // Predicated region
    $region9: #{_lambda_.15} parent=5 // pred_check
      _
    $region10: #{_lambda_.15} parent=5 // pred_check_branch
      %169 = sbr.rel (%p166) target = $region12
    $region11: #{_lambda_.15} parent=5 // pred_region
      %s170 = ssub.s32 %s10, 1
      // Predicated region
      $region13: #{_lambda_.15} parent=11 // pred_check
        %p171 = pneg %p74
      $region14: #{_lambda_.15} parent=11 // pred_check_branch
        %173 = sbr.rel (%p171) target = $region16
      $region15: #{_lambda_.15} parent=11 // pred_region
        %p174 = scmp.lt.s32.totalorder %s20, 0
        %s175 = scalar_select %p174, %s20, 0
        %s176 = smul.addr %s175, 4
        %s177 = scalar_lea.vmem %s1, %s176
      $region16: #{_lambda_.15} parent=11 // pred_fallthru
        _
      // Predicated region
      $region17: #{_lambda_.15} parent=11 // pred_check
        %p178 = pneg %p100
      $region18: #{_lambda_.15} parent=11 // pred_check_branch
        %180 = sbr.rel (%p178) target = $region20
      $region19: #{_lambda_.15} parent=11 // pred_region
        %p181 = scmp.lt.s32.totalorder %s20, 0
        %s182 = scalar_select %p181, %s20, 0
        %s183 = scalar_lea.vmem %s2, %s182
      $region20: #{_lambda_.15} parent=11 // pred_fallthru
        _
    $region12: #{_lambda_.15} parent=5 // pred_fallthru
      _
    %p184 = scmp.lt.s32.totalorder %s10, 2
    // Predicated region
    $region21: #{_lambda_.15} parent=5 // pred_check
      %p185 = pneg %p184
    $region22: #{_lambda_.15} parent=5 // pred_check_branch
      %187 = sbr.rel (%p185) target = $region24
    $region23: #{_lambda_.15} parent=5 // pred_region
      // Predicated region
      $region25: #{_lambda_.15} parent=23 // pred_check
        %p188 = pneg %p42
      $region26: #{_lambda_.15} parent=23 // pred_check_branch
        %190 = sbr.rel (%p188) target = $region28
      $region27: #{_lambda_.15} parent=23 // pred_region
        %s191 = smul.u32 2, %s17
        %p192 = scmp.lt.s32.totalorder %s191, 3
        %s193 = scalar_select %p192, %s191, 3
        %s194 = smul.addr %s193, 4
        %s195 = scalar_lea.vmem %s0, %s194
        %s196 = smul.u32 2, %s17
      $region28: #{_lambda_.15} parent=23 // pred_fallthru
        _
      // Predicated region
      $region29: #{_lambda_.15} parent=23 // pred_check
        %p197 = pneg %p122
      $region30: #{_lambda_.15} parent=23 // pred_check_branch
        %199 = sbr.rel (%p197) target = $region32
      $region31: #{_lambda_.15} parent=23 // pred_region
        %s200 = smul.u32 2, %s17
        %p201 = scmp.lt.s32.totalorder %s200, 3
        %s202 = scalar_select %p201, %s200, 3
        %p203 = scmp.lt.s32.totalorder %s18, 0
        %s204 = scalar_select %p203, %s18, 0
        %s205 = sadd.s32 %s204, %s202
        %s206 = smul.addr %s205, 4
        %s207 = scalar_lea.vmem %s3, %s206
        %s208 = smul.u32 2, %s17
      $region32: #{_lambda_.15} parent=23 // pred_fallthru
        _
    $region24: #{_lambda_.15} parent=5 // pred_fallthru
      _
    %p209 = scmp.le.s32.totalorder 1, %s10
    %p210 = scmp.lt.s32.totalorder %s10, 3
    %p211 = pnand %p209, %p210
    %p212 = pneg %p211
    // Predicated region
    $region33: #{_lambda_.15} parent=5 // pred_check
      _
    $region34: #{_lambda_.15} parent=5 // pred_check_branch
      %214 = sbr.rel (%p211) target = $region36
    $region35: #{_lambda_.15} parent=5 // pred_region
      %s215 = ssub.s32 %s10, 1
      %s216 = smul.u32 2, %s19
      %p217 = scmp.lt.s32.totalorder %s216, 3
      %s218 = scalar_select %p217, %s216, 3
      %s219 = smul.addr %s218, 4
      %s220 = scalar_lea.vmem %s0, %s219
      %p221 = pneg %p48
      %p222 = pneg %p45
      %p223 = scmp.lt.s32.totalorder %s20, 0
      %s224 = scalar_select %p223, %s20, 0
      %s225 = smul.addr %s224, 4
      %s226 = scalar_lea.vmem %s1, %s225
      %p227 = pneg %p74
      %p228 = pneg %p71
      %p229 = scmp.lt.s32.totalorder %s20, 0
      %s230 = scalar_select %p229, %s20, 0
      %s231 = scalar_lea.vmem %s2, %s230
      %p232 = pneg %p100
      %p233 = pneg %p97
      %s234 = smul.u32 2, %s19
      %p235 = scmp.lt.s32.totalorder %s234, 3
      %s236 = scalar_select %p235, %s234, 3
      %p237 = scmp.lt.s32.totalorder %s20, 0
      %s238 = scalar_select %p237, %s20, 0
      %s239 = sadd.s32 %s238, %s236
      %s240 = smul.addr %s239, 4
      %s241 = scalar_lea.vmem %s3, %s240
      %p242 = pneg %p128
      %p243 = pneg %p125
      %p244 = pneg %p156
      %p245 = pneg %p153
      %s246 = smul.u32 2, %s19
      %p247 = scmp.lt.s32.totalorder %s246, 3
      %s248 = scalar_select %p247, %s246, 3
      %p249 = scmp.lt.s32.totalorder %s20, 0
      %s250 = scalar_select %p249, %s20, 0
      %s251 = sadd.s32 %s250, %s248
      %s252 = smul.addr %s251, 4
      %s253 = scalar_lea.vmem %s4, %s252
      %s254 = smul.u32 2, %s19
      %p255 = scmp.lt.s32.totalorder %s254, 3
      %s256 = scalar_select %p255, %s254, 3
      %s257 = smul.addr %s256, 4
      %s258 = scalar_lea.vmem %s0, %s257
      %s259 = smul.u32 2, %s19
      %p260 = scmp.lt.s32.totalorder %s20, 0
      %s261 = scalar_select %p260, %s20, 0
      %s262 = smul.addr %s261, 4
      %s263 = scalar_lea.vmem %s1, %s262
      %p264 = scmp.lt.s32.totalorder %s20, 0
      %s265 = scalar_select %p264, %s20, 0
      %s266 = scalar_lea.vmem %s2, %s265
      %s267 = smul.u32 2, %s19
      %p268 = scmp.lt.s32.totalorder %s267, 3
      %s269 = scalar_select %p268, %s267, 3
      %p270 = scmp.lt.s32.totalorder %s20, 0
      %s271 = scalar_select %p270, %s20, 0
      %s272 = sadd.s32 %s271, %s269
      %s273 = smul.addr %s272, 4
      %s274 = scalar_lea.vmem %s3, %s273
      %s275 = smul.u32 2, %s19
      %s276 = smul.u32 2, %s19
      %p277 = scmp.lt.s32.totalorder %s276, 3
      %s278 = scalar_select %p277, %s276, 3
      %p279 = scmp.lt.s32.totalorder %s20, 0
      %s280 = scalar_select %p279, %s20, 0
      %s281 = sadd.s32 %s280, %s278
      %s282 = smul.addr %s281, 4
      %s283 = scalar_lea.vmem %s4, %s282
      %s284 = smul.u32 2, %s19
      %v286 = vld [vmem:[%s258] sm:$0xf]
      %v287 = vld [vmem:[%s258 + $0x4] sm:$0xf]
      %v288 = vld [vmem:[%s263] sm:$0xf]
      %v289 = vld [vmem:[%s263 + $0x4] sm:$0xf]
      %v290 = vld [vmem:[%s263 + $0x8] sm:$0xf]
      %v291 = vld [vmem:[%s263 + $0xc] sm:$0xf]
      %v292 = vld [vmem:[%s263 + $0x10] sm:$0xf]
      %v293 = vld [vmem:[%s263 + $0x14] sm:$0xf]
      %v294 = vld [vmem:[%s263 + $0x18] sm:$0xf]
      %v295 = vld [vmem:[%s263 + $0x1c] sm:$0xf]
      %v296 = vld [vmem:[%s263 + $0x20] sm:$0xf]
      %v297 = vld [vmem:[%s263 + $0x24] sm:$0xf]
      %v298 = vld [vmem:[%s263 + $0x28] sm:$0xf]
      %v299 = vld [vmem:[%s263 + $0x2c] sm:$0xf]
      %v300 = vld [vmem:[%s263 + $0x30] sm:$0xf]
      %v301 = vld [vmem:[%s263 + $0x34] sm:$0xf]
      %v302 = vld [vmem:[%s263 + $0x38] sm:$0xf]
      %v303 = vld [vmem:[%s263 + $0x3c] sm:$0xf]
      %v306 = vunpack.c.l.b16 %v286
      %v307 = vunpack.c.l.b16 %v287
      %v308 = vpack.c.b16 %v307, %v306
      %v326 = vunpack.c.l.b16 %v288
      %v327 = vunpack.c.l.b16 %v289
      %v328 = vunpack.c.l.b16 %v290
      %v329 = vunpack.c.l.b16 %v291
      %v330 = vunpack.c.l.b16 %v292
      %v331 = vunpack.c.l.b16 %v293
      %v332 = vunpack.c.l.b16 %v294
      %v333 = vunpack.c.l.b16 %v295
      %v334 = vunpack.c.l.b16 %v296
      %v335 = vunpack.c.l.b16 %v297
      %v336 = vunpack.c.l.b16 %v298
      %v337 = vunpack.c.l.b16 %v299
      %v338 = vunpack.c.l.b16 %v300
      %v339 = vunpack.c.l.b16 %v301
      %v340 = vunpack.c.l.b16 %v302
      %v341 = vunpack.c.l.b16 %v303
      %v342 = vpack.c.b16 %v327, %v326
      %v343 = vpack.c.b16 %v329, %v328
      %v344 = vpack.c.b16 %v331, %v330
      %v345 = vpack.c.b16 %v333, %v332
      %v346 = vpack.c.b16 %v335, %v334
      %v347 = vpack.c.b16 %v337, %v336
      %v348 = vpack.c.b16 %v339, %v338
      %v349 = vpack.c.b16 %v341, %v340
      %358 = vmatprep.subr.bf16.mxu0 0
      %359 = vmatpush1.bf16.msra.mxu0 %v342
      %360 = vmatprep.subr.bf16.mxu0 0
      %361 = vmatpush1.bf16.msra.mxu0 %v343
      %362 = vmatprep.subr.bf16.mxu0 0
      %363 = vmatpush1.bf16.msra.mxu0 %v344
      %364 = vmatprep.subr.bf16.mxu0 0
      %365 = vmatpush1.bf16.msra.mxu0 %v345
      %366 = vmatprep.subr.bf16.mxu0 0
      %367 = vmatpush1.bf16.msra.mxu0 %v346
      %368 = vmatprep.subr.bf16.mxu0 0
      %369 = vmatpush1.bf16.msra.mxu0 %v347
      %370 = vmatprep.subr.bf16.mxu0 0
      %371 = vmatpush1.bf16.msra.mxu0 %v348
      %372 = vmatprep.subr.bf16.mxu0 0
      %373 = vmatpush1.bf16.msra.mxu0 %v349
      %374 = vmatprep.subr.bf16.mxu0 0
      %375 = vmatpush1.bf16.msra.mxu0 0
      %376 = vmatprep.subr.bf16.mxu0 0
      %377 = vmatpush1.bf16.msra.mxu0 0
      %378 = vmatprep.subr.bf16.mxu0 0
      %379 = vmatpush1.bf16.msra.mxu0 0
      %380 = vmatprep.subr.bf16.mxu0 0
      %381 = vmatpush1.bf16.msra.mxu0 0
      %382 = vmatprep.subr.bf16.mxu0 0
      %383 = vmatpush1.bf16.msra.mxu0 0
      %384 = vmatprep.subr.bf16.mxu0 0
      %385 = vmatpush1.bf16.msra.mxu0 0
      %386 = vmatprep.subr.bf16.mxu0 0
      %387 = vmatpush1.bf16.msra.mxu0 0
      %388 = vmatprep.subr.bf16.mxu0 0
      %389 = vmatpush1.bf16.msra.mxu0 0
      %390 = vmatprep.mubr.bf16.mxu0 0
      %391 = vmatmul.mubr.bf16.gmra.mrb[0].mxu0 %v308
      %v392 = vpop.f32.mrb[0].mxu0
      %v393 = vadd.f32 0.0, %v392
      %v394 = vpop.f32.mrb[0].mxu0
      %v395 = vpop.f32.mrb[0].mxu0
      %v396 = vadd.f32 0.0, %v395
      %v397 = vpop.f32.mrb[0].mxu0
      %398 = vdwg.mxu0
      %v399 = vld [vmem:[%s274] sm:$0xf]
      %v400 = vld [vmem:[%s274 + $0x4] sm:$0xf]
      %v401 = vunpack.c.l.bf16 %v399
      %v402 = vunpack.c.l.bf16 %v400
      %v403 = vadd.f32 %v401, %v393
      %v404 = vadd.f32 %v402, %v396
      %v405 = vld [vmem:[%s266] sm:$0x1]
      %v407 = vlaneseq
      %v408 = vshrl.u32 %v407, 7
      %v409 = vsub.s32 0, %v408
      %v410 = vrot.slane %v405, %v409
      %v412 = vadd.f32 %v403, %v410
      %v413 = vadd.f32 %v404, %v410
      %v414 = vpack.c.bf16 %v413, %v412
      %v416 = vunpack.c.l.b16 %v414
      %v417 = vunpack.c.h.b16 %v414
      %v418 = vpack.c.b16 %v416, %v416
      %v419 = vpack.c.b16 %v417, %v417
      %vm422 = vcmask 257024
      %423 = vst.msk [vmem:[%s283] sm:$0xf] %vm422, %v418
      %424 = vst.msk [vmem:[%s283 + $0x4] sm:$0xf] %vm422, %v419
      %s425 = smul.u32 2, %s19
      %p426 = scmp.lt.s32.totalorder %s425, 3
      %s427 = scalar_select %p426, %s425, 3
      %p428 = scmp.lt.s32.totalorder %s20, 0
      %s429 = scalar_select %p428, %s20, 0
      %s430 = sadd.s32 %s429, %s427
      %s431 = smul.addr %s430, 4
      %s432 = scalar_lea.vmem %s4, %s431
      // Predicated region
      $region37: #{_lambda_.15} parent=35 // pred_check
        %p433 = pneg %p153
      $region38: #{_lambda_.15} parent=35 // pred_check_branch
        %435 = sbr.rel (%p433) target = $region40
      $region39: #{_lambda_.15} parent=35 // pred_region
        %s436 = smul.u32 2, %s19
      $region40: #{_lambda_.15} parent=35 // pred_fallthru
        _
    $region36: #{_lambda_.15} parent=5 // pred_fallthru
      _
    %p437 = scmp.le.s32.totalorder 2, %s10
    // Predicated region
    $region41: #{_lambda_.15} parent=5 // pred_check
      %p438 = pneg %p437
    $region42: #{_lambda_.15} parent=5 // pred_check_branch
      %440 = sbr.rel (%p438) target = $region44
    $region43: #{_lambda_.15} parent=5 // pred_region
      %s441 = ssub.s32 %s10, 2
      // Predicated region
      $region45: #{_lambda_.15} parent=43 // pred_check
        %p442 = pneg %p159
      $region46: #{_lambda_.15} parent=43 // pred_check_branch
        %444 = sbr.rel (%p442) target = $region48
      $region47: #{_lambda_.15} parent=43 // pred_region
        %s445 = smul.u32 2, %s21
        %p446 = scmp.lt.s32.totalorder %s445, 3
        %s447 = scalar_select %p446, %s445, 3
        %p448 = scmp.lt.s32.totalorder %s22, 0
        %s449 = scalar_select %p448, %s22, 0
        %s450 = sadd.s32 %s449, %s447
        %s451 = smul.addr %s450, 4
        %s452 = scalar_lea.vmem %s4, %s451
      $region48: #{_lambda_.15} parent=43 // pred_fallthru
        _
    $region44: #{_lambda_.15} parent=5 // pred_fallthru
      _
  $region6: #{_lambda_.15} parent=0 // loop_footer
    %s14 = sadd.s32 1, %s10
  $region7: #{_lambda_.15} parent=0 // loop_footer_branch
    %9 = sbr.rel target = $region3
  $region8: #{_lambda_.15} parent=0 // loop_exit
    _

// kernel: _lambda_.21
$region0: #{_lambda_.21}
  #allocation0 [shape = 'u32[]', space=smem, size = 0x4, offset = 0x4, fixed_abs, tag = 'smem constant byte address 0x4 - core index']
  #allocation1 [shape = 'u32[144,128]{1,0:T(1,128)}', space=vmem, size = 0x12000, scoped, tag = 'internal scratch']
  #allocation2 [shape = 'bf16[16,32]{1,0:T(16,128)(2,1)}', space=vmem, size = 0x1000, scoped, tag = 'scratch operand']
  %s0 = inlined_call_operand.vmem [shape: bf16[16,32], index: 0, kind: input, shape index: {}]
  %s1 = inlined_call_operand.vmem [shape: f32[1,32], index: 1, kind: input, shape index: {}]
  %s2 = inlined_call_operand.vmem [shape: f32[1,32], index: 2, kind: input, shape index: {}]
  %s3 = inlined_call_operand.vmem [shape: bf16[32,64], index: 3, kind: input, shape index: {}]
  %s4 = inlined_call_operand.vmem [shape: f32[1,64], index: 4, kind: input, shape index: {}]
  %s5 = inlined_call_operand.hbm [shape: f32[16,64], index: 5, kind: output, shape index: {}]
  %s6 = sld [smem:[#allocation0]]
  $region34: #{_lambda_.21} parent=0
    _
  %s8 = ssub.s32 1, %s6
  %s9 = scalar_select 0, %s8, %s6
  $region1: #{_lambda_.21} parent=0
    #allocation3 [shape = 'u8[8192]{0}', space=vmem, size = 0x2000, scoped, tag = 'output window, operand 0, single buffered']
    #allocation4 [shape = 's32[1]{0}', space=sflag, size = 0x4, scoped, tag = 'scoped memory for _lambda_.21']
    %10 = vsyncpa [#allocation4], 0
    // Predicated region
    $region2: #{_lambda_.21} parent=1 // pred_check
      _
    $region3: #{_lambda_.21} parent=1 // pred_check_branch
      %12 = sbr.rel (0) target = $region5
    $region4: #{_lambda_.21} parent=1 // pred_region
      _
    $region5: #{_lambda_.21} parent=1 // pred_fallthru
      _
    // Predicated region
    $region6: #{_lambda_.21} parent=1 // pred_check
      _
    $region7: #{_lambda_.21} parent=1 // pred_check_branch
      %14 = sbr.rel (0) target = $region9
    $region8: #{_lambda_.21} parent=1 // pred_region
      _
    $region9: #{_lambda_.21} parent=1 // pred_fallthru
      _
    // Predicated region
    $region10: #{_lambda_.21} parent=1 // pred_check
      _
    $region11: #{_lambda_.21} parent=1 // pred_check_branch
      %16 = sbr.rel (0) target = $region13
    $region12: #{_lambda_.21} parent=1 // pred_region
      _
    $region13: #{_lambda_.21} parent=1 // pred_fallthru
      _
    // Predicated region
    $region14: #{_lambda_.21} parent=1 // pred_check
      _
    $region15: #{_lambda_.21} parent=1 // pred_check_branch
      %18 = sbr.rel (0) target = $region17
    $region16: #{_lambda_.21} parent=1 // pred_region
      _
    $region17: #{_lambda_.21} parent=1 // pred_fallthru
      _
    // Predicated region
    $region18: #{_lambda_.21} parent=1 // pred_check
      _
    $region19: #{_lambda_.21} parent=1 // pred_check_branch
      %20 = sbr.rel (0) target = $region21
    $region20: #{_lambda_.21} parent=1 // pred_region
      _
    $region21: #{_lambda_.21} parent=1 // pred_fallthru
      _
    %p22 = scmp.eq.s32.totalorder 0, 0
    // Predicated region
    $region22: #{_lambda_.21} parent=1 // pred_check
      %p23 = pneg %p22
    $region23: #{_lambda_.21} parent=1 // pred_check_branch
      %25 = sbr.rel (%p23) target = $region25
    $region24: #{_lambda_.21} parent=1 // pred_region
      %v26 = vld [vmem:[%s0] sm:$0xf]
      %v27 = vld [vmem:[%s0 + $0x4] sm:$0xf]
      %v28 = vunpack.c.l.bf16 %v26
      %v29 = vunpack.c.l.bf16 %v27
      %vm30 = vcmask 261120
      %v31 = vsel %vm30, %v28, 0.0
      %32 = vadd.xlane.f32.xlu0 %v31
      %v33 = vpop.xlane.xlu0 %32
      %v34 = vsel %vm30, %v29, 0.0
      %35 = vadd.xlane.f32.xlu0 %v34
      %v36 = vpop.xlane.xlu0 %35
      %v37 = vrcp.pop 32.0
      %v38 = vmul.f32 %v33, %v37
      %v39 = vmul.f32 %v36, %v37
      %v40 = vsub.f32 %v28, %v38
      %v41 = vsub.f32 %v29, %v39
      %v42 = vmul.f32 %v40, %v40
      %v43 = vmul.f32 %v41, %v41
      %v44 = vsel %vm30, %v42, 0.0
      %45 = vadd.xlane.f32.xlu0 %v44
      %v46 = vpop.xlane.xlu0 %45
      %v47 = vsel %vm30, %v43, 0.0
      %48 = vadd.xlane.f32.xlu0 %v47
      %v49 = vpop.xlane.xlu0 %48
      %v50 = vmul.f32 %v46, %v37
      %v51 = vmul.f32 %v49, %v37
      %v52 = vadd.f32 %v50, 1e-05
      %v53 = vadd.f32 %v51, 1e-05
      %v54 = vrsqrt.pop %v52
      %v55 = vrsqrt.pop %v53
      %v56 = vmul.f32 %v40, %v54
      %v57 = vmul.f32 %v41, %v55
      %v58 = vld [vmem:[%s1] sm:$0x1]
      %v60 = vlaneseq
      %v61 = vshrl.u32 %v60, 7
      %v62 = vsub.s32 0, %v61
      %v63 = vrot.slane %v58, %v62
      %v65 = vmul.f32 %v56, %v63
      %v66 = vmul.f32 %v57, %v63
      %v67 = vld [vmem:[%s2] sm:$0x1]
      %v69 = vlaneseq
      %v70 = vshrl.u32 %v69, 7
      %v71 = vsub.s32 0, %v70
      %v72 = vrot.slane %v67, %v71
      %v74 = vadd.f32 %v65, %v72
      %v75 = vadd.f32 %v66, %v72
      %v76 = vpack.c.bf16 %v75, %v74
      %77 = vst.msk [vmem:[#allocation2] sm:$0xff] %vm30, %v76
    $region25: #{_lambda_.21} parent=1 // pred_fallthru
      _
    %v78 = vld [vmem:[#allocation2] sm:$0xff]
    %v79 = vld [vmem:[%s3] sm:$0xf]
    %v80 = vld [vmem:[%s3 + $0x4] sm:$0xf]
    %v81 = vld [vmem:[%s3 + $0x8] sm:$0xf]
    %v82 = vld [vmem:[%s3 + $0xc] sm:$0xf]
    %v83 = vld [vmem:[%s4] sm:$0x1]
    %v85 = vlaneseq
    %v86 = vshrl.u32 %v85, 7
    %v87 = vsub.s32 0, %v86
    %v88 = vrot.slane %v83, %v87
    %v94 = vunpack.c.l.b16 %v79
    %v95 = vunpack.c.l.b16 %v80
    %v96 = vunpack.c.l.b16 %v81
    %v97 = vunpack.c.l.b16 %v82
    %v98 = vpack.c.b16 %v95, %v94
    %v99 = vpack.c.b16 %v97, %v96
    %vm102 = vcmask 261120
    %v104 = vsel %vm102, %v78, 0
    %106 = vmatprep.subr.bf16.mxu0 0
    %107 = vmatpush1.bf16.msra.mxu0 %v98
    %108 = vmatprep.subr.bf16.mxu0 0
    %109 = vmatpush1.bf16.msra.mxu0 %v99
    %110 = vmatprep.subr.bf16.mxu0 0
    %111 = vmatpush1.bf16.msra.mxu0 0
    %112 = vmatprep.subr.bf16.mxu0 0
    %113 = vmatpush1.bf16.msra.mxu0 0
    %114 = vmatprep.subr.bf16.mxu0 0
    %115 = vmatpush1.bf16.msra.mxu0 0
    %116 = vmatprep.subr.bf16.mxu0 0
    %117 = vmatpush1.bf16.msra.mxu0 0
    %118 = vmatprep.subr.bf16.mxu0 0
    %119 = vmatpush1.bf16.msra.mxu0 0
    %120 = vmatprep.subr.bf16.mxu0 0
    %121 = vmatpush1.bf16.msra.mxu0 0
    %122 = vmatprep.subr.bf16.mxu0 0
    %123 = vmatpush1.bf16.msra.mxu0 0
    %124 = vmatprep.subr.bf16.mxu0 0
    %125 = vmatpush1.bf16.msra.mxu0 0
    %126 = vmatprep.subr.bf16.mxu0 0
    %127 = vmatpush1.bf16.msra.mxu0 0
    %128 = vmatprep.subr.bf16.mxu0 0
    %129 = vmatpush1.bf16.msra.mxu0 0
    %130 = vmatprep.subr.bf16.mxu0 0
    %131 = vmatpush1.bf16.msra.mxu0 0
    %132 = vmatprep.subr.bf16.mxu0 0
    %133 = vmatpush1.bf16.msra.mxu0 0
    %134 = vmatprep.subr.bf16.mxu0 0
    %135 = vmatpush1.bf16.msra.mxu0 0
    %136 = vmatprep.subr.bf16.mxu0 0
    %137 = vmatpush1.bf16.msra.mxu0 0
    %138 = vmatprep.mubr.bf16.mxu0 0
    %139 = vmatmul.mubr.bf16.gmra.mrb[0].mxu0 %v104
    %v140 = vpop.f32.mrb[0].mxu0
    %v141 = vadd.f32 %v88, %v140
    %v142 = vpop.f32.mrb[0].mxu0
    %v143 = vpop.f32.mrb[0].mxu0
    %v144 = vadd.f32 %v88, %v143
    %v145 = vpop.f32.mrb[0].mxu0
    %146 = vdwg.mxu0
    %vm147 = vcmask 523264
    %148 = vst.msk [vmem:[#allocation3] sm:$0xff] %vm147, %v141
    %149 = vst.msk [vmem:[#allocation3 + $0x8] sm:$0xff] %vm147, %v144
    // Predicated region
    $region26: #{_lambda_.21} parent=1 // pred_check
      _
    $region27: #{_lambda_.21} parent=1 // pred_check_branch
      %151 = sbr.rel (0) target = $region29
    $region28: #{_lambda_.21} parent=1 // pred_region
      %s153 = ssub.s32 256, 256
      %154 = vsyncadd [#allocation4], %s153
      %s155 = sshll.u32 [#allocation3], 4
      %s156 = int_to_ptr.vmem [resolvable:$true] %s155
      %161 = dma.vmem_to_hbm [thread:$0]  %s156, 256, %s5, [#allocation4], 128, 128, 8
    $region29: #{_lambda_.21} parent=1 // pred_fallthru
      _
    // Predicated region
    $region30: #{_lambda_.21} parent=1 // pred_check
      _
    $region31: #{_lambda_.21} parent=1 // pred_check_branch
      %163 = sbr.rel (0) target = $region33
    $region32: #{_lambda_.21} parent=1 // pred_region
      %164 = dma.done [#allocation4], 256
    $region33: #{_lambda_.21} parent=1 // pred_fallthru
      _
    %165 = vsyncpa [#allocation4], 1

</llo_original>
